<compile_context>
chip_gen: v5e
topology: v5e:2x2
jax: 0.10.0
libtpu: 0.0.40
codegen_flags: <defaults>
</compile_context>

<pallas_src>
import functools

import numpy as np
import jax
import jax.numpy as jnp
from jax import lax
from jax.experimental import pallas as pl
from jax.experimental.pallas import tpu as pltpu


def convlstm_kernel(xp_ref, wx_ref, wh_ref, b_ref, wo_ref, bo_ref, out_ref,
                    h_pad, c_scr, hpat, *, H, W, CIN, HC, ROWS):
    t = pl.program_id(1)
    n = H * W
    RT = ROWS * W               # flattened rows per spatial chunk (~128)
    n_chunks = H // ROWS

    @pl.when(t == 0)
    def _init():
        h_pad[...] = jnp.zeros_like(h_pad)   # zero borders == "SAME" padding, re-zeroed per batch
        c_scr[...] = jnp.zeros_like(c_scr)

    # Build h im2col patches (tap-major columns) from the PREVIOUS step's padded h, once per step.
    for dy in range(3):
        for dx in range(3):
            k = dy * 3 + dx
            hpat[:, k * HC:(k + 1) * HC] = (
                h_pad[dy:dy + H, dx:dx + W, :].reshape(n, HC).astype(jnp.bfloat16))

    for r in range(n_chunks):
        row0 = r * RT
        y0 = r * ROWS

        xp_c = xp_ref[0, 0, row0:row0 + RT, :]           # (RT, 9*CIN) bf16
        hp_c = hpat[row0:row0 + RT, :]                   # (RT, 9*HC)  bf16
        gates = (jnp.dot(xp_c, wx_ref[...], preferred_element_type=jnp.float32)
                 + jnp.dot(hp_c, wh_ref[...], preferred_element_type=jnp.float32)
                 + b_ref[...])                           # (RT, 4*HC) f32

        i = jax.nn.sigmoid(gates[:, 0 * HC:1 * HC])
        f = jax.nn.sigmoid(gates[:, 1 * HC:2 * HC])
        g = jnp.tanh(gates[:, 2 * HC:3 * HC])
        o = jax.nn.sigmoid(gates[:, 3 * HC:4 * HC])

        c_prev = c_scr[row0:row0 + RT, :]
        c_next = f * c_prev + i * g
        h_next = o * jnp.tanh(c_next)

        c_scr[row0:row0 + RT, :] = c_next
        # write h directly into the interior of the padded buffer (borders stay zero)
        h_pad[1 + y0:1 + y0 + ROWS, 1:W + 1, :] = h_next.reshape(ROWS, W, HC)

        @pl.when(t == pl.num_programs(1) - 1)
        def _final():
            # 1x1 conv (HC -> 1) as a lane reduction; output written only once, at the last step.
            out = jnp.sum(h_next * wo_ref[...], axis=-1, keepdims=True) + bo_ref[...]
            out_ref[0, y0:y0 + ROWS, :, :] = out.reshape(ROWS, W, 1)


def convlstm_forward(x, conv_w, conv_b, out_w, out_b, hidden_channels):
    """x: (B, T, C, H, W) float32 (PyTorch layout). Returns (B, 1, H, W)."""
    B, T, C, H, W = x.shape
    HC = hidden_channels
    CIN = C

    # rows per chunk: target ~128 flattened rows, must divide H
    rows = max(1, min(H, 128 // W)) if W <= 128 else 1
    while H % rows != 0:
        rows -= 1

    # x: NCHW -> NHWC, zero-pad, im2col 3x3 patches (tap-major / cin-minor) -> (B, T, H*W, 9*CIN)
    x_nhwc = jnp.transpose(x, (0, 1, 3, 4, 2)).astype(jnp.float32)
    x_p = jnp.pad(x_nhwc, ((0, 0), (0, 0), (1, 1), (1, 1), (0, 0)))
    taps = [x_p[:, :, dy:dy + H, dx:dx + W, :] for dy in range(3) for dx in range(3)]
    xp = jnp.concatenate(taps, axis=-1).reshape(B, T, H * W, 9 * CIN).astype(jnp.bfloat16)

    # conv_w: (4*HC, CIN+HC, 3, 3) -> tap-major matrices, split x / h input channels
    w_taps = jnp.transpose(conv_w, (2, 3, 1, 0))                       # (3, 3, CC, 4*HC)
    wx = w_taps[:, :, :CIN, :].reshape(9 * CIN, 4 * HC).astype(jnp.bfloat16)
    wh = w_taps[:, :, CIN:, :].reshape(9 * HC, 4 * HC).astype(jnp.bfloat16)
    bias = conv_b.reshape(1, 4 * HC).astype(jnp.float32)
    wo = out_w.reshape(1, HC).astype(jnp.float32)                      # out_w: (1, HC, 1, 1)
    bo = out_b.reshape(1, 1).astype(jnp.float32)

    kernel = functools.partial(convlstm_kernel, H=H, W=W, CIN=CIN, HC=HC, ROWS=rows)

    out_nhwc = pl.pallas_call(
        kernel,
        out_shape=jax.ShapeDtypeStruct((B, H, W, 1), jnp.float32),
        grid_spec=pltpu.PrefetchScalarGridSpec(
            num_scalar_prefetch=0,
            grid=(B, T),
            in_specs=[
                pl.BlockSpec((1, 1, H * W, 9 * CIN), lambda bb, t: (bb, t, 0, 0)),
                pl.BlockSpec((9 * CIN, 4 * HC), lambda bb, t: (0, 0)),
                pl.BlockSpec((9 * HC, 4 * HC), lambda bb, t: (0, 0)),
                pl.BlockSpec((1, 4 * HC), lambda bb, t: (0, 0)),
                pl.BlockSpec((1, HC), lambda bb, t: (0, 0)),
                pl.BlockSpec((1, 1), lambda bb, t: (0, 0)),
            ],
            out_specs=pl.BlockSpec((1, H, W, 1), lambda bb, t: (bb, 0, 0, 0)),
            scratch_shapes=[
                pltpu.VMEM((H + 2, W + 2, HC), jnp.float32),     # padded h (zero borders)
                pltpu.VMEM((H * W, HC), jnp.float32),            # c
                pltpu.VMEM((H * W, 9 * HC), jnp.bfloat16),       # h im2col patch buffer
            ],
        ),
        compiler_params=pltpu.CompilerParams(
            dimension_semantics=("parallel", "arbitrary")),      # batch parallel, T is recurrent
    )(xp, wx, wh, bias, wo, bo)

    return jnp.transpose(out_nhwc, (0, 3, 1, 2))                 # -> (B, 1, H, W), PyTorch layout


def ref_convlstm(x, conv_w, conv_b, out_w, out_b, HC):
    """Pure-JAX f32 reference (NCHW, mirrors the PyTorch module)."""
    B, T, C, H, W = x.shape
    h = jnp.zeros((B, HC, H, W), jnp.float32)
    c = jnp.zeros((B, HC, H, W), jnp.float32)
    dn = ('NCHW', 'OIHW', 'NCHW')
    for t in range(T):
        xt = x[:, t]
        comb = jnp.concatenate([xt, h], axis=1)
        gates = lax.conv_general_dilated(comb, conv_w, (1, 1), 'SAME', dimension_numbers=dn)
        gates = gates + conv_b[None, :, None, None]
        i, f, g, o = jnp.split(gates, 4, axis=1)
        i = jax.nn.sigmoid(i)
        f = jax.nn.sigmoid(f)
        g = jnp.tanh(g)
        o = jax.nn.sigmoid(o)
        c = f * c + i * g
        h = o * jnp.tanh(c)
    out = lax.conv_general_dilated(h, out_w, (1, 1), 'SAME', dimension_numbers=dn)
    return out + out_b[None, :, None, None]


if __name__ == "__main__":
    B, T, C, H, W = 2, 8, 4, 16, 16
    HC = 32
    CC = C + HC

    key = jax.random.PRNGKey(0)
    k1, k2, k3, k4, k5 = jax.random.split(key, 5)
    x = jax.random.normal(k1, (B, T, C, H, W), jnp.float32)

    # deterministic param init (PyTorch-style uniform bounds, synthetic values)
    bound1 = 1.0 / float(np.sqrt(CC * 3 * 3))
    conv_w = jax.random.uniform(k2, (4 * HC, CC, 3, 3), jnp.float32, -bound1, bound1)
    conv_b = jax.random.uniform(k3, (4 * HC,), jnp.float32, -bound1, bound1)
    bound2 = 1.0 / float(np.sqrt(HC))
    out_w = jax.random.uniform(k4, (1, HC, 1, 1), jnp.float32, -bound2, bound2)
    out_b = jax.random.uniform(k5, (1,), jnp.float32, -bound2, bound2)

    out = convlstm_forward(x, conv_w, conv_b, out_w, out_b, HC)
    out = jax.block_until_ready(out)
    assert out.shape == (B, 1, H, W)

    ref = ref_convlstm(x, conv_w, conv_b, out_w, out_b, HC)
    # tolerance widened vs. f32 version: matmul operands are bf16 (f32 accumulation)
    np.testing.assert_allclose(np.asarray(out), np.asarray(ref), atol=2e-2, rtol=2e-2)

    print("KERNEL_OK")
</pallas_src>

<mosaic_0001>
module attributes {stable_mosaic.version = 11 : i64} {
  func.func @convlstm_kernel(%arg0: i32, %arg1: i32, %arg2: memref<1x1x256x36xbf16, #tpu.memory_space<vmem>>, %arg3: memref<36x128xbf16, #tpu.memory_space<vmem>>, %arg4: memref<288x128xbf16, #tpu.memory_space<vmem>>, %arg5: memref<1x128xf32, #tpu.memory_space<vmem>>, %arg6: memref<1x32xf32, #tpu.memory_space<vmem>>, %arg7: memref<1x1xf32, #tpu.memory_space<vmem>>, %arg8: memref<1x16x16x1xf32, #tpu.memory_space<vmem>>, %arg9: memref<18x18x32xf32, #tpu.memory_space<vmem>>, %arg10: memref<256x32xf32, #tpu.memory_space<vmem>>, %arg11: memref<256x288xbf16, #tpu.memory_space<vmem>>) attributes {dimension_semantics = [#tpu.dimension_semantics<parallel>, #tpu.dimension_semantics<arbitrary>], iteration_bounds = array<i64: 2, 8>, scalar_prefetch = 0 : i64, scratch_operands = 3 : i64, tpu.core_type = #tpu.core_type<tc>, window_params = [{transform_indices = @transform_0, window_bounds = array<i64: 1, 1, 256, 36>}, {pipeline_mode = #tpu.pipeline_mode<synchronous>, transform_indices = @transform_1, window_bounds = array<i64: 36, 128>}, {pipeline_mode = #tpu.pipeline_mode<synchronous>, transform_indices = @transform_2, window_bounds = array<i64: 288, 128>}, {pipeline_mode = #tpu.pipeline_mode<synchronous>, transform_indices = @transform_3, window_bounds = array<i64: 1, 128>}, {pipeline_mode = #tpu.pipeline_mode<synchronous>, transform_indices = @transform_4, window_bounds = array<i64: 1, 32>}, {pipeline_mode = #tpu.pipeline_mode<synchronous>, transform_indices = @transform_5, window_bounds = array<i64: 1, 1>}, {transform_indices = @transform_6, window_bounds = array<i64: 1, 16, 16, 1>}]} {
    %c0_i32 = arith.constant 0 : i32
    %0 = arith.cmpi eq, %arg1, %c0_i32 : i32
    %1 = arith.extui %0 : i1 to i32
    %c0_i32_0 = arith.constant 0 : i32
    %2 = arith.cmpi ne, %1, %c0_i32_0 : i32
    scf.if %2 {
      %cst_84 = arith.constant 0.000000e+00 : f32
      %125 = vector.broadcast %cst_84 : f32 to vector<18x18x32xf32>
      %c0_85 = arith.constant 0 : index
      %c0_86 = arith.constant 0 : index
      %c0_87 = arith.constant 0 : index
      %126 = vector.load %arg9[%c0_85, %c0_86, %c0_87] : memref<18x18x32xf32, #tpu.memory_space<vmem>>, vector<18x18x32xf32>
      tpu.vector_store %arg9[%c0_85, %c0_86, %c0_87], %125 {strides = array<i32>} : memref<18x18x32xf32, #tpu.memory_space<vmem>>, vector<18x18x32xf32>,
      %cst_88 = arith.constant 0.000000e+00 : f32
      %127 = vector.broadcast %cst_88 : f32 to vector<256x32xf32>
      %c0_89 = arith.constant 0 : index
      %c0_90 = arith.constant 0 : index
      %128 = vector.load %arg10[%c0_89, %c0_90] : memref<256x32xf32, #tpu.memory_space<vmem>>, vector<256x32xf32>
      tpu.vector_store %arg10[%c0_89, %c0_90], %127 {strides = array<i32>} : memref<256x32xf32, #tpu.memory_space<vmem>>, vector<256x32xf32>,
    } else {
    }
    %c0 = arith.constant 0 : index
    %c0_1 = arith.constant 0 : index
    %c0_2 = arith.constant 0 : index
    %3 = vector.load %arg9[%c0, %c0_1, %c0_2] : memref<18x18x32xf32, #tpu.memory_space<vmem>>, vector<16x16x32xf32>
    %4 = vector.shape_cast %3 : vector<16x16x32xf32> to vector<256x32xf32>
    %5 = arith.truncf %4 : vector<256x32xf32> to vector<256x32xbf16>
    %c0_3 = arith.constant 0 : index
    %c0_4 = arith.constant 0 : index
    %6 = vector.load %arg11[%c0_3, %c0_4] : memref<256x288xbf16, #tpu.memory_space<vmem>>, vector<256x32xbf16>
    tpu.vector_store %arg11[%c0_3, %c0_4], %5 {strides = array<i32>} : memref<256x288xbf16, #tpu.memory_space<vmem>>, vector<256x32xbf16>,
    %c0_5 = arith.constant 0 : index
    %c1 = arith.constant 1 : index
    %c0_6 = arith.constant 0 : index
    %7 = vector.load %arg9[%c0_5, %c1, %c0_6] : memref<18x18x32xf32, #tpu.memory_space<vmem>>, vector<16x16x32xf32>
    %8 = vector.shape_cast %7 : vector<16x16x32xf32> to vector<256x32xf32>
    %9 = arith.truncf %8 : vector<256x32xf32> to vector<256x32xbf16>
    %c0_7 = arith.constant 0 : index
    %c32 = arith.constant 32 : index
    %10 = vector.load %arg11[%c0_7, %c32] : memref<256x288xbf16, #tpu.memory_space<vmem>>, vector<256x32xbf16>
    tpu.vector_store %arg11[%c0_7, %c32], %9 {strides = array<i32>} : memref<256x288xbf16, #tpu.memory_space<vmem>>, vector<256x32xbf16>,
    %c0_8 = arith.constant 0 : index
    %c2 = arith.constant 2 : index
    %c0_9 = arith.constant 0 : index
    %11 = vector.load %arg9[%c0_8, %c2, %c0_9] : memref<18x18x32xf32, #tpu.memory_space<vmem>>, vector<16x16x32xf32>
    %12 = vector.shape_cast %11 : vector<16x16x32xf32> to vector<256x32xf32>
    %13 = arith.truncf %12 : vector<256x32xf32> to vector<256x32xbf16>
    %c0_10 = arith.constant 0 : index
    %c64 = arith.constant 64 : index
    %14 = vector.load %arg11[%c0_10, %c64] : memref<256x288xbf16, #tpu.memory_space<vmem>>, vector<256x32xbf16>
    tpu.vector_store %arg11[%c0_10, %c64], %13 {strides = array<i32>} : memref<256x288xbf16, #tpu.memory_space<vmem>>, vector<256x32xbf16>,
    %c1_11 = arith.constant 1 : index
    %c0_12 = arith.constant 0 : index
    %c0_13 = arith.constant 0 : index
    %15 = vector.load %arg9[%c1_11, %c0_12, %c0_13] : memref<18x18x32xf32, #tpu.memory_space<vmem>>, vector<16x16x32xf32>
    %16 = vector.shape_cast %15 : vector<16x16x32xf32> to vector<256x32xf32>
    %17 = arith.truncf %16 : vector<256x32xf32> to vector<256x32xbf16>
    %c0_14 = arith.constant 0 : index
    %c96 = arith.constant 96 : index
    %18 = vector.load %arg11[%c0_14, %c96] : memref<256x288xbf16, #tpu.memory_space<vmem>>, vector<256x32xbf16>
    tpu.vector_store %arg11[%c0_14, %c96], %17 {strides = array<i32>} : memref<256x288xbf16, #tpu.memory_space<vmem>>, vector<256x32xbf16>,
    %c1_15 = arith.constant 1 : index
    %c1_16 = arith.constant 1 : index
    %c0_17 = arith.constant 0 : index
    %19 = vector.load %arg9[%c1_15, %c1_16, %c0_17] : memref<18x18x32xf32, #tpu.memory_space<vmem>>, vector<16x16x32xf32>
    %20 = vector.shape_cast %19 : vector<16x16x32xf32> to vector<256x32xf32>
    %21 = arith.truncf %20 : vector<256x32xf32> to vector<256x32xbf16>
    %c0_18 = arith.constant 0 : index
    %c128 = arith.constant 128 : index
    %22 = vector.load %arg11[%c0_18, %c128] : memref<256x288xbf16, #tpu.memory_space<vmem>>, vector<256x32xbf16>
    tpu.vector_store %arg11[%c0_18, %c128], %21 {strides = array<i32>} : memref<256x288xbf16, #tpu.memory_space<vmem>>, vector<256x32xbf16>,
    %c1_19 = arith.constant 1 : index
    %c2_20 = arith.constant 2 : index
    %c0_21 = arith.constant 0 : index
    %23 = vector.load %arg9[%c1_19, %c2_20, %c0_21] : memref<18x18x32xf32, #tpu.memory_space<vmem>>, vector<16x16x32xf32>
    %24 = vector.shape_cast %23 : vector<16x16x32xf32> to vector<256x32xf32>
    %25 = arith.truncf %24 : vector<256x32xf32> to vector<256x32xbf16>
    %c0_22 = arith.constant 0 : index
    %c160 = arith.constant 160 : index
    %26 = vector.load %arg11[%c0_22, %c160] : memref<256x288xbf16, #tpu.memory_space<vmem>>, vector<256x32xbf16>
    tpu.vector_store %arg11[%c0_22, %c160], %25 {strides = array<i32>} : memref<256x288xbf16, #tpu.memory_space<vmem>>, vector<256x32xbf16>,
    %c2_23 = arith.constant 2 : index
    %c0_24 = arith.constant 0 : index
    %c0_25 = arith.constant 0 : index
    %27 = vector.load %arg9[%c2_23, %c0_24, %c0_25] : memref<18x18x32xf32, #tpu.memory_space<vmem>>, vector<16x16x32xf32>
    %28 = vector.shape_cast %27 : vector<16x16x32xf32> to vector<256x32xf32>
    %29 = arith.truncf %28 : vector<256x32xf32> to vector<256x32xbf16>
    %c0_26 = arith.constant 0 : index
    %c192 = arith.constant 192 : index
    %30 = vector.load %arg11[%c0_26, %c192] : memref<256x288xbf16, #tpu.memory_space<vmem>>, vector<256x32xbf16>
    tpu.vector_store %arg11[%c0_26, %c192], %29 {strides = array<i32>} : memref<256x288xbf16, #tpu.memory_space<vmem>>, vector<256x32xbf16>,
    %c2_27 = arith.constant 2 : index
    %c1_28 = arith.constant 1 : index
    %c0_29 = arith.constant 0 : index
    %31 = vector.load %arg9[%c2_27, %c1_28, %c0_29] : memref<18x18x32xf32, #tpu.memory_space<vmem>>, vector<16x16x32xf32>
    %32 = vector.shape_cast %31 : vector<16x16x32xf32> to vector<256x32xf32>
    %33 = arith.truncf %32 : vector<256x32xf32> to vector<256x32xbf16>
    %c0_30 = arith.constant 0 : index
    %c224 = arith.constant 224 : index
    %34 = vector.load %arg11[%c0_30, %c224] : memref<256x288xbf16, #tpu.memory_space<vmem>>, vector<256x32xbf16>
    tpu.vector_store %arg11[%c0_30, %c224], %33 {strides = array<i32>} : memref<256x288xbf16, #tpu.memory_space<vmem>>, vector<256x32xbf16>,
    %c2_31 = arith.constant 2 : index
    %c2_32 = arith.constant 2 : index
    %c0_33 = arith.constant 0 : index
    %35 = vector.load %arg9[%c2_31, %c2_32, %c0_33] : memref<18x18x32xf32, #tpu.memory_space<vmem>>, vector<16x16x32xf32>
    %36 = vector.shape_cast %35 : vector<16x16x32xf32> to vector<256x32xf32>
    %37 = arith.truncf %36 : vector<256x32xf32> to vector<256x32xbf16>
    %c0_34 = arith.constant 0 : index
    %c256 = arith.constant 256 : index
    %38 = vector.load %arg11[%c0_34, %c256] : memref<256x288xbf16, #tpu.memory_space<vmem>>, vector<256x32xbf16>
    tpu.vector_store %arg11[%c0_34, %c256], %37 {strides = array<i32>} : memref<256x288xbf16, #tpu.memory_space<vmem>>, vector<256x32xbf16>,
    %c0_35 = arith.constant 0 : index
    %c0_36 = arith.constant 0 : index
    %c0_37 = arith.constant 0 : index
    %c0_38 = arith.constant 0 : index
    %39 = vector.load %arg2[%c0_35, %c0_36, %c0_37, %c0_38] : memref<1x1x256x36xbf16, #tpu.memory_space<vmem>>, vector<1x1x128x36xbf16>
    %40 = vector.shape_cast %39 : vector<1x1x128x36xbf16> to vector<128x36xbf16>
    %c0_39 = arith.constant 0 : index
    %c0_40 = arith.constant 0 : index
    %41 = vector.load %arg11[%c0_39, %c0_40] : memref<256x288xbf16, #tpu.memory_space<vmem>>, vector<128x288xbf16>
    %c0_41 = arith.constant 0 : index
    %c0_42 = arith.constant 0 : index
    %42 = vector.load %arg3[%c0_41, %c0_42] : memref<36x128xbf16, #tpu.memory_space<vmem>>, vector<36x128xbf16>
    %cst = arith.constant dense<0.000000e+00> : vector<128x128xf32>
    %43 = tpu.matmul %40, %42, %cst {dimension_numbers = #tpu.dot_dimension_numbers<[1], [0], [0], [1], [0, 0, 1, 1], [], []>} : vector<128x36xbf16>, vector<36x128xbf16>, vector<128x128xf32> -> vector<128x128xf32>
    %c0_43 = arith.constant 0 : index
    %c0_44 = arith.constant 0 : index
    %44 = vector.load %arg4[%c0_43, %c0_44] : memref<288x128xbf16, #tpu.memory_space<vmem>>, vector<288x128xbf16>
    %cst_45 = arith.constant dense<0.000000e+00> : vector<128x128xf32>
    %45 = tpu.matmul %41, %44, %cst_45 {dimension_numbers = #tpu.dot_dimension_numbers<[1], [0], [0], [1], [0, 0, 1, 1], [], []>} : vector<128x288xbf16>, vector<288x128xbf16>, vector<128x128xf32> -> vector<128x128xf32>
    %46 = arith.addf %43, %45 : vector<128x128xf32>
    %c0_46 = arith.constant 0 : index
    %c0_47 = arith.constant 0 : index
    %47 = vector.load %arg5[%c0_46, %c0_47] : memref<1x128xf32, #tpu.memory_space<vmem>>, vector<1x128xf32>
    %48 = vector.broadcast %47 : vector<1x128xf32> to vector<128x128xf32>
    %49 = arith.addf %46, %48 : vector<128x128xf32>
    %50 = vector.extract_strided_slice %49 {offsets = [0, 0], sizes = [128, 32], strides = [1, 1]} : vector<128x128xf32> to vector<128x32xf32>
    %51 = arith.negf %50 : vector<128x32xf32>
    %52 = math.exp %51 : vector<128x32xf32>
    %cst_48 = arith.constant 1.000000e+00 : f32
    %53 = vector.broadcast %cst_48 : f32 to vector<128x32xf32>
    %54 = arith.addf %53, %52 : vector<128x32xf32>
    %55 = arith.divf %53, %54 : vector<128x32xf32>
    %56 = vector.extract_strided_slice %49 {offsets = [0, 32], sizes = [128, 32], strides = [1, 1]} : vector<128x128xf32> to vector<128x32xf32>
    %57 = arith.negf %56 : vector<128x32xf32>
    %58 = math.exp %57 : vector<128x32xf32>
    %cst_49 = arith.constant 1.000000e+00 : f32
    %59 = vector.broadcast %cst_49 : f32 to vector<128x32xf32>
    %60 = arith.addf %59, %58 : vector<128x32xf32>
    %61 = arith.divf %59, %60 : vector<128x32xf32>
    %62 = vector.extract_strided_slice %49 {offsets = [0, 64], sizes = [128, 32], strides = [1, 1]} : vector<128x128xf32> to vector<128x32xf32>
    %63 = math.tanh %62 : vector<128x32xf32>
    %64 = vector.extract_strided_slice %49 {offsets = [0, 96], sizes = [128, 32], strides = [1, 1]} : vector<128x128xf32> to vector<128x32xf32>
    %65 = arith.negf %64 : vector<128x32xf32>
    %66 = math.exp %65 : vector<128x32xf32>
    %cst_50 = arith.constant 1.000000e+00 : f32
    %67 = vector.broadcast %cst_50 : f32 to vector<128x32xf32>
    %68 = arith.addf %67, %66 : vector<128x32xf32>
    %69 = arith.divf %67, %68 : vector<128x32xf32>
    %c0_51 = arith.constant 0 : index
    %c0_52 = arith.constant 0 : index
    %70 = vector.load %arg10[%c0_51, %c0_52] : memref<256x32xf32, #tpu.memory_space<vmem>>, vector<128x32xf32>
    %71 = arith.mulf %61, %70 : vector<128x32xf32>
    %72 = arith.mulf %55, %63 : vector<128x32xf32>
    %73 = arith.addf %71, %72 : vector<128x32xf32>
    %74 = math.tanh %73 : vector<128x32xf32>
    %75 = arith.mulf %69, %74 : vector<128x32xf32>
    %c0_53 = arith.constant 0 : index
    %c0_54 = arith.constant 0 : index
    %76 = vector.load %arg10[%c0_53, %c0_54] : memref<256x32xf32, #tpu.memory_space<vmem>>, vector<128x32xf32>
    tpu.vector_store %arg10[%c0_53, %c0_54], %73 {strides = array<i32>} : memref<256x32xf32, #tpu.memory_space<vmem>>, vector<128x32xf32>,
    %77 = vector.shape_cast %75 : vector<128x32xf32> to vector<8x16x32xf32>
    %c1_55 = arith.constant 1 : index
    %c1_56 = arith.constant 1 : index
    %c0_57 = arith.constant 0 : index
    %78 = vector.load %arg9[%c1_55, %c1_56, %c0_57] : memref<18x18x32xf32, #tpu.memory_space<vmem>>, vector<8x16x32xf32>
    tpu.vector_store %arg9[%c1_55, %c1_56, %c0_57], %77 {strides = array<i32>} : memref<18x18x32xf32, #tpu.memory_space<vmem>>, vector<8x16x32xf32>,
    %c7_i32 = arith.constant 7 : i32
    %79 = arith.cmpi eq, %arg1, %c7_i32 : i32
    %80 = arith.extui %79 : i1 to i32
    %c0_i32_58 = arith.constant 0 : i32
    %81 = arith.cmpi ne, %80, %c0_i32_58 : i32
    scf.if %81 {
      %c0_84 = arith.constant 0 : index
      %c0_85 = arith.constant 0 : index
      %125 = vector.load %arg6[%c0_84, %c0_85] : memref<1x32xf32, #tpu.memory_space<vmem>>, vector<1x32xf32>
      %126 = vector.broadcast %125 : vector<1x32xf32> to vector<128x32xf32>
      %127 = arith.mulf %75, %126 : vector<128x32xf32>
      %cst_86 = arith.constant dense<0.000000e+00> : vector<128xf32>
      %128 = vector.multi_reduction <add>, %127, %cst_86 [1] : vector<128x32xf32> to vector<128xf32>
      %129 = vector.shape_cast %128 : vector<128xf32> to vector<128x1xf32>
      %c0_87 = arith.constant 0 : index
      %c0_88 = arith.constant 0 : index
      %130 = vector.load %arg7[%c0_87, %c0_88] : memref<1x1xf32, #tpu.memory_space<vmem>>, vector<1x1xf32>
      %131 = vector.broadcast %130 : vector<1x1xf32> to vector<128x1xf32>
      %132 = arith.addf %129, %131 : vector<128x1xf32>
      %133 = vector.shape_cast %132 : vector<128x1xf32> to vector<8x16x1xf32>
      %c0_89 = arith.constant 0 : index
      %c0_90 = arith.constant 0 : index
      %c0_91 = arith.constant 0 : index
      %c0_92 = arith.constant 0 : index
      %134 = vector.load %arg8[%c0_89, %c0_90, %c0_91, %c0_92] : memref<1x16x16x1xf32, #tpu.memory_space<vmem>>, vector<1x8x16x1xf32>
      %135 = vector.shape_cast %134 : vector<1x8x16x1xf32> to vector<8x16x1xf32>
      %136 = vector.shape_cast %133 : vector<8x16x1xf32> to vector<1x8x16x1xf32>
      tpu.vector_store %arg8[%c0_89, %c0_90, %c0_91, %c0_92], %136 {strides = array<i32>} : memref<1x16x16x1xf32, #tpu.memory_space<vmem>>, vector<1x8x16x1xf32>,
    } else {
    }
    %c0_59 = arith.constant 0 : index
    %c0_60 = arith.constant 0 : index
    %c128_61 = arith.constant 128 : index
    %c0_62 = arith.constant 0 : index
    %82 = vector.load %arg2[%c0_59, %c0_60, %c128_61, %c0_62] : memref<1x1x256x36xbf16, #tpu.memory_space<vmem>>, vector<1x1x128x36xbf16>
    %83 = vector.shape_cast %82 : vector<1x1x128x36xbf16> to vector<128x36xbf16>
    %c128_63 = arith.constant 128 : index
    %c0_64 = arith.constant 0 : index
    %84 = vector.load %arg11[%c128_63, %c0_64] : memref<256x288xbf16, #tpu.memory_space<vmem>>, vector<128x288xbf16>
    %c0_65 = arith.constant 0 : index
    %c0_66 = arith.constant 0 : index
    %85 = vector.load %arg3[%c0_65, %c0_66] : memref<36x128xbf16, #tpu.memory_space<vmem>>, vector<36x128xbf16>
    %cst_67 = arith.constant dense<0.000000e+00> : vector<128x128xf32>
    %86 = tpu.matmul %83, %85, %cst_67 {dimension_numbers = #tpu.dot_dimension_numbers<[1], [0], [0], [1], [0, 0, 1, 1], [], []>} : vector<128x36xbf16>, vector<36x128xbf16>, vector<128x128xf32> -> vector<128x128xf32>
    %c0_68 = arith.constant 0 : index
    %c0_69 = arith.constant 0 : index
    %87 = vector.load %arg4[%c0_68, %c0_69] : memref<288x128xbf16, #tpu.memory_space<vmem>>, vector<288x128xbf16>
    %cst_70 = arith.constant dense<0.000000e+00> : vector<128x128xf32>
    %88 = tpu.matmul %84, %87, %cst_70 {dimension_numbers = #tpu.dot_dimension_numbers<[1], [0], [0], [1], [0, 0, 1, 1], [], []>} : vector<128x288xbf16>, vector<288x128xbf16>, vector<128x128xf32> -> vector<128x128xf32>
    %89 = arith.addf %86, %88 : vector<128x128xf32>
    %c0_71 = arith.constant 0 : index
    %c0_72 = arith.constant 0 : index
    %90 = vector.load %arg5[%c0_71, %c0_72] : memref<1x128xf32, #tpu.memory_space<vmem>>, vector<1x128xf32>
    %91 = vector.broadcast %90 : vector<1x128xf32> to vector<128x128xf32>
    %92 = arith.addf %89, %91 : vector<128x128xf32>
    %93 = vector.extract_strided_slice %92 {offsets = [0, 0], sizes = [128, 32], strides = [1, 1]} : vector<128x128xf32> to vector<128x32xf32>
    %94 = arith.negf %93 : vector<128x32xf32>
    %95 = math.exp %94 : vector<128x32xf32>
    %cst_73 = arith.constant 1.000000e+00 : f32
    %96 = vector.broadcast %cst_73 : f32 to vector<128x32xf32>
    %97 = arith.addf %96, %95 : vector<128x32xf32>
    %98 = arith.divf %96, %97 : vector<128x32xf32>
    %99 = vector.extract_strided_slice %92 {offsets = [0, 32], sizes = [128, 32], strides = [1, 1]} : vector<128x128xf32> to vector<128x32xf32>
    %100 = arith.negf %99 : vector<128x32xf32>
    %101 = math.exp %100 : vector<128x32xf32>
    %cst_74 = arith.constant 1.000000e+00 : f32
    %102 = vector.broadcast %cst_74 : f32 to vector<128x32xf32>
    %103 = arith.addf %102, %101 : vector<128x32xf32>
    %104 = arith.divf %102, %103 : vector<128x32xf32>
    %105 = vector.extract_strided_slice %92 {offsets = [0, 64], sizes = [128, 32], strides = [1, 1]} : vector<128x128xf32> to vector<128x32xf32>
    %106 = math.tanh %105 : vector<128x32xf32>
    %107 = vector.extract_strided_slice %92 {offsets = [0, 96], sizes = [128, 32], strides = [1, 1]} : vector<128x128xf32> to vector<128x32xf32>
    %108 = arith.negf %107 : vector<128x32xf32>
    %109 = math.exp %108 : vector<128x32xf32>
    %cst_75 = arith.constant 1.000000e+00 : f32
    %110 = vector.broadcast %cst_75 : f32 to vector<128x32xf32>
    %111 = arith.addf %110, %109 : vector<128x32xf32>
    %112 = arith.divf %110, %111 : vector<128x32xf32>
    %c128_76 = arith.constant 128 : index
    %c0_77 = arith.constant 0 : index
    %113 = vector.load %arg10[%c128_76, %c0_77] : memref<256x32xf32, #tpu.memory_space<vmem>>, vector<128x32xf32>
    %114 = arith.mulf %104, %113 : vector<128x32xf32>
    %115 = arith.mulf %98, %106 : vector<128x32xf32>
    %116 = arith.addf %114, %115 : vector<128x32xf32>
    %117 = math.tanh %116 : vector<128x32xf32>
    %118 = arith.mulf %112, %117 : vector<128x32xf32>
    %c128_78 = arith.constant 128 : index
    %c0_79 = arith.constant 0 : index
    %119 = vector.load %arg10[%c128_78, %c0_79] : memref<256x32xf32, #tpu.memory_space<vmem>>, vector<128x32xf32>
    tpu.vector_store %arg10[%c128_78, %c0_79], %116 {strides = array<i32>} : memref<256x32xf32, #tpu.memory_space<vmem>>, vector<128x32xf32>,
    %120 = vector.shape_cast %118 : vector<128x32xf32> to vector<8x16x32xf32>
    %c9 = arith.constant 9 : index
    %c1_80 = arith.constant 1 : index
    %c0_81 = arith.constant 0 : index
    %121 = vector.load %arg9[%c9, %c1_80, %c0_81] : memref<18x18x32xf32, #tpu.memory_space<vmem>>, vector<8x16x32xf32>
    tpu.vector_store %arg9[%c9, %c1_80, %c0_81], %120 {strides = array<i32>} : memref<18x18x32xf32, #tpu.memory_space<vmem>>, vector<8x16x32xf32>,
    %c7_i32_82 = arith.constant 7 : i32
    %122 = arith.cmpi eq, %arg1, %c7_i32_82 : i32
    %123 = arith.extui %122 : i1 to i32
    %c0_i32_83 = arith.constant 0 : i32
    %124 = arith.cmpi ne, %123, %c0_i32_83 : i32
    scf.if %124 {
      %c0_84 = arith.constant 0 : index
      %c0_85 = arith.constant 0 : index
      %125 = vector.load %arg6[%c0_84, %c0_85] : memref<1x32xf32, #tpu.memory_space<vmem>>, vector<1x32xf32>
      %126 = vector.broadcast %125 : vector<1x32xf32> to vector<128x32xf32>
      %127 = arith.mulf %118, %126 : vector<128x32xf32>
      %cst_86 = arith.constant dense<0.000000e+00> : vector<128xf32>
      %128 = vector.multi_reduction <add>, %127, %cst_86 [1] : vector<128x32xf32> to vector<128xf32>
      %129 = vector.shape_cast %128 : vector<128xf32> to vector<128x1xf32>
      %c0_87 = arith.constant 0 : index
      %c0_88 = arith.constant 0 : index
      %130 = vector.load %arg7[%c0_87, %c0_88] : memref<1x1xf32, #tpu.memory_space<vmem>>, vector<1x1xf32>
      %131 = vector.broadcast %130 : vector<1x1xf32> to vector<128x1xf32>
      %132 = arith.addf %129, %131 : vector<128x1xf32>
      %133 = vector.shape_cast %132 : vector<128x1xf32> to vector<8x16x1xf32>
      %c0_89 = arith.constant 0 : index
      %c8 = arith.constant 8 : index
      %c0_90 = arith.constant 0 : index
      %c0_91 = arith.constant 0 : index
      %134 = vector.load %arg8[%c0_89, %c8, %c0_90, %c0_91] : memref<1x16x16x1xf32, #tpu.memory_space<vmem>>, vector<1x8x16x1xf32>
      %135 = vector.shape_cast %134 : vector<1x8x16x1xf32> to vector<8x16x1xf32>
      %136 = vector.shape_cast %133 : vector<8x16x1xf32> to vector<1x8x16x1xf32>
      tpu.vector_store %arg8[%c0_89, %c8, %c0_90, %c0_91], %136 {strides = array<i32>} : memref<1x16x16x1xf32, #tpu.memory_space<vmem>>, vector<1x8x16x1xf32>,
    } else {
    }
    return
  }
  func.func @transform_0(%arg0: i32, %arg1: i32) -> (i32, i32, i32, i32) {
    %c0_i32 = arith.constant 0 : i32
    %c0_i32_0 = arith.constant 0 : i32
    %c0_i32_1 = arith.constant 0 : i32
    return %arg0, %arg1, %c0_i32, %c0_i32_0 : i32, i32, i32, i32
  }
  func.func @transform_1(%arg0: i32, %arg1: i32) -> (i32, i32) {
    %c0_i32 = arith.constant 0 : i32
    %c0_i32_0 = arith.constant 0 : i32
    %c0_i32_1 = arith.constant 0 : i32
    return %c0_i32, %c0_i32_0 : i32, i32
  }
  func.func @transform_2(%arg0: i32, %arg1: i32) -> (i32, i32) {
    %c0_i32 = arith.constant 0 : i32
    %c0_i32_0 = arith.constant 0 : i32
    %c0_i32_1 = arith.constant 0 : i32
    return %c0_i32, %c0_i32_0 : i32, i32
  }
  func.func @transform_3(%arg0: i32, %arg1: i32) -> (i32, i32) {
    %c0_i32 = arith.constant 0 : i32
    %c0_i32_0 = arith.constant 0 : i32
    %c0_i32_1 = arith.constant 0 : i32
    return %c0_i32, %c0_i32_0 : i32, i32
  }
  func.func @transform_4(%arg0: i32, %arg1: i32) -> (i32, i32) {
    %c0_i32 = arith.constant 0 : i32
    %c0_i32_0 = arith.constant 0 : i32
    %c0_i32_1 = arith.constant 0 : i32
    return %c0_i32, %c0_i32_0 : i32, i32
  }
  func.func @transform_5(%arg0: i32, %arg1: i32) -> (i32, i32) {
    %c0_i32 = arith.constant 0 : i32
    %c0_i32_0 = arith.constant 0 : i32
    %c0_i32_1 = arith.constant 0 : i32
    return %c0_i32, %c0_i32_0 : i32, i32
  }
  func.func @transform_6(%arg0: i32, %arg1: i32) -> (i32, i32, i32, i32) {
    %c0_i32 = arith.constant 0 : i32
    %c0_i32_0 = arith.constant 0 : i32
    %c0_i32_1 = arith.constant 0 : i32
    %c0_i32_2 = arith.constant 0 : i32
    return %arg0, %c0_i32, %c0_i32_0, %c0_i32_1 : i32, i32, i32, i32
  }
}

</mosaic_0001>

<llo_original>
// kernel: tpu_custom_call.1
$region0: #{tpu_custom_call.1}
  #allocation0 [shape = 'u32[]', space=smem, size = 0x4, offset = 0x4, fixed_abs, tag = 'smem constant byte address 0x4 - core index']
  #allocation1 [shape = 'u32[72,128]{1,0:T(1,128)}', space=vmem, size = 0x9000, scoped, tag = 'internal scratch']
  #allocation2 [shape = 'f32[18,18,32]{2,1,0:T(8,128)}', space=vmem, size = 0x36000, scoped, tag = 'scratch operand']
  #allocation3 [shape = 'f32[256,32]{1,0:T(8,128)}', space=vmem, size = 0x20000, scoped, tag = 'scratch operand']
  #allocation4 [shape = 'bf16[256,288]{1,0:T(8,128)(2,1)}', space=vmem, size = 0x30000, scoped, tag = 'scratch operand']
  #allocation5 [shape = 'f32[1,1]{1,0:T(1,128)S(1)}', space=vmem, size = 0x200, scoped, tag = 'scoped memory for tpu_custom_call.1']
  %s0 = inlined_call_operand.vmem [shape: bf16[2,8,256,36], index: 0, kind: input, shape index: {}]
  %s1 = inlined_call_operand.vmem [shape: bf16[36,128], index: 1, kind: input, shape index: {}]
  %s2 = inlined_call_operand.vmem [shape: bf16[288,128], index: 2, kind: input, shape index: {}]
  %s3 = inlined_call_operand.vmem [shape: f32[1,128], index: 3, kind: input, shape index: {}]
  %s4 = inlined_call_operand.vmem [shape: f32[1,32], index: 4, kind: input, shape index: {}]
  %s5 = inlined_call_operand.<no memory space> [shape: f32[1,1], index: 5, kind: input, shape index: {}]
  %s6 = inlined_call_operand.vmem [shape: f32[2,16,16,1], index: 6, kind: output, shape index: {}]
  %s7 = sld [smem:[#allocation0]]
  $region69: #{tpu_custom_call.1} parent=0
    _
  %s9 = ssub.s32 1, %s7
  %s10 = scalar_select 0, %s9, %s7
  %v11 = vstv %s5
  %12 = vst [vmem:[#allocation5] sm:$0x1] %v11
  loop: start=0, step=1, limit=18
  $region2: #{tpu_custom_call.1} parent=0 // loop_pre_header
    _
  $region3: #{tpu_custom_call.1} parent=0 // loop_header
    %s14 = sphi 0, %s18
    %p15 = scmp.ge.s32.totalorder %s14, 18
    %s21 = sphi 0, %s33
    %s22 = sphi 0, %s29
    %s23 = sphi 0, %s21
    %s24 = sphi 0, %s22
    %s25 = sphi 0, %s23
    %s26 = sphi 0, %s24
    %s38 = sphi 0, %s40
    %s41 = sphi 0, %s38
    %s42 = sphi 0, %s41
    %s58 = sphi 0, %s42
    %s62 = sphi 0, %s62
    %s64 = sphi 0, %s62
    %s65 = sphi 0, %s64
    %s79 = sphi 0, %s65
    %s83 = sphi 0, %s83
    %s85 = sphi 0, %s83
    %s86 = sphi 0, %s85
    %s100 = sphi 0, %s86
    %s104 = sphi 0, %s104
    %s106 = sphi 0, %s104
    %s107 = sphi 0, %s106
    %s121 = sphi 0, %s107
    %s125 = sphi 0, %s125
    %s127 = sphi 0, %s125
    %s128 = sphi 0, %s127
    %s142 = sphi 0, %s128
    %s146 = sphi 0, %s146
    %s148 = sphi 0, %s146
    %s149 = sphi 0, %s148
    %s163 = sphi 0, %s149
    %s169 = sphi 0, %s171
    %s172 = sphi 0, %s169
    %s173 = sphi 0, %s172
    %s189 = sphi 0, %s173
  $region4: #{tpu_custom_call.1} parent=0 // loop_header_branch
    %17 = sbr.rel (%p15) target = $region8
  $region5: #{tpu_custom_call.1} parent=0 // loop_body
    %s19 = ssub.s32 %s14, 1
    %s20 = ssub.s32 %s14, 2
    %s27 = sadd.s32 1, %s22
    %p28 = scmp.ge.s32.totalorder %s27, 8
    %s29 = scalar_select %p28, 0, %s27
    %s30 = sadd.s32 1, %s21
    %s31 = scalar_select %p28, %s30, %s21
    %p32 = scmp.ge.s32.totalorder %s31, 2
    %s33 = scalar_select %p32, 0, %s31
    %s34 = ssub.s32 %s21, %s33
    %s35 = ssub.s32 %s22, %s29
    %s36 = sor.u32 %s34, %s35
    %p37 = scmp.eq.s32.totalorder %s36, 0
    %s39 = sadd.s32 %s38, 1
    %s40 = scalar_select %p37, %s38, %s39
    %p43 = pneg %p37
    %p44 = scmp.eq.s32.totalorder %s14, 15
    %p45 = por %p43, %p44
    %p46 = scmp.ne.s32.totalorder %s38, %s41
    %p47 = scmp.eq.s32.totalorder %s14, 0
    %p48 = por %p46, %p47
    %p49 = scmp.ne.s32.totalorder %s38, %s41
    %p50 = scmp.eq.s32.totalorder %s19, 15
    %p51 = por %p49, %p50
    %p52 = scmp.ne.s32.totalorder %s41, %s42
    %p53 = scmp.eq.s32.totalorder %s19, 0
    %p54 = por %p52, %p53
    %p55 = scmp.ne.s32.totalorder %s41, %s42
    %p56 = scmp.eq.s32.totalorder %s20, 15
    %p57 = por %p55, %p56
    %p59 = scmp.ne.s32.totalorder %s42, %s58
    %p60 = scmp.eq.s32.totalorder %s20, 0
    %p61 = por %p59, %p60
    %s63 = sadd.s32 %s62, 1
    %p66 = scmp.eq.s32.totalorder %s14, 15
    %p67 = scmp.ne.s32.totalorder %s62, %s64
    %p68 = scmp.eq.s32.totalorder %s14, 0
    %p69 = por %p67, %p68
    %p70 = scmp.ne.s32.totalorder %s62, %s64
    %p71 = scmp.eq.s32.totalorder %s19, 15
    %p72 = por %p70, %p71
    %p73 = scmp.ne.s32.totalorder %s64, %s65
    %p74 = scmp.eq.s32.totalorder %s19, 0
    %p75 = por %p73, %p74
    %p76 = scmp.ne.s32.totalorder %s64, %s65
    %p77 = scmp.eq.s32.totalorder %s20, 15
    %p78 = por %p76, %p77
    %p80 = scmp.ne.s32.totalorder %s65, %s79
    %p81 = scmp.eq.s32.totalorder %s20, 0
    %p82 = por %p80, %p81
    %s84 = sadd.s32 %s83, 1
    %p87 = scmp.eq.s32.totalorder %s14, 15
    %p88 = scmp.ne.s32.totalorder %s83, %s85
    %p89 = scmp.eq.s32.totalorder %s14, 0
    %p90 = por %p88, %p89
    %p91 = scmp.ne.s32.totalorder %s83, %s85
    %p92 = scmp.eq.s32.totalorder %s19, 15
    %p93 = por %p91, %p92
    %p94 = scmp.ne.s32.totalorder %s85, %s86
    %p95 = scmp.eq.s32.totalorder %s19, 0
    %p96 = por %p94, %p95
    %p97 = scmp.ne.s32.totalorder %s85, %s86
    %p98 = scmp.eq.s32.totalorder %s20, 15
    %p99 = por %p97, %p98
    %p101 = scmp.ne.s32.totalorder %s86, %s100
    %p102 = scmp.eq.s32.totalorder %s20, 0
    %p103 = por %p101, %p102
    %s105 = sadd.s32 %s104, 1
    %p108 = scmp.eq.s32.totalorder %s14, 15
    %p109 = scmp.ne.s32.totalorder %s104, %s106
    %p110 = scmp.eq.s32.totalorder %s14, 0
    %p111 = por %p109, %p110
    %p112 = scmp.ne.s32.totalorder %s104, %s106
    %p113 = scmp.eq.s32.totalorder %s19, 15
    %p114 = por %p112, %p113
    %p115 = scmp.ne.s32.totalorder %s106, %s107
    %p116 = scmp.eq.s32.totalorder %s19, 0
    %p117 = por %p115, %p116
    %p118 = scmp.ne.s32.totalorder %s106, %s107
    %p119 = scmp.eq.s32.totalorder %s20, 15
    %p120 = por %p118, %p119
    %p122 = scmp.ne.s32.totalorder %s107, %s121
    %p123 = scmp.eq.s32.totalorder %s20, 0
    %p124 = por %p122, %p123
    %s126 = sadd.s32 %s125, 1
    %p129 = scmp.eq.s32.totalorder %s14, 15
    %p130 = scmp.ne.s32.totalorder %s125, %s127
    %p131 = scmp.eq.s32.totalorder %s14, 0
    %p132 = por %p130, %p131
    %p133 = scmp.ne.s32.totalorder %s125, %s127
    %p134 = scmp.eq.s32.totalorder %s19, 15
    %p135 = por %p133, %p134
    %p136 = scmp.ne.s32.totalorder %s127, %s128
    %p137 = scmp.eq.s32.totalorder %s19, 0
    %p138 = por %p136, %p137
    %p139 = scmp.ne.s32.totalorder %s127, %s128
    %p140 = scmp.eq.s32.totalorder %s20, 15
    %p141 = por %p139, %p140
    %p143 = scmp.ne.s32.totalorder %s128, %s142
    %p144 = scmp.eq.s32.totalorder %s20, 0
    %p145 = por %p143, %p144
    %s147 = sadd.s32 %s146, 1
    %p150 = scmp.eq.s32.totalorder %s14, 15
    %p151 = scmp.ne.s32.totalorder %s146, %s148
    %p152 = scmp.eq.s32.totalorder %s14, 0
    %p153 = por %p151, %p152
    %p154 = scmp.ne.s32.totalorder %s146, %s148
    %p155 = scmp.eq.s32.totalorder %s19, 15
    %p156 = por %p154, %p155
    %p157 = scmp.ne.s32.totalorder %s148, %s149
    %p158 = scmp.eq.s32.totalorder %s19, 0
    %p159 = por %p157, %p158
    %p160 = scmp.ne.s32.totalorder %s148, %s149
    %p161 = scmp.eq.s32.totalorder %s20, 15
    %p162 = por %p160, %p161
    %p164 = scmp.ne.s32.totalorder %s149, %s163
    %p165 = scmp.eq.s32.totalorder %s20, 0
    %p166 = por %p164, %p165
    %s167 = ssub.s32 %s21, %s33
    %p168 = scmp.eq.s32.totalorder %s167, 0
    %s170 = sadd.s32 %s169, 1
    %s171 = scalar_select %p168, %s169, %s170
    %p174 = pneg %p168
    %p175 = scmp.eq.s32.totalorder %s14, 15
    %p176 = por %p174, %p175
    %p177 = scmp.ne.s32.totalorder %s169, %s172
    %p178 = scmp.eq.s32.totalorder %s14, 0
    %p179 = por %p177, %p178
    %p180 = scmp.ne.s32.totalorder %s169, %s172
    %p181 = scmp.eq.s32.totalorder %s19, 15
    %p182 = por %p180, %p181
    %p183 = scmp.ne.s32.totalorder %s172, %s173
    %p184 = scmp.eq.s32.totalorder %s19, 0
    %p185 = por %p183, %p184
    %p186 = scmp.ne.s32.totalorder %s172, %s173
    %p187 = scmp.eq.s32.totalorder %s20, 15
    %p188 = por %p186, %p187
    %p190 = scmp.ne.s32.totalorder %s173, %s189
    %p191 = scmp.eq.s32.totalorder %s20, 0
    %p192 = por %p190, %p191
    %p193 = scmp.le.s32.totalorder 1, %s14
    %p194 = scmp.lt.s32.totalorder %s14, 17
    %p195 = pnand %p193, %p194
    %p196 = pneg %p195
    // Predicated region
    $region9: #{tpu_custom_call.1} parent=5 // pred_check
      _
    $region10: #{tpu_custom_call.1} parent=5 // pred_check_branch
      %198 = sbr.rel (%p195) target = $region12
    $region11: #{tpu_custom_call.1} parent=5 // pred_region
      %s199 = ssub.s32 %s14, 1
      // Predicated region
      $region13: #{tpu_custom_call.1} parent=11 // pred_check
        %p200 = pneg %p75
      $region14: #{tpu_custom_call.1} parent=11 // pred_check_branch
        %202 = sbr.rel (%p200) target = $region16
      $region15: #{tpu_custom_call.1} parent=11 // pred_region
        _
      $region16: #{tpu_custom_call.1} parent=11 // pred_fallthru
        _
      // Predicated region
      $region17: #{tpu_custom_call.1} parent=11 // pred_check
        %p203 = pneg %p96
      $region18: #{tpu_custom_call.1} parent=11 // pred_check_branch
        %205 = sbr.rel (%p203) target = $region20
      $region19: #{tpu_custom_call.1} parent=11 // pred_region
        _
      $region20: #{tpu_custom_call.1} parent=11 // pred_fallthru
        _
      // Predicated region
      $region21: #{tpu_custom_call.1} parent=11 // pred_check
        %p206 = pneg %p117
      $region22: #{tpu_custom_call.1} parent=11 // pred_check_branch
        %208 = sbr.rel (%p206) target = $region24
      $region23: #{tpu_custom_call.1} parent=11 // pred_region
        _
      $region24: #{tpu_custom_call.1} parent=11 // pred_fallthru
        _
      // Predicated region
      $region25: #{tpu_custom_call.1} parent=11 // pred_check
        %p209 = pneg %p138
      $region26: #{tpu_custom_call.1} parent=11 // pred_check_branch
        %211 = sbr.rel (%p209) target = $region28
      $region27: #{tpu_custom_call.1} parent=11 // pred_region
        _
      $region28: #{tpu_custom_call.1} parent=11 // pred_fallthru
        _
      // Predicated region
      $region29: #{tpu_custom_call.1} parent=11 // pred_check
        %p212 = pneg %p159
      $region30: #{tpu_custom_call.1} parent=11 // pred_check_branch
        %214 = sbr.rel (%p212) target = $region32
      $region31: #{tpu_custom_call.1} parent=11 // pred_region
        _
      $region32: #{tpu_custom_call.1} parent=11 // pred_fallthru
        _
    $region12: #{tpu_custom_call.1} parent=5 // pred_fallthru
      _
    %p215 = scmp.lt.s32.totalorder %s14, 16
    // Predicated region
    $region33: #{tpu_custom_call.1} parent=5 // pred_check
      %p216 = pneg %p215
    $region34: #{tpu_custom_call.1} parent=5 // pred_check_branch
      %218 = sbr.rel (%p216) target = $region36
    $region35: #{tpu_custom_call.1} parent=5 // pred_region
      // Predicated region
      $region37: #{tpu_custom_call.1} parent=35 // pred_check
        %p219 = pneg %p48
      $region38: #{tpu_custom_call.1} parent=35 // pred_check_branch
        %221 = sbr.rel (%p219) target = $region40
      $region39: #{tpu_custom_call.1} parent=35 // pred_region
        %p222 = scmp.lt.s32.totalorder %s21, 1
        %s223 = scalar_select %p222, %s21, 1
        %p224 = scmp.lt.s32.totalorder %s22, 7
        %s225 = scalar_select %p224, %s22, 7
        %s226 = smul.addr %s225, 32
        %s227 = smul.addr %s223, 256
        %s228 = sadd.s32 %s226, %s227
        %s229 = smul.addr %s228, 4
        %s230 = scalar_lea.vmem %s0, %s229
      $region40: #{tpu_custom_call.1} parent=35 // pred_fallthru
        _
    $region36: #{tpu_custom_call.1} parent=5 // pred_fallthru
      _
    %p231 = scmp.le.s32.totalorder 1, %s14
    %p232 = scmp.lt.s32.totalorder %s14, 17
    %p233 = pnand %p231, %p232
    %p234 = pneg %p233
    // Predicated region
    $region41: #{tpu_custom_call.1} parent=5 // pred_check
      _
    $region42: #{tpu_custom_call.1} parent=5 // pred_check_branch
      %236 = sbr.rel (%p233) target = $region44
    $region43: #{tpu_custom_call.1} parent=5 // pred_region
      %s237 = ssub.s32 %s14, 1
      %p238 = scmp.lt.s32.totalorder %s23, 1
      %s239 = scalar_select %p238, %s23, 1
      %p240 = scmp.lt.s32.totalorder %s24, 7
      %s241 = scalar_select %p240, %s24, 7
      %s242 = smul.addr %s241, 32
      %s243 = smul.addr %s239, 256
      %s244 = sadd.s32 %s242, %s243
      %s245 = smul.addr %s244, 4
      %s246 = scalar_lea.vmem %s0, %s245
      %p247 = pneg %p54
      %p248 = pneg %p51
      %p249 = pneg %p75
      %p250 = pneg %p72
      %p251 = pneg %p96
      %p252 = pneg %p93
      %p253 = pneg %p117
      %p254 = pneg %p114
      %p255 = pneg %p138
      %p256 = pneg %p135
      %p257 = pneg %p159
      %p258 = pneg %p156
      %p259 = pneg %p185
      %p260 = pneg %p182
      %p261 = scmp.lt.s32.totalorder %s23, 1
      %s262 = scalar_select %p261, %s23, 1
      %s263 = smul.addr %s262, 32
      %s264 = smul.addr %s263, 8
      %s265 = scalar_lea.vmem %s6, %s264
      %p266 = scmp.lt.s32.totalorder %s23, 1
      %s267 = scalar_select %p266, %s23, 1
      %p268 = scmp.lt.s32.totalorder %s24, 7
      %s269 = scalar_select %p268, %s24, 7
      %s270 = smul.addr %s269, 32
      %s271 = smul.addr %s267, 256
      %s272 = sadd.s32 %s270, %s271
      %s273 = smul.addr %s272, 4
      %s274 = scalar_lea.vmem %s0, %s273
      %p275 = scmp.lt.s32.totalorder %s23, 1
      %s276 = scalar_select %p275, %s23, 1
      %s277 = smul.addr %s276, 32
      %s278 = smul.addr %s277, 8
      %s279 = scalar_lea.vmem %s6, %s278
      %p281 = scmp.eq.s32.totalorder %s24, 0
      // Predicated region
      $region45: #{tpu_custom_call.1} parent=43 // pred_check
        %p282 = pneg %p281
      $region46: #{tpu_custom_call.1} parent=43 // pred_check_branch
        %284 = sbr.rel (%p282) target = $region48
      $region47: #{tpu_custom_call.1} parent=43 // pred_region
        %vm285 = vcmask 261120
        %286 = vst.msk [vmem:[#allocation2] sm:$0xff] %vm285, 0.0
        %287 = vst.msk [vmem:[#allocation2 + $0x8] sm:$0xff] %vm285, 0.0
        %vm288 = vcmask 254976
        %289 = vst.msk [vmem:[#allocation2 + $0x10] sm:$0x3] %vm288, 0.0
        %290 = vst.msk [vmem:[#allocation2 + $0x18] sm:$0xff] %vm285, 0.0
        %291 = vst.msk [vmem:[#allocation2 + $0x20] sm:$0xff] %vm285, 0.0
        %292 = vst.msk [vmem:[#allocation2 + $0x28] sm:$0x3] %vm288, 0.0
        %293 = vst.msk [vmem:[#allocation2 + $0x30] sm:$0xff] %vm285, 0.0
        %294 = vst.msk [vmem:[#allocation2 + $0x38] sm:$0xff] %vm285, 0.0
        %295 = vst.msk [vmem:[#allocation2 + $0x40] sm:$0x3] %vm288, 0.0
        %296 = vst.msk [vmem:[#allocation2 + $0x48] sm:$0xff] %vm285, 0.0
        %297 = vst.msk [vmem:[#allocation2 + $0x50] sm:$0xff] %vm285, 0.0
        %298 = vst.msk [vmem:[#allocation2 + $0x58] sm:$0x3] %vm288, 0.0
        %299 = vst.msk [vmem:[#allocation2 + $0x60] sm:$0xff] %vm285, 0.0
        %300 = vst.msk [vmem:[#allocation2 + $0x68] sm:$0xff] %vm285, 0.0
        %301 = vst.msk [vmem:[#allocation2 + $0x70] sm:$0x3] %vm288, 0.0
        %302 = vst.msk [vmem:[#allocation2 + $0x78] sm:$0xff] %vm285, 0.0
        %303 = vst.msk [vmem:[#allocation2 + $0x80] sm:$0xff] %vm285, 0.0
        %304 = vst.msk [vmem:[#allocation2 + $0x88] sm:$0x3] %vm288, 0.0
        %305 = vst.msk [vmem:[#allocation2 + $0x90] sm:$0xff] %vm285, 0.0
        %306 = vst.msk [vmem:[#allocation2 + $0x98] sm:$0xff] %vm285, 0.0
        %307 = vst.msk [vmem:[#allocation2 + $0xa0] sm:$0x3] %vm288, 0.0
        %308 = vst.msk [vmem:[#allocation2 + $0xa8] sm:$0xff] %vm285, 0.0
        %309 = vst.msk [vmem:[#allocation2 + $0xb0] sm:$0xff] %vm285, 0.0
        %310 = vst.msk [vmem:[#allocation2 + $0xb8] sm:$0x3] %vm288, 0.0
        %311 = vst.msk [vmem:[#allocation2 + $0xc0] sm:$0xff] %vm285, 0.0
        %312 = vst.msk [vmem:[#allocation2 + $0xc8] sm:$0xff] %vm285, 0.0
        %313 = vst.msk [vmem:[#allocation2 + $0xd0] sm:$0x3] %vm288, 0.0
        %314 = vst.msk [vmem:[#allocation2 + $0xd8] sm:$0xff] %vm285, 0.0
        %315 = vst.msk [vmem:[#allocation2 + $0xe0] sm:$0xff] %vm285, 0.0
        %316 = vst.msk [vmem:[#allocation2 + $0xe8] sm:$0x3] %vm288, 0.0
        %317 = vst.msk [vmem:[#allocation2 + $0xf0] sm:$0xff] %vm285, 0.0
        %318 = vst.msk [vmem:[#allocation2 + $0xf8] sm:$0xff] %vm285, 0.0
        %319 = vst.msk [vmem:[#allocation2 + $0x100] sm:$0x3] %vm288, 0.0
        %320 = vst.msk [vmem:[#allocation2 + $0x108] sm:$0xff] %vm285, 0.0
        %321 = vst.msk [vmem:[#allocation2 + $0x110] sm:$0xff] %vm285, 0.0
        %322 = vst.msk [vmem:[#allocation2 + $0x118] sm:$0x3] %vm288, 0.0
        %323 = vst.msk [vmem:[#allocation2 + $0x120] sm:$0xff] %vm285, 0.0
        %324 = vst.msk [vmem:[#allocation2 + $0x128] sm:$0xff] %vm285, 0.0
        %325 = vst.msk [vmem:[#allocation2 + $0x130] sm:$0x3] %vm288, 0.0
        %326 = vst.msk [vmem:[#allocation2 + $0x138] sm:$0xff] %vm285, 0.0
        %327 = vst.msk [vmem:[#allocation2 + $0x140] sm:$0xff] %vm285, 0.0
        %328 = vst.msk [vmem:[#allocation2 + $0x148] sm:$0x3] %vm288, 0.0
        %329 = vst.msk [vmem:[#allocation2 + $0x150] sm:$0xff] %vm285, 0.0
        %330 = vst.msk [vmem:[#allocation2 + $0x158] sm:$0xff] %vm285, 0.0
        %331 = vst.msk [vmem:[#allocation2 + $0x160] sm:$0x3] %vm288, 0.0
        %332 = vst.msk [vmem:[#allocation2 + $0x168] sm:$0xff] %vm285, 0.0
        %333 = vst.msk [vmem:[#allocation2 + $0x170] sm:$0xff] %vm285, 0.0
        %334 = vst.msk [vmem:[#allocation2 + $0x178] sm:$0x3] %vm288, 0.0
        %335 = vst.msk [vmem:[#allocation2 + $0x180] sm:$0xff] %vm285, 0.0
        %336 = vst.msk [vmem:[#allocation2 + $0x188] sm:$0xff] %vm285, 0.0
        %337 = vst.msk [vmem:[#allocation2 + $0x190] sm:$0x3] %vm288, 0.0
        %338 = vst.msk [vmem:[#allocation2 + $0x198] sm:$0xff] %vm285, 0.0
        %339 = vst.msk [vmem:[#allocation2 + $0x1a0] sm:$0xff] %vm285, 0.0
        %340 = vst.msk [vmem:[#allocation2 + $0x1a8] sm:$0x3] %vm288, 0.0
        %341 = vst.msk [vmem:[#allocation3] sm:$0xff] %vm285, 0.0
        %342 = vst.msk [vmem:[#allocation3 + $0x8] sm:$0xff] %vm285, 0.0
        %343 = vst.msk [vmem:[#allocation3 + $0x10] sm:$0xff] %vm285, 0.0
        %344 = vst.msk [vmem:[#allocation3 + $0x18] sm:$0xff] %vm285, 0.0
        %345 = vst.msk [vmem:[#allocation3 + $0x20] sm:$0xff] %vm285, 0.0
        %346 = vst.msk [vmem:[#allocation3 + $0x28] sm:$0xff] %vm285, 0.0
        %347 = vst.msk [vmem:[#allocation3 + $0x30] sm:$0xff] %vm285, 0.0
        %348 = vst.msk [vmem:[#allocation3 + $0x38] sm:$0xff] %vm285, 0.0
        %349 = vst.msk [vmem:[#allocation3 + $0x40] sm:$0xff] %vm285, 0.0
        %350 = vst.msk [vmem:[#allocation3 + $0x48] sm:$0xff] %vm285, 0.0
        %351 = vst.msk [vmem:[#allocation3 + $0x50] sm:$0xff] %vm285, 0.0
        %352 = vst.msk [vmem:[#allocation3 + $0x58] sm:$0xff] %vm285, 0.0
        %353 = vst.msk [vmem:[#allocation3 + $0x60] sm:$0xff] %vm285, 0.0
        %354 = vst.msk [vmem:[#allocation3 + $0x68] sm:$0xff] %vm285, 0.0
        %355 = vst.msk [vmem:[#allocation3 + $0x70] sm:$0xff] %vm285, 0.0
        %356 = vst.msk [vmem:[#allocation3 + $0x78] sm:$0xff] %vm285, 0.0
        %357 = vst.msk [vmem:[#allocation3 + $0x80] sm:$0xff] %vm285, 0.0
        %358 = vst.msk [vmem:[#allocation3 + $0x88] sm:$0xff] %vm285, 0.0
        %359 = vst.msk [vmem:[#allocation3 + $0x90] sm:$0xff] %vm285, 0.0
        %360 = vst.msk [vmem:[#allocation3 + $0x98] sm:$0xff] %vm285, 0.0
        %361 = vst.msk [vmem:[#allocation3 + $0xa0] sm:$0xff] %vm285, 0.0
        %362 = vst.msk [vmem:[#allocation3 + $0xa8] sm:$0xff] %vm285, 0.0
        %363 = vst.msk [vmem:[#allocation3 + $0xb0] sm:$0xff] %vm285, 0.0
        %364 = vst.msk [vmem:[#allocation3 + $0xb8] sm:$0xff] %vm285, 0.0
        %365 = vst.msk [vmem:[#allocation3 + $0xc0] sm:$0xff] %vm285, 0.0
        %366 = vst.msk [vmem:[#allocation3 + $0xc8] sm:$0xff] %vm285, 0.0
        %367 = vst.msk [vmem:[#allocation3 + $0xd0] sm:$0xff] %vm285, 0.0
        %368 = vst.msk [vmem:[#allocation3 + $0xd8] sm:$0xff] %vm285, 0.0
        %369 = vst.msk [vmem:[#allocation3 + $0xe0] sm:$0xff] %vm285, 0.0
        %370 = vst.msk [vmem:[#allocation3 + $0xe8] sm:$0xff] %vm285, 0.0
        %371 = vst.msk [vmem:[#allocation3 + $0xf0] sm:$0xff] %vm285, 0.0
        %372 = vst.msk [vmem:[#allocation3 + $0xf8] sm:$0xff] %vm285, 0.0
      $region48: #{tpu_custom_call.1} parent=43 // pred_fallthru
        _
      %v373 = vld [vmem:[#allocation2] sm:$0xff]
      %v374 = vld [vmem:[#allocation2 + $0x8] sm:$0xff]
      %v375 = vld [vmem:[#allocation2 + $0x18] sm:$0xff]
      %v376 = vld [vmem:[#allocation2 + $0x20] sm:$0xff]
      %v377 = vld [vmem:[#allocation2 + $0x30] sm:$0xff]
      %v378 = vld [vmem:[#allocation2 + $0x38] sm:$0xff]
      %v379 = vld [vmem:[#allocation2 + $0x48] sm:$0xff]
      %v380 = vld [vmem:[#allocation2 + $0x50] sm:$0xff]
      %v381 = vld [vmem:[#allocation2 + $0x60] sm:$0xff]
      %v382 = vld [vmem:[#allocation2 + $0x68] sm:$0xff]
      %v383 = vld [vmem:[#allocation2 + $0x78] sm:$0xff]
      %v384 = vld [vmem:[#allocation2 + $0x80] sm:$0xff]
      %v385 = vld [vmem:[#allocation2 + $0x90] sm:$0xff]
      %v386 = vld [vmem:[#allocation2 + $0x98] sm:$0xff]
      %v387 = vld [vmem:[#allocation2 + $0xa8] sm:$0xff]
      %v388 = vld [vmem:[#allocation2 + $0xb0] sm:$0xff]
      %v389 = vld [vmem:[#allocation2 + $0xc0] sm:$0xff]
      %v390 = vld [vmem:[#allocation2 + $0xc8] sm:$0xff]
      %v391 = vld [vmem:[#allocation2 + $0xd8] sm:$0xff]
      %v392 = vld [vmem:[#allocation2 + $0xe0] sm:$0xff]
      %v393 = vld [vmem:[#allocation2 + $0xf0] sm:$0xff]
      %v394 = vld [vmem:[#allocation2 + $0xf8] sm:$0xff]
      %v395 = vld [vmem:[#allocation2 + $0x108] sm:$0xff]
      %v396 = vld [vmem:[#allocation2 + $0x110] sm:$0xff]
      %v397 = vld [vmem:[#allocation2 + $0x120] sm:$0xff]
      %v398 = vld [vmem:[#allocation2 + $0x128] sm:$0xff]
      %v399 = vld [vmem:[#allocation2 + $0x138] sm:$0xff]
      %v400 = vld [vmem:[#allocation2 + $0x140] sm:$0xff]
      %v401 = vld [vmem:[#allocation2 + $0x150] sm:$0xff]
      %v402 = vld [vmem:[#allocation2 + $0x158] sm:$0xff]
      %v403 = vld [vmem:[#allocation2 + $0x168] sm:$0xff]
      %v404 = vld [vmem:[#allocation2 + $0x170] sm:$0xff]
      %v405 = vpack.c.bf16 %v373, %v373
      %v406 = vpack.c.bf16 %v374, %v374
      %v407 = vpack.c.bf16 %v375, %v375
      %v408 = vpack.c.bf16 %v376, %v376
      %v409 = vpack.c.bf16 %v377, %v377
      %v410 = vpack.c.bf16 %v378, %v378
      %v411 = vpack.c.bf16 %v379, %v379
      %v412 = vpack.c.bf16 %v380, %v380
      %v413 = vpack.c.bf16 %v381, %v381
      %v414 = vpack.c.bf16 %v382, %v382
      %v415 = vpack.c.bf16 %v383, %v383
      %v416 = vpack.c.bf16 %v384, %v384
      %v417 = vpack.c.bf16 %v385, %v385
      %v418 = vpack.c.bf16 %v386, %v386
      %v419 = vpack.c.bf16 %v387, %v387
      %v420 = vpack.c.bf16 %v388, %v388
      %v421 = vpack.c.bf16 %v389, %v389
      %v422 = vpack.c.bf16 %v390, %v390
      %v423 = vpack.c.bf16 %v391, %v391
      %v424 = vpack.c.bf16 %v392, %v392
      %v425 = vpack.c.bf16 %v393, %v393
      %v426 = vpack.c.bf16 %v394, %v394
      %v427 = vpack.c.bf16 %v395, %v395
      %v428 = vpack.c.bf16 %v396, %v396
      %v429 = vpack.c.bf16 %v397, %v397
      %v430 = vpack.c.bf16 %v398, %v398
      %v431 = vpack.c.bf16 %v399, %v399
      %v432 = vpack.c.bf16 %v400, %v400
      %v433 = vpack.c.bf16 %v401, %v401
      %v434 = vpack.c.bf16 %v402, %v402
      %v435 = vpack.c.bf16 %v403, %v403
      %v436 = vpack.c.bf16 %v404, %v404
      %vm437 = vcmask 257024
      %438 = vst.msk [vmem:[#allocation4] sm:$0xf] %vm437, %v405
      %439 = vst.msk [vmem:[#allocation4 + $0xc] sm:$0xf] %vm437, %v406
      %440 = vst.msk [vmem:[#allocation4 + $0x18] sm:$0xf] %vm437, %v407
      %441 = vst.msk [vmem:[#allocation4 + $0x24] sm:$0xf] %vm437, %v408
      %442 = vst.msk [vmem:[#allocation4 + $0x30] sm:$0xf] %vm437, %v409
      %443 = vst.msk [vmem:[#allocation4 + $0x3c] sm:$0xf] %vm437, %v410
      %444 = vst.msk [vmem:[#allocation4 + $0x48] sm:$0xf] %vm437, %v411
      %445 = vst.msk [vmem:[#allocation4 + $0x54] sm:$0xf] %vm437, %v412
      %446 = vst.msk [vmem:[#allocation4 + $0x60] sm:$0xf] %vm437, %v413
      %447 = vst.msk [vmem:[#allocation4 + $0x6c] sm:$0xf] %vm437, %v414
      %448 = vst.msk [vmem:[#allocation4 + $0x78] sm:$0xf] %vm437, %v415
      %449 = vst.msk [vmem:[#allocation4 + $0x84] sm:$0xf] %vm437, %v416
      %450 = vst.msk [vmem:[#allocation4 + $0x90] sm:$0xf] %vm437, %v417
      %451 = vst.msk [vmem:[#allocation4 + $0x9c] sm:$0xf] %vm437, %v418
      %452 = vst.msk [vmem:[#allocation4 + $0xa8] sm:$0xf] %vm437, %v419
      %453 = vst.msk [vmem:[#allocation4 + $0xb4] sm:$0xf] %vm437, %v420
      %454 = vst.msk [vmem:[#allocation4 + $0xc0] sm:$0xf] %vm437, %v421
      %455 = vst.msk [vmem:[#allocation4 + $0xcc] sm:$0xf] %vm437, %v422
      %456 = vst.msk [vmem:[#allocation4 + $0xd8] sm:$0xf] %vm437, %v423
      %457 = vst.msk [vmem:[#allocation4 + $0xe4] sm:$0xf] %vm437, %v424
      %458 = vst.msk [vmem:[#allocation4 + $0xf0] sm:$0xf] %vm437, %v425
      %459 = vst.msk [vmem:[#allocation4 + $0xfc] sm:$0xf] %vm437, %v426
      %460 = vst.msk [vmem:[#allocation4 + $0x108] sm:$0xf] %vm437, %v427
      %461 = vst.msk [vmem:[#allocation4 + $0x114] sm:$0xf] %vm437, %v428
      %462 = vst.msk [vmem:[#allocation4 + $0x120] sm:$0xf] %vm437, %v429
      %463 = vst.msk [vmem:[#allocation4 + $0x12c] sm:$0xf] %vm437, %v430
      %464 = vst.msk [vmem:[#allocation4 + $0x138] sm:$0xf] %vm437, %v431
      %465 = vst.msk [vmem:[#allocation4 + $0x144] sm:$0xf] %vm437, %v432
      %466 = vst.msk [vmem:[#allocation4 + $0x150] sm:$0xf] %vm437, %v433
      %467 = vst.msk [vmem:[#allocation4 + $0x15c] sm:$0xf] %vm437, %v434
      %468 = vst.msk [vmem:[#allocation4 + $0x168] sm:$0xf] %vm437, %v435
      %469 = vst.msk [vmem:[#allocation4 + $0x174] sm:$0xf] %vm437, %v436
      %v470 = vld [vmem:[#allocation2 + $0x1] sm:$0xff]
      %v471 = vld [vmem:[#allocation2 + $0x9] sm:$0xff]
      %v472 = vld [vmem:[#allocation2 + $0x19] sm:$0xff]
      %v473 = vld [vmem:[#allocation2 + $0x21] sm:$0xff]
      %v474 = vld [vmem:[#allocation2 + $0x31] sm:$0xff]
      %v475 = vld [vmem:[#allocation2 + $0x39] sm:$0xff]
      %v476 = vld [vmem:[#allocation2 + $0x49] sm:$0xff]
      %v477 = vld [vmem:[#allocation2 + $0x51] sm:$0xff]
      %v478 = vld [vmem:[#allocation2 + $0x61] sm:$0xff]
      %v479 = vld [vmem:[#allocation2 + $0x69] sm:$0xff]
      %v480 = vld [vmem:[#allocation2 + $0x79] sm:$0xff]
      %v481 = vld [vmem:[#allocation2 + $0x81] sm:$0xff]
      %v482 = vld [vmem:[#allocation2 + $0x91] sm:$0xff]
      %v483 = vld [vmem:[#allocation2 + $0x99] sm:$0xff]
      %v484 = vld [vmem:[#allocation2 + $0xa9] sm:$0xff]
      %v485 = vld [vmem:[#allocation2 + $0xb1] sm:$0xff]
      %v486 = vld [vmem:[#allocation2 + $0xc1] sm:$0xff]
      %v487 = vld [vmem:[#allocation2 + $0xc9] sm:$0xff]
      %v488 = vld [vmem:[#allocation2 + $0xd9] sm:$0xff]
      %v489 = vld [vmem:[#allocation2 + $0xe1] sm:$0xff]
      %v490 = vld [vmem:[#allocation2 + $0xf1] sm:$0xff]
      %v491 = vld [vmem:[#allocation2 + $0xf9] sm:$0xff]
      %v492 = vld [vmem:[#allocation2 + $0x109] sm:$0xff]
      %v493 = vld [vmem:[#allocation2 + $0x111] sm:$0xff]
      %v494 = vld [vmem:[#allocation2 + $0x121] sm:$0xff]
      %v495 = vld [vmem:[#allocation2 + $0x129] sm:$0xff]
      %v496 = vld [vmem:[#allocation2 + $0x139] sm:$0xff]
      %v497 = vld [vmem:[#allocation2 + $0x141] sm:$0xff]
      %v498 = vld [vmem:[#allocation2 + $0x151] sm:$0xff]
      %v499 = vld [vmem:[#allocation2 + $0x159] sm:$0xff]
      %v500 = vld [vmem:[#allocation2 + $0x169] sm:$0xff]
      %v501 = vld [vmem:[#allocation2 + $0x171] sm:$0xff]
      %v502 = vpack.c.bf16 %v470, %v470
      %v503 = vpack.c.bf16 %v471, %v471
      %v504 = vpack.c.bf16 %v472, %v472
      %v505 = vpack.c.bf16 %v473, %v473
      %v506 = vpack.c.bf16 %v474, %v474
      %v507 = vpack.c.bf16 %v475, %v475
      %v508 = vpack.c.bf16 %v476, %v476
      %v509 = vpack.c.bf16 %v477, %v477
      %v510 = vpack.c.bf16 %v478, %v478
      %v511 = vpack.c.bf16 %v479, %v479
      %v512 = vpack.c.bf16 %v480, %v480
      %v513 = vpack.c.bf16 %v481, %v481
      %v514 = vpack.c.bf16 %v482, %v482
      %v515 = vpack.c.bf16 %v483, %v483
      %v516 = vpack.c.bf16 %v484, %v484
      %v517 = vpack.c.bf16 %v485, %v485
      %v518 = vpack.c.bf16 %v486, %v486
      %v519 = vpack.c.bf16 %v487, %v487
      %v520 = vpack.c.bf16 %v488, %v488
      %v521 = vpack.c.bf16 %v489, %v489
      %v522 = vpack.c.bf16 %v490, %v490
      %v523 = vpack.c.bf16 %v491, %v491
      %v524 = vpack.c.bf16 %v492, %v492
      %v525 = vpack.c.bf16 %v493, %v493
      %v526 = vpack.c.bf16 %v494, %v494
      %v527 = vpack.c.bf16 %v495, %v495
      %v528 = vpack.c.bf16 %v496, %v496
      %v529 = vpack.c.bf16 %v497, %v497
      %v530 = vpack.c.bf16 %v498, %v498
      %v531 = vpack.c.bf16 %v499, %v499
      %v532 = vpack.c.bf16 %v500, %v500
      %v533 = vpack.c.bf16 %v501, %v501
      %566 = vrot.lane.b32.xlu0 %v502, 32
      %v567 = vpop.permute.xlu0 %566
      %568 = vrot.lane.b32.xlu0 %v503, 32
      %v569 = vpop.permute.xlu0 %568
      %570 = vrot.lane.b32.xlu0 %v504, 32
      %v571 = vpop.permute.xlu0 %570
      %572 = vrot.lane.b32.xlu0 %v505, 32
      %v573 = vpop.permute.xlu0 %572
      %574 = vrot.lane.b32.xlu0 %v506, 32
      %v575 = vpop.permute.xlu0 %574
      %576 = vrot.lane.b32.xlu0 %v507, 32
      %v577 = vpop.permute.xlu0 %576
      %578 = vrot.lane.b32.xlu0 %v508, 32
      %v579 = vpop.permute.xlu0 %578
      %580 = vrot.lane.b32.xlu0 %v509, 32
      %v581 = vpop.permute.xlu0 %580
      %582 = vrot.lane.b32.xlu0 %v510, 32
      %v583 = vpop.permute.xlu0 %582
      %584 = vrot.lane.b32.xlu0 %v511, 32
      %v585 = vpop.permute.xlu0 %584
      %586 = vrot.lane.b32.xlu0 %v512, 32
      %v587 = vpop.permute.xlu0 %586
      %588 = vrot.lane.b32.xlu0 %v513, 32
      %v589 = vpop.permute.xlu0 %588
      %590 = vrot.lane.b32.xlu0 %v514, 32
      %v591 = vpop.permute.xlu0 %590
      %592 = vrot.lane.b32.xlu0 %v515, 32
      %v593 = vpop.permute.xlu0 %592
      %594 = vrot.lane.b32.xlu0 %v516, 32
      %v595 = vpop.permute.xlu0 %594
      %596 = vrot.lane.b32.xlu0 %v517, 32
      %v597 = vpop.permute.xlu0 %596
      %598 = vrot.lane.b32.xlu0 %v518, 32
      %v599 = vpop.permute.xlu0 %598
      %600 = vrot.lane.b32.xlu0 %v519, 32
      %v601 = vpop.permute.xlu0 %600
      %602 = vrot.lane.b32.xlu0 %v520, 32
      %v603 = vpop.permute.xlu0 %602
      %604 = vrot.lane.b32.xlu0 %v521, 32
      %v605 = vpop.permute.xlu0 %604
      %606 = vrot.lane.b32.xlu0 %v522, 32
      %v607 = vpop.permute.xlu0 %606
      %608 = vrot.lane.b32.xlu0 %v523, 32
      %v609 = vpop.permute.xlu0 %608
      %610 = vrot.lane.b32.xlu0 %v524, 32
      %v611 = vpop.permute.xlu0 %610
      %612 = vrot.lane.b32.xlu0 %v525, 32
      %v613 = vpop.permute.xlu0 %612
      %614 = vrot.lane.b32.xlu0 %v526, 32
      %v615 = vpop.permute.xlu0 %614
      %616 = vrot.lane.b32.xlu0 %v527, 32
      %v617 = vpop.permute.xlu0 %616
      %618 = vrot.lane.b32.xlu0 %v528, 32
      %v619 = vpop.permute.xlu0 %618
      %620 = vrot.lane.b32.xlu0 %v529, 32
      %v621 = vpop.permute.xlu0 %620
      %622 = vrot.lane.b32.xlu0 %v530, 32
      %v623 = vpop.permute.xlu0 %622
      %624 = vrot.lane.b32.xlu0 %v531, 32
      %v625 = vpop.permute.xlu0 %624
      %626 = vrot.lane.b32.xlu0 %v532, 32
      %v627 = vpop.permute.xlu0 %626
      %628 = vrot.lane.b32.xlu0 %v533, 32
      %v629 = vpop.permute.xlu0 %628
      %vm662 = vcmask 519424
      %663 = vst.msk [vmem:[#allocation4] sm:$0xf] %vm662, %v567
      %664 = vst.msk [vmem:[#allocation4 + $0xc] sm:$0xf] %vm662, %v569
      %665 = vst.msk [vmem:[#allocation4 + $0x18] sm:$0xf] %vm662, %v571
      %666 = vst.msk [vmem:[#allocation4 + $0x24] sm:$0xf] %vm662, %v573
      %667 = vst.msk [vmem:[#allocation4 + $0x30] sm:$0xf] %vm662, %v575
      %668 = vst.msk [vmem:[#allocation4 + $0x3c] sm:$0xf] %vm662, %v577
      %669 = vst.msk [vmem:[#allocation4 + $0x48] sm:$0xf] %vm662, %v579
      %670 = vst.msk [vmem:[#allocation4 + $0x54] sm:$0xf] %vm662, %v581
      %671 = vst.msk [vmem:[#allocation4 + $0x60] sm:$0xf] %vm662, %v583
      %672 = vst.msk [vmem:[#allocation4 + $0x6c] sm:$0xf] %vm662, %v585
      %673 = vst.msk [vmem:[#allocation4 + $0x78] sm:$0xf] %vm662, %v587
      %674 = vst.msk [vmem:[#allocation4 + $0x84] sm:$0xf] %vm662, %v589
      %675 = vst.msk [vmem:[#allocation4 + $0x90] sm:$0xf] %vm662, %v591
      %676 = vst.msk [vmem:[#allocation4 + $0x9c] sm:$0xf] %vm662, %v593
      %677 = vst.msk [vmem:[#allocation4 + $0xa8] sm:$0xf] %vm662, %v595
      %678 = vst.msk [vmem:[#allocation4 + $0xb4] sm:$0xf] %vm662, %v597
      %679 = vst.msk [vmem:[#allocation4 + $0xc0] sm:$0xf] %vm662, %v599
      %680 = vst.msk [vmem:[#allocation4 + $0xcc] sm:$0xf] %vm662, %v601
      %681 = vst.msk [vmem:[#allocation4 + $0xd8] sm:$0xf] %vm662, %v603
      %682 = vst.msk [vmem:[#allocation4 + $0xe4] sm:$0xf] %vm662, %v605
      %683 = vst.msk [vmem:[#allocation4 + $0xf0] sm:$0xf] %vm662, %v607
      %684 = vst.msk [vmem:[#allocation4 + $0xfc] sm:$0xf] %vm662, %v609
      %685 = vst.msk [vmem:[#allocation4 + $0x108] sm:$0xf] %vm662, %v611
      %686 = vst.msk [vmem:[#allocation4 + $0x114] sm:$0xf] %vm662, %v613
      %687 = vst.msk [vmem:[#allocation4 + $0x120] sm:$0xf] %vm662, %v615
      %688 = vst.msk [vmem:[#allocation4 + $0x12c] sm:$0xf] %vm662, %v617
      %689 = vst.msk [vmem:[#allocation4 + $0x138] sm:$0xf] %vm662, %v619
      %690 = vst.msk [vmem:[#allocation4 + $0x144] sm:$0xf] %vm662, %v621
      %691 = vst.msk [vmem:[#allocation4 + $0x150] sm:$0xf] %vm662, %v623
      %692 = vst.msk [vmem:[#allocation4 + $0x15c] sm:$0xf] %vm662, %v625
      %693 = vst.msk [vmem:[#allocation4 + $0x168] sm:$0xf] %vm662, %v627
      %694 = vst.msk [vmem:[#allocation4 + $0x174] sm:$0xf] %vm662, %v629
      %v695 = vld [vmem:[#allocation2 + $0x2] sm:$0xff]
      %v696 = vld [vmem:[#allocation2 + $0xa] sm:$0xff]
      %v697 = vld [vmem:[#allocation2 + $0x1a] sm:$0xff]
      %v698 = vld [vmem:[#allocation2 + $0x22] sm:$0xff]
      %v699 = vld [vmem:[#allocation2 + $0x32] sm:$0xff]
      %v700 = vld [vmem:[#allocation2 + $0x3a] sm:$0xff]
      %v701 = vld [vmem:[#allocation2 + $0x4a] sm:$0xff]
      %v702 = vld [vmem:[#allocation2 + $0x52] sm:$0xff]
      %v703 = vld [vmem:[#allocation2 + $0x62] sm:$0xff]
      %v704 = vld [vmem:[#allocation2 + $0x6a] sm:$0xff]
      %v705 = vld [vmem:[#allocation2 + $0x7a] sm:$0xff]
      %v706 = vld [vmem:[#allocation2 + $0x82] sm:$0xff]
      %v707 = vld [vmem:[#allocation2 + $0x92] sm:$0xff]
      %v708 = vld [vmem:[#allocation2 + $0x9a] sm:$0xff]
      %v709 = vld [vmem:[#allocation2 + $0xaa] sm:$0xff]
      %v710 = vld [vmem:[#allocation2 + $0xb2] sm:$0xff]
      %v711 = vld [vmem:[#allocation2 + $0xc2] sm:$0xff]
      %v712 = vld [vmem:[#allocation2 + $0xca] sm:$0xff]
      %v713 = vld [vmem:[#allocation2 + $0xda] sm:$0xff]
      %v714 = vld [vmem:[#allocation2 + $0xe2] sm:$0xff]
      %v715 = vld [vmem:[#allocation2 + $0xf2] sm:$0xff]
      %v716 = vld [vmem:[#allocation2 + $0xfa] sm:$0xff]
      %v717 = vld [vmem:[#allocation2 + $0x10a] sm:$0xff]
      %v718 = vld [vmem:[#allocation2 + $0x112] sm:$0xff]
      %v719 = vld [vmem:[#allocation2 + $0x122] sm:$0xff]
      %v720 = vld [vmem:[#allocation2 + $0x12a] sm:$0xff]
      %v721 = vld [vmem:[#allocation2 + $0x13a] sm:$0xff]
      %v722 = vld [vmem:[#allocation2 + $0x142] sm:$0xff]
      %v723 = vld [vmem:[#allocation2 + $0x152] sm:$0xff]
      %v724 = vld [vmem:[#allocation2 + $0x15a] sm:$0xff]
      %v725 = vld [vmem:[#allocation2 + $0x16a] sm:$0xff]
      %v726 = vld [vmem:[#allocation2 + $0x172] sm:$0xff]
      %v727 = vpack.c.bf16 %v695, %v695
      %v728 = vpack.c.bf16 %v696, %v696
      %v729 = vpack.c.bf16 %v697, %v697
      %v730 = vpack.c.bf16 %v698, %v698
      %v731 = vpack.c.bf16 %v699, %v699
      %v732 = vpack.c.bf16 %v700, %v700
      %v733 = vpack.c.bf16 %v701, %v701
      %v734 = vpack.c.bf16 %v702, %v702
      %v735 = vpack.c.bf16 %v703, %v703
      %v736 = vpack.c.bf16 %v704, %v704
      %v737 = vpack.c.bf16 %v705, %v705
      %v738 = vpack.c.bf16 %v706, %v706
      %v739 = vpack.c.bf16 %v707, %v707
      %v740 = vpack.c.bf16 %v708, %v708
      %v741 = vpack.c.bf16 %v709, %v709
      %v742 = vpack.c.bf16 %v710, %v710
      %v743 = vpack.c.bf16 %v711, %v711
      %v744 = vpack.c.bf16 %v712, %v712
      %v745 = vpack.c.bf16 %v713, %v713
      %v746 = vpack.c.bf16 %v714, %v714
      %v747 = vpack.c.bf16 %v715, %v715
      %v748 = vpack.c.bf16 %v716, %v716
      %v749 = vpack.c.bf16 %v717, %v717
      %v750 = vpack.c.bf16 %v718, %v718
      %v751 = vpack.c.bf16 %v719, %v719
      %v752 = vpack.c.bf16 %v720, %v720
      %v753 = vpack.c.bf16 %v721, %v721
      %v754 = vpack.c.bf16 %v722, %v722
      %v755 = vpack.c.bf16 %v723, %v723
      %v756 = vpack.c.bf16 %v724, %v724
      %v757 = vpack.c.bf16 %v725, %v725
      %v758 = vpack.c.bf16 %v726, %v726
      %791 = vrot.lane.b32.xlu0 %v727, 64
      %v792 = vpop.permute.xlu0 %791
      %793 = vrot.lane.b32.xlu0 %v728, 64
      %v794 = vpop.permute.xlu0 %793
      %795 = vrot.lane.b32.xlu0 %v729, 64
      %v796 = vpop.permute.xlu0 %795
      %797 = vrot.lane.b32.xlu0 %v730, 64
      %v798 = vpop.permute.xlu0 %797
      %799 = vrot.lane.b32.xlu0 %v731, 64
      %v800 = vpop.permute.xlu0 %799
      %801 = vrot.lane.b32.xlu0 %v732, 64
      %v802 = vpop.permute.xlu0 %801
      %803 = vrot.lane.b32.xlu0 %v733, 64
      %v804 = vpop.permute.xlu0 %803
      %805 = vrot.lane.b32.xlu0 %v734, 64
      %v806 = vpop.permute.xlu0 %805
      %807 = vrot.lane.b32.xlu0 %v735, 64
      %v808 = vpop.permute.xlu0 %807
      %809 = vrot.lane.b32.xlu0 %v736, 64
      %v810 = vpop.permute.xlu0 %809
      %811 = vrot.lane.b32.xlu0 %v737, 64
      %v812 = vpop.permute.xlu0 %811
      %813 = vrot.lane.b32.xlu0 %v738, 64
      %v814 = vpop.permute.xlu0 %813
      %815 = vrot.lane.b32.xlu0 %v739, 64
      %v816 = vpop.permute.xlu0 %815
      %817 = vrot.lane.b32.xlu0 %v740, 64
      %v818 = vpop.permute.xlu0 %817
      %819 = vrot.lane.b32.xlu0 %v741, 64
      %v820 = vpop.permute.xlu0 %819
      %821 = vrot.lane.b32.xlu0 %v742, 64
      %v822 = vpop.permute.xlu0 %821
      %823 = vrot.lane.b32.xlu0 %v743, 64
      %v824 = vpop.permute.xlu0 %823
      %825 = vrot.lane.b32.xlu0 %v744, 64
      %v826 = vpop.permute.xlu0 %825
      %827 = vrot.lane.b32.xlu0 %v745, 64
      %v828 = vpop.permute.xlu0 %827
      %829 = vrot.lane.b32.xlu0 %v746, 64
      %v830 = vpop.permute.xlu0 %829
      %831 = vrot.lane.b32.xlu0 %v747, 64
      %v832 = vpop.permute.xlu0 %831
      %833 = vrot.lane.b32.xlu0 %v748, 64
      %v834 = vpop.permute.xlu0 %833
      %835 = vrot.lane.b32.xlu0 %v749, 64
      %v836 = vpop.permute.xlu0 %835
      %837 = vrot.lane.b32.xlu0 %v750, 64
      %v838 = vpop.permute.xlu0 %837
      %839 = vrot.lane.b32.xlu0 %v751, 64
      %v840 = vpop.permute.xlu0 %839
      %841 = vrot.lane.b32.xlu0 %v752, 64
      %v842 = vpop.permute.xlu0 %841
      %843 = vrot.lane.b32.xlu0 %v753, 64
      %v844 = vpop.permute.xlu0 %843
      %845 = vrot.lane.b32.xlu0 %v754, 64
      %v846 = vpop.permute.xlu0 %845
      %847 = vrot.lane.b32.xlu0 %v755, 64
      %v848 = vpop.permute.xlu0 %847
      %849 = vrot.lane.b32.xlu0 %v756, 64
      %v850 = vpop.permute.xlu0 %849
      %851 = vrot.lane.b32.xlu0 %v757, 64
      %v852 = vpop.permute.xlu0 %851
      %853 = vrot.lane.b32.xlu0 %v758, 64
      %v854 = vpop.permute.xlu0 %853
      %vm887 = vcmask 781824
      %888 = vst.msk [vmem:[#allocation4] sm:$0xf] %vm887, %v792
      %889 = vst.msk [vmem:[#allocation4 + $0xc] sm:$0xf] %vm887, %v794
      %890 = vst.msk [vmem:[#allocation4 + $0x18] sm:$0xf] %vm887, %v796
      %891 = vst.msk [vmem:[#allocation4 + $0x24] sm:$0xf] %vm887, %v798
      %892 = vst.msk [vmem:[#allocation4 + $0x30] sm:$0xf] %vm887, %v800
      %893 = vst.msk [vmem:[#allocation4 + $0x3c] sm:$0xf] %vm887, %v802
      %894 = vst.msk [vmem:[#allocation4 + $0x48] sm:$0xf] %vm887, %v804
      %895 = vst.msk [vmem:[#allocation4 + $0x54] sm:$0xf] %vm887, %v806
      %896 = vst.msk [vmem:[#allocation4 + $0x60] sm:$0xf] %vm887, %v808
      %897 = vst.msk [vmem:[#allocation4 + $0x6c] sm:$0xf] %vm887, %v810
      %898 = vst.msk [vmem:[#allocation4 + $0x78] sm:$0xf] %vm887, %v812
      %899 = vst.msk [vmem:[#allocation4 + $0x84] sm:$0xf] %vm887, %v814
      %900 = vst.msk [vmem:[#allocation4 + $0x90] sm:$0xf] %vm887, %v816
      %901 = vst.msk [vmem:[#allocation4 + $0x9c] sm:$0xf] %vm887, %v818
      %902 = vst.msk [vmem:[#allocation4 + $0xa8] sm:$0xf] %vm887, %v820
      %903 = vst.msk [vmem:[#allocation4 + $0xb4] sm:$0xf] %vm887, %v822
      %904 = vst.msk [vmem:[#allocation4 + $0xc0] sm:$0xf] %vm887, %v824
      %905 = vst.msk [vmem:[#allocation4 + $0xcc] sm:$0xf] %vm887, %v826
      %906 = vst.msk [vmem:[#allocation4 + $0xd8] sm:$0xf] %vm887, %v828
      %907 = vst.msk [vmem:[#allocation4 + $0xe4] sm:$0xf] %vm887, %v830
      %908 = vst.msk [vmem:[#allocation4 + $0xf0] sm:$0xf] %vm887, %v832
      %909 = vst.msk [vmem:[#allocation4 + $0xfc] sm:$0xf] %vm887, %v834
      %910 = vst.msk [vmem:[#allocation4 + $0x108] sm:$0xf] %vm887, %v836
      %911 = vst.msk [vmem:[#allocation4 + $0x114] sm:$0xf] %vm887, %v838
      %912 = vst.msk [vmem:[#allocation4 + $0x120] sm:$0xf] %vm887, %v840
      %913 = vst.msk [vmem:[#allocation4 + $0x12c] sm:$0xf] %vm887, %v842
      %914 = vst.msk [vmem:[#allocation4 + $0x138] sm:$0xf] %vm887, %v844
      %915 = vst.msk [vmem:[#allocation4 + $0x144] sm:$0xf] %vm887, %v846
      %916 = vst.msk [vmem:[#allocation4 + $0x150] sm:$0xf] %vm887, %v848
      %917 = vst.msk [vmem:[#allocation4 + $0x15c] sm:$0xf] %vm887, %v850
      %918 = vst.msk [vmem:[#allocation4 + $0x168] sm:$0xf] %vm887, %v852
      %919 = vst.msk [vmem:[#allocation4 + $0x174] sm:$0xf] %vm887, %v854
      %s920 = scalar_lea.vmem [#allocation2], 24
      %v921 = vld [vmem:[%s920] sm:$0xff]
      %v922 = vld [vmem:[%s920 + $0x8] sm:$0xff]
      %v923 = vld [vmem:[%s920 + $0x18] sm:$0xff]
      %v924 = vld [vmem:[%s920 + $0x20] sm:$0xff]
      %v925 = vld [vmem:[%s920 + $0x30] sm:$0xff]
      %v926 = vld [vmem:[%s920 + $0x38] sm:$0xff]
      %v927 = vld [vmem:[%s920 + $0x48] sm:$0xff]
      %v928 = vld [vmem:[%s920 + $0x50] sm:$0xff]
      %v929 = vld [vmem:[%s920 + $0x60] sm:$0xff]
      %v930 = vld [vmem:[%s920 + $0x68] sm:$0xff]
      %v931 = vld [vmem:[%s920 + $0x78] sm:$0xff]
      %v932 = vld [vmem:[%s920 + $0x80] sm:$0xff]
      %v933 = vld [vmem:[%s920 + $0x90] sm:$0xff]
      %v934 = vld [vmem:[%s920 + $0x98] sm:$0xff]
      %v935 = vld [vmem:[%s920 + $0xa8] sm:$0xff]
      %v936 = vld [vmem:[%s920 + $0xb0] sm:$0xff]
      %v937 = vld [vmem:[%s920 + $0xc0] sm:$0xff]
      %v938 = vld [vmem:[%s920 + $0xc8] sm:$0xff]
      %v939 = vld [vmem:[%s920 + $0xd8] sm:$0xff]
      %v940 = vld [vmem:[%s920 + $0xe0] sm:$0xff]
      %v941 = vld [vmem:[%s920 + $0xf0] sm:$0xff]
      %v942 = vld [vmem:[%s920 + $0xf8] sm:$0xff]
      %v943 = vld [vmem:[%s920 + $0x108] sm:$0xff]
      %v944 = vld [vmem:[%s920 + $0x110] sm:$0xff]
      %v945 = vld [vmem:[%s920 + $0x120] sm:$0xff]
      %v946 = vld [vmem:[%s920 + $0x128] sm:$0xff]
      %v947 = vld [vmem:[%s920 + $0x138] sm:$0xff]
      %v948 = vld [vmem:[%s920 + $0x140] sm:$0xff]
      %v949 = vld [vmem:[%s920 + $0x150] sm:$0xff]
      %v950 = vld [vmem:[%s920 + $0x158] sm:$0xff]
      %v951 = vld [vmem:[%s920 + $0x168] sm:$0xff]
      %v952 = vld [vmem:[%s920 + $0x170] sm:$0xff]
      %v953 = vpack.c.bf16 %v921, %v921
      %v954 = vpack.c.bf16 %v922, %v922
      %v955 = vpack.c.bf16 %v923, %v923
      %v956 = vpack.c.bf16 %v924, %v924
      %v957 = vpack.c.bf16 %v925, %v925
      %v958 = vpack.c.bf16 %v926, %v926
      %v959 = vpack.c.bf16 %v927, %v927
      %v960 = vpack.c.bf16 %v928, %v928
      %v961 = vpack.c.bf16 %v929, %v929
      %v962 = vpack.c.bf16 %v930, %v930
      %v963 = vpack.c.bf16 %v931, %v931
      %v964 = vpack.c.bf16 %v932, %v932
      %v965 = vpack.c.bf16 %v933, %v933
      %v966 = vpack.c.bf16 %v934, %v934
      %v967 = vpack.c.bf16 %v935, %v935
      %v968 = vpack.c.bf16 %v936, %v936
      %v969 = vpack.c.bf16 %v937, %v937
      %v970 = vpack.c.bf16 %v938, %v938
      %v971 = vpack.c.bf16 %v939, %v939
      %v972 = vpack.c.bf16 %v940, %v940
      %v973 = vpack.c.bf16 %v941, %v941
      %v974 = vpack.c.bf16 %v942, %v942
      %v975 = vpack.c.bf16 %v943, %v943
      %v976 = vpack.c.bf16 %v944, %v944
      %v977 = vpack.c.bf16 %v945, %v945
      %v978 = vpack.c.bf16 %v946, %v946
      %v979 = vpack.c.bf16 %v947, %v947
      %v980 = vpack.c.bf16 %v948, %v948
      %v981 = vpack.c.bf16 %v949, %v949
      %v982 = vpack.c.bf16 %v950, %v950
      %v983 = vpack.c.bf16 %v951, %v951
      %v984 = vpack.c.bf16 %v952, %v952
      %1017 = vrot.lane.b32.xlu0 %v953, 96
      %v1018 = vpop.permute.xlu0 %1017
      %1019 = vrot.lane.b32.xlu0 %v954, 96
      %v1020 = vpop.permute.xlu0 %1019
      %1021 = vrot.lane.b32.xlu0 %v955, 96
      %v1022 = vpop.permute.xlu0 %1021
      %1023 = vrot.lane.b32.xlu0 %v956, 96
      %v1024 = vpop.permute.xlu0 %1023
      %1025 = vrot.lane.b32.xlu0 %v957, 96
      %v1026 = vpop.permute.xlu0 %1025
      %1027 = vrot.lane.b32.xlu0 %v958, 96
      %v1028 = vpop.permute.xlu0 %1027
      %1029 = vrot.lane.b32.xlu0 %v959, 96
      %v1030 = vpop.permute.xlu0 %1029
      %1031 = vrot.lane.b32.xlu0 %v960, 96
      %v1032 = vpop.permute.xlu0 %1031
      %1033 = vrot.lane.b32.xlu0 %v961, 96
      %v1034 = vpop.permute.xlu0 %1033
      %1035 = vrot.lane.b32.xlu0 %v962, 96
      %v1036 = vpop.permute.xlu0 %1035
      %1037 = vrot.lane.b32.xlu0 %v963, 96
      %v1038 = vpop.permute.xlu0 %1037
      %1039 = vrot.lane.b32.xlu0 %v964, 96
      %v1040 = vpop.permute.xlu0 %1039
      %1041 = vrot.lane.b32.xlu0 %v965, 96
      %v1042 = vpop.permute.xlu0 %1041
      %1043 = vrot.lane.b32.xlu0 %v966, 96
      %v1044 = vpop.permute.xlu0 %1043
      %1045 = vrot.lane.b32.xlu0 %v967, 96
      %v1046 = vpop.permute.xlu0 %1045
      %1047 = vrot.lane.b32.xlu0 %v968, 96
      %v1048 = vpop.permute.xlu0 %1047
      %1049 = vrot.lane.b32.xlu0 %v969, 96
      %v1050 = vpop.permute.xlu0 %1049
      %1051 = vrot.lane.b32.xlu0 %v970, 96
      %v1052 = vpop.permute.xlu0 %1051
      %1053 = vrot.lane.b32.xlu0 %v971, 96
      %v1054 = vpop.permute.xlu0 %1053
      %1055 = vrot.lane.b32.xlu0 %v972, 96
      %v1056 = vpop.permute.xlu0 %1055
      %1057 = vrot.lane.b32.xlu0 %v973, 96
      %v1058 = vpop.permute.xlu0 %1057
      %1059 = vrot.lane.b32.xlu0 %v974, 96
      %v1060 = vpop.permute.xlu0 %1059
      %1061 = vrot.lane.b32.xlu0 %v975, 96
      %v1062 = vpop.permute.xlu0 %1061
      %1063 = vrot.lane.b32.xlu0 %v976, 96
      %v1064 = vpop.permute.xlu0 %1063
      %1065 = vrot.lane.b32.xlu0 %v977, 96
      %v1066 = vpop.permute.xlu0 %1065
      %1067 = vrot.lane.b32.xlu0 %v978, 96
      %v1068 = vpop.permute.xlu0 %1067
      %1069 = vrot.lane.b32.xlu0 %v979, 96
      %v1070 = vpop.permute.xlu0 %1069
      %1071 = vrot.lane.b32.xlu0 %v980, 96
      %v1072 = vpop.permute.xlu0 %1071
      %1073 = vrot.lane.b32.xlu0 %v981, 96
      %v1074 = vpop.permute.xlu0 %1073
      %1075 = vrot.lane.b32.xlu0 %v982, 96
      %v1076 = vpop.permute.xlu0 %1075
      %1077 = vrot.lane.b32.xlu0 %v983, 96
      %v1078 = vpop.permute.xlu0 %1077
      %1079 = vrot.lane.b32.xlu0 %v984, 96
      %v1080 = vpop.permute.xlu0 %1079
      %vm1113 = vcmask 1044224
      %1114 = vst.msk [vmem:[#allocation4] sm:$0xf] %vm1113, %v1018
      %1115 = vst.msk [vmem:[#allocation4 + $0xc] sm:$0xf] %vm1113, %v1020
      %1116 = vst.msk [vmem:[#allocation4 + $0x18] sm:$0xf] %vm1113, %v1022
      %1117 = vst.msk [vmem:[#allocation4 + $0x24] sm:$0xf] %vm1113, %v1024
      %1118 = vst.msk [vmem:[#allocation4 + $0x30] sm:$0xf] %vm1113, %v1026
      %1119 = vst.msk [vmem:[#allocation4 + $0x3c] sm:$0xf] %vm1113, %v1028
      %1120 = vst.msk [vmem:[#allocation4 + $0x48] sm:$0xf] %vm1113, %v1030
      %1121 = vst.msk [vmem:[#allocation4 + $0x54] sm:$0xf] %vm1113, %v1032
      %1122 = vst.msk [vmem:[#allocation4 + $0x60] sm:$0xf] %vm1113, %v1034
      %1123 = vst.msk [vmem:[#allocation4 + $0x6c] sm:$0xf] %vm1113, %v1036
      %1124 = vst.msk [vmem:[#allocation4 + $0x78] sm:$0xf] %vm1113, %v1038
      %1125 = vst.msk [vmem:[#allocation4 + $0x84] sm:$0xf] %vm1113, %v1040
      %1126 = vst.msk [vmem:[#allocation4 + $0x90] sm:$0xf] %vm1113, %v1042
      %1127 = vst.msk [vmem:[#allocation4 + $0x9c] sm:$0xf] %vm1113, %v1044
      %1128 = vst.msk [vmem:[#allocation4 + $0xa8] sm:$0xf] %vm1113, %v1046
      %1129 = vst.msk [vmem:[#allocation4 + $0xb4] sm:$0xf] %vm1113, %v1048
      %1130 = vst.msk [vmem:[#allocation4 + $0xc0] sm:$0xf] %vm1113, %v1050
      %1131 = vst.msk [vmem:[#allocation4 + $0xcc] sm:$0xf] %vm1113, %v1052
      %1132 = vst.msk [vmem:[#allocation4 + $0xd8] sm:$0xf] %vm1113, %v1054
      %1133 = vst.msk [vmem:[#allocation4 + $0xe4] sm:$0xf] %vm1113, %v1056
      %1134 = vst.msk [vmem:[#allocation4 + $0xf0] sm:$0xf] %vm1113, %v1058
      %1135 = vst.msk [vmem:[#allocation4 + $0xfc] sm:$0xf] %vm1113, %v1060
      %1136 = vst.msk [vmem:[#allocation4 + $0x108] sm:$0xf] %vm1113, %v1062
      %1137 = vst.msk [vmem:[#allocation4 + $0x114] sm:$0xf] %vm1113, %v1064
      %1138 = vst.msk [vmem:[#allocation4 + $0x120] sm:$0xf] %vm1113, %v1066
      %1139 = vst.msk [vmem:[#allocation4 + $0x12c] sm:$0xf] %vm1113, %v1068
      %1140 = vst.msk [vmem:[#allocation4 + $0x138] sm:$0xf] %vm1113, %v1070
      %1141 = vst.msk [vmem:[#allocation4 + $0x144] sm:$0xf] %vm1113, %v1072
      %1142 = vst.msk [vmem:[#allocation4 + $0x150] sm:$0xf] %vm1113, %v1074
      %1143 = vst.msk [vmem:[#allocation4 + $0x15c] sm:$0xf] %vm1113, %v1076
      %1144 = vst.msk [vmem:[#allocation4 + $0x168] sm:$0xf] %vm1113, %v1078
      %1145 = vst.msk [vmem:[#allocation4 + $0x174] sm:$0xf] %vm1113, %v1080
      %v1146 = vld [vmem:[%s920 + $0x1] sm:$0xff]
      %v1147 = vld [vmem:[%s920 + $0x9] sm:$0xff]
      %v1148 = vld [vmem:[%s920 + $0x19] sm:$0xff]
      %v1149 = vld [vmem:[%s920 + $0x21] sm:$0xff]
      %v1150 = vld [vmem:[%s920 + $0x31] sm:$0xff]
      %v1151 = vld [vmem:[%s920 + $0x39] sm:$0xff]
      %v1152 = vld [vmem:[%s920 + $0x49] sm:$0xff]
      %v1153 = vld [vmem:[%s920 + $0x51] sm:$0xff]
      %v1154 = vld [vmem:[%s920 + $0x61] sm:$0xff]
      %v1155 = vld [vmem:[%s920 + $0x69] sm:$0xff]
      %v1156 = vld [vmem:[%s920 + $0x79] sm:$0xff]
      %v1157 = vld [vmem:[%s920 + $0x81] sm:$0xff]
      %v1158 = vld [vmem:[%s920 + $0x91] sm:$0xff]
      %v1159 = vld [vmem:[%s920 + $0x99] sm:$0xff]
      %v1160 = vld [vmem:[%s920 + $0xa9] sm:$0xff]
      %v1161 = vld [vmem:[%s920 + $0xb1] sm:$0xff]
      %v1162 = vld [vmem:[%s920 + $0xc1] sm:$0xff]
      %v1163 = vld [vmem:[%s920 + $0xc9] sm:$0xff]
      %v1164 = vld [vmem:[%s920 + $0xd9] sm:$0xff]
      %v1165 = vld [vmem:[%s920 + $0xe1] sm:$0xff]
      %v1166 = vld [vmem:[%s920 + $0xf1] sm:$0xff]
      %v1167 = vld [vmem:[%s920 + $0xf9] sm:$0xff]
      %v1168 = vld [vmem:[%s920 + $0x109] sm:$0xff]
      %v1169 = vld [vmem:[%s920 + $0x111] sm:$0xff]
      %v1170 = vld [vmem:[%s920 + $0x121] sm:$0xff]
      %v1171 = vld [vmem:[%s920 + $0x129] sm:$0xff]
      %v1172 = vld [vmem:[%s920 + $0x139] sm:$0xff]
      %v1173 = vld [vmem:[%s920 + $0x141] sm:$0xff]
      %v1174 = vld [vmem:[%s920 + $0x151] sm:$0xff]
      %v1175 = vld [vmem:[%s920 + $0x159] sm:$0xff]
      %v1176 = vld [vmem:[%s920 + $0x169] sm:$0xff]
      %v1177 = vld [vmem:[%s920 + $0x171] sm:$0xff]
      %v1178 = vpack.c.bf16 %v1146, %v1146
      %v1179 = vpack.c.bf16 %v1147, %v1147
      %v1180 = vpack.c.bf16 %v1148, %v1148
      %v1181 = vpack.c.bf16 %v1149, %v1149
      %v1182 = vpack.c.bf16 %v1150, %v1150
      %v1183 = vpack.c.bf16 %v1151, %v1151
      %v1184 = vpack.c.bf16 %v1152, %v1152
      %v1185 = vpack.c.bf16 %v1153, %v1153
      %v1186 = vpack.c.bf16 %v1154, %v1154
      %v1187 = vpack.c.bf16 %v1155, %v1155
      %v1188 = vpack.c.bf16 %v1156, %v1156
      %v1189 = vpack.c.bf16 %v1157, %v1157
      %v1190 = vpack.c.bf16 %v1158, %v1158
      %v1191 = vpack.c.bf16 %v1159, %v1159
      %v1192 = vpack.c.bf16 %v1160, %v1160
      %v1193 = vpack.c.bf16 %v1161, %v1161
      %v1194 = vpack.c.bf16 %v1162, %v1162
      %v1195 = vpack.c.bf16 %v1163, %v1163
      %v1196 = vpack.c.bf16 %v1164, %v1164
      %v1197 = vpack.c.bf16 %v1165, %v1165
      %v1198 = vpack.c.bf16 %v1166, %v1166
      %v1199 = vpack.c.bf16 %v1167, %v1167
      %v1200 = vpack.c.bf16 %v1168, %v1168
      %v1201 = vpack.c.bf16 %v1169, %v1169
      %v1202 = vpack.c.bf16 %v1170, %v1170
      %v1203 = vpack.c.bf16 %v1171, %v1171
      %v1204 = vpack.c.bf16 %v1172, %v1172
      %v1205 = vpack.c.bf16 %v1173, %v1173
      %v1206 = vpack.c.bf16 %v1174, %v1174
      %v1207 = vpack.c.bf16 %v1175, %v1175
      %v1208 = vpack.c.bf16 %v1176, %v1176
      %v1209 = vpack.c.bf16 %v1177, %v1177
      %1210 = vst.msk [vmem:[#allocation4 + $0x4] sm:$0xf] %vm437, %v1178
      %1211 = vst.msk [vmem:[#allocation4 + $0x10] sm:$0xf] %vm437, %v1179
      %1212 = vst.msk [vmem:[#allocation4 + $0x1c] sm:$0xf] %vm437, %v1180
      %1213 = vst.msk [vmem:[#allocation4 + $0x28] sm:$0xf] %vm437, %v1181
      %1214 = vst.msk [vmem:[#allocation4 + $0x34] sm:$0xf] %vm437, %v1182
      %1215 = vst.msk [vmem:[#allocation4 + $0x40] sm:$0xf] %vm437, %v1183
      %1216 = vst.msk [vmem:[#allocation4 + $0x4c] sm:$0xf] %vm437, %v1184
      %1217 = vst.msk [vmem:[#allocation4 + $0x58] sm:$0xf] %vm437, %v1185
      %1218 = vst.msk [vmem:[#allocation4 + $0x64] sm:$0xf] %vm437, %v1186
      %1219 = vst.msk [vmem:[#allocation4 + $0x70] sm:$0xf] %vm437, %v1187
      %1220 = vst.msk [vmem:[#allocation4 + $0x7c] sm:$0xf] %vm437, %v1188
      %1221 = vst.msk [vmem:[#allocation4 + $0x88] sm:$0xf] %vm437, %v1189
      %1222 = vst.msk [vmem:[#allocation4 + $0x94] sm:$0xf] %vm437, %v1190
      %1223 = vst.msk [vmem:[#allocation4 + $0xa0] sm:$0xf] %vm437, %v1191
      %1224 = vst.msk [vmem:[#allocation4 + $0xac] sm:$0xf] %vm437, %v1192
      %1225 = vst.msk [vmem:[#allocation4 + $0xb8] sm:$0xf] %vm437, %v1193
      %1226 = vst.msk [vmem:[#allocation4 + $0xc4] sm:$0xf] %vm437, %v1194
      %1227 = vst.msk [vmem:[#allocation4 + $0xd0] sm:$0xf] %vm437, %v1195
      %1228 = vst.msk [vmem:[#allocation4 + $0xdc] sm:$0xf] %vm437, %v1196
      %1229 = vst.msk [vmem:[#allocation4 + $0xe8] sm:$0xf] %vm437, %v1197
      %1230 = vst.msk [vmem:[#allocation4 + $0xf4] sm:$0xf] %vm437, %v1198
      %1231 = vst.msk [vmem:[#allocation4 + $0x100] sm:$0xf] %vm437, %v1199
      %1232 = vst.msk [vmem:[#allocation4 + $0x10c] sm:$0xf] %vm437, %v1200
      %1233 = vst.msk [vmem:[#allocation4 + $0x118] sm:$0xf] %vm437, %v1201
      %1234 = vst.msk [vmem:[#allocation4 + $0x124] sm:$0xf] %vm437, %v1202
      %1235 = vst.msk [vmem:[#allocation4 + $0x130] sm:$0xf] %vm437, %v1203
      %1236 = vst.msk [vmem:[#allocation4 + $0x13c] sm:$0xf] %vm437, %v1204
      %1237 = vst.msk [vmem:[#allocation4 + $0x148] sm:$0xf] %vm437, %v1205
      %1238 = vst.msk [vmem:[#allocation4 + $0x154] sm:$0xf] %vm437, %v1206
      %1239 = vst.msk [vmem:[#allocation4 + $0x160] sm:$0xf] %vm437, %v1207
      %1240 = vst.msk [vmem:[#allocation4 + $0x16c] sm:$0xf] %vm437, %v1208
      %1241 = vst.msk [vmem:[#allocation4 + $0x178] sm:$0xf] %vm437, %v1209
      %v1242 = vld [vmem:[%s920 + $0x2] sm:$0xff]
      %v1243 = vld [vmem:[%s920 + $0xa] sm:$0xff]
      %v1244 = vld [vmem:[%s920 + $0x1a] sm:$0xff]
      %v1245 = vld [vmem:[%s920 + $0x22] sm:$0xff]
      %v1246 = vld [vmem:[%s920 + $0x32] sm:$0xff]
      %v1247 = vld [vmem:[%s920 + $0x3a] sm:$0xff]
      %v1248 = vld [vmem:[%s920 + $0x4a] sm:$0xff]
      %v1249 = vld [vmem:[%s920 + $0x52] sm:$0xff]
      %v1250 = vld [vmem:[%s920 + $0x62] sm:$0xff]
      %v1251 = vld [vmem:[%s920 + $0x6a] sm:$0xff]
      %v1252 = vld [vmem:[%s920 + $0x7a] sm:$0xff]
      %v1253 = vld [vmem:[%s920 + $0x82] sm:$0xff]
      %v1254 = vld [vmem:[%s920 + $0x92] sm:$0xff]
      %v1255 = vld [vmem:[%s920 + $0x9a] sm:$0xff]
      %v1256 = vld [vmem:[%s920 + $0xaa] sm:$0xff]
      %v1257 = vld [vmem:[%s920 + $0xb2] sm:$0xff]
      %v1258 = vld [vmem:[%s920 + $0xc2] sm:$0xff]
      %v1259 = vld [vmem:[%s920 + $0xca] sm:$0xff]
      %v1260 = vld [vmem:[%s920 + $0xda] sm:$0xff]
      %v1261 = vld [vmem:[%s920 + $0xe2] sm:$0xff]
      %v1262 = vld [vmem:[%s920 + $0xf2] sm:$0xff]
      %v1263 = vld [vmem:[%s920 + $0xfa] sm:$0xff]
      %v1264 = vld [vmem:[%s920 + $0x10a] sm:$0xff]
      %v1265 = vld [vmem:[%s920 + $0x112] sm:$0xff]
      %v1266 = vld [vmem:[%s920 + $0x122] sm:$0xff]
      %v1267 = vld [vmem:[%s920 + $0x12a] sm:$0xff]
      %v1268 = vld [vmem:[%s920 + $0x13a] sm:$0xff]
      %v1269 = vld [vmem:[%s920 + $0x142] sm:$0xff]
      %v1270 = vld [vmem:[%s920 + $0x152] sm:$0xff]
      %v1271 = vld [vmem:[%s920 + $0x15a] sm:$0xff]
      %v1272 = vld [vmem:[%s920 + $0x16a] sm:$0xff]
      %v1273 = vld [vmem:[%s920 + $0x172] sm:$0xff]
      %v1274 = vpack.c.bf16 %v1242, %v1242
      %v1275 = vpack.c.bf16 %v1243, %v1243
      %v1276 = vpack.c.bf16 %v1244, %v1244
      %v1277 = vpack.c.bf16 %v1245, %v1245
      %v1278 = vpack.c.bf16 %v1246, %v1246
      %v1279 = vpack.c.bf16 %v1247, %v1247
      %v1280 = vpack.c.bf16 %v1248, %v1248
      %v1281 = vpack.c.bf16 %v1249, %v1249
      %v1282 = vpack.c.bf16 %v1250, %v1250
      %v1283 = vpack.c.bf16 %v1251, %v1251
      %v1284 = vpack.c.bf16 %v1252, %v1252
      %v1285 = vpack.c.bf16 %v1253, %v1253
      %v1286 = vpack.c.bf16 %v1254, %v1254
      %v1287 = vpack.c.bf16 %v1255, %v1255
      %v1288 = vpack.c.bf16 %v1256, %v1256
      %v1289 = vpack.c.bf16 %v1257, %v1257
      %v1290 = vpack.c.bf16 %v1258, %v1258
      %v1291 = vpack.c.bf16 %v1259, %v1259
      %v1292 = vpack.c.bf16 %v1260, %v1260
      %v1293 = vpack.c.bf16 %v1261, %v1261
      %v1294 = vpack.c.bf16 %v1262, %v1262
      %v1295 = vpack.c.bf16 %v1263, %v1263
      %v1296 = vpack.c.bf16 %v1264, %v1264
      %v1297 = vpack.c.bf16 %v1265, %v1265
      %v1298 = vpack.c.bf16 %v1266, %v1266
      %v1299 = vpack.c.bf16 %v1267, %v1267
      %v1300 = vpack.c.bf16 %v1268, %v1268
      %v1301 = vpack.c.bf16 %v1269, %v1269
      %v1302 = vpack.c.bf16 %v1270, %v1270
      %v1303 = vpack.c.bf16 %v1271, %v1271
      %v1304 = vpack.c.bf16 %v1272, %v1272
      %v1305 = vpack.c.bf16 %v1273, %v1273
      %1338 = vrot.lane.b32.xlu0 %v1274, 32
      %v1339 = vpop.permute.xlu0 %1338
      %1340 = vrot.lane.b32.xlu0 %v1275, 32
      %v1341 = vpop.permute.xlu0 %1340
      %1342 = vrot.lane.b32.xlu0 %v1276, 32
      %v1343 = vpop.permute.xlu0 %1342
      %1344 = vrot.lane.b32.xlu0 %v1277, 32
      %v1345 = vpop.permute.xlu0 %1344
      %1346 = vrot.lane.b32.xlu0 %v1278, 32
      %v1347 = vpop.permute.xlu0 %1346
      %1348 = vrot.lane.b32.xlu0 %v1279, 32
      %v1349 = vpop.permute.xlu0 %1348
      %1350 = vrot.lane.b32.xlu0 %v1280, 32
      %v1351 = vpop.permute.xlu0 %1350
      %1352 = vrot.lane.b32.xlu0 %v1281, 32
      %v1353 = vpop.permute.xlu0 %1352
      %1354 = vrot.lane.b32.xlu0 %v1282, 32
      %v1355 = vpop.permute.xlu0 %1354
      %1356 = vrot.lane.b32.xlu0 %v1283, 32
      %v1357 = vpop.permute.xlu0 %1356
      %1358 = vrot.lane.b32.xlu0 %v1284, 32
      %v1359 = vpop.permute.xlu0 %1358
      %1360 = vrot.lane.b32.xlu0 %v1285, 32
      %v1361 = vpop.permute.xlu0 %1360
      %1362 = vrot.lane.b32.xlu0 %v1286, 32
      %v1363 = vpop.permute.xlu0 %1362
      %1364 = vrot.lane.b32.xlu0 %v1287, 32
      %v1365 = vpop.permute.xlu0 %1364
      %1366 = vrot.lane.b32.xlu0 %v1288, 32
      %v1367 = vpop.permute.xlu0 %1366
      %1368 = vrot.lane.b32.xlu0 %v1289, 32
      %v1369 = vpop.permute.xlu0 %1368
      %1370 = vrot.lane.b32.xlu0 %v1290, 32
      %v1371 = vpop.permute.xlu0 %1370
      %1372 = vrot.lane.b32.xlu0 %v1291, 32
      %v1373 = vpop.permute.xlu0 %1372
      %1374 = vrot.lane.b32.xlu0 %v1292, 32
      %v1375 = vpop.permute.xlu0 %1374
      %1376 = vrot.lane.b32.xlu0 %v1293, 32
      %v1377 = vpop.permute.xlu0 %1376
      %1378 = vrot.lane.b32.xlu0 %v1294, 32
      %v1379 = vpop.permute.xlu0 %1378
      %1380 = vrot.lane.b32.xlu0 %v1295, 32
      %v1381 = vpop.permute.xlu0 %1380
      %1382 = vrot.lane.b32.xlu0 %v1296, 32
      %v1383 = vpop.permute.xlu0 %1382
      %1384 = vrot.lane.b32.xlu0 %v1297, 32
      %v1385 = vpop.permute.xlu0 %1384
      %1386 = vrot.lane.b32.xlu0 %v1298, 32
      %v1387 = vpop.permute.xlu0 %1386
      %1388 = vrot.lane.b32.xlu0 %v1299, 32
      %v1389 = vpop.permute.xlu0 %1388
      %1390 = vrot.lane.b32.xlu0 %v1300, 32
      %v1391 = vpop.permute.xlu0 %1390
      %1392 = vrot.lane.b32.xlu0 %v1301, 32
      %v1393 = vpop.permute.xlu0 %1392
      %1394 = vrot.lane.b32.xlu0 %v1302, 32
      %v1395 = vpop.permute.xlu0 %1394
      %1396 = vrot.lane.b32.xlu0 %v1303, 32
      %v1397 = vpop.permute.xlu0 %1396
      %1398 = vrot.lane.b32.xlu0 %v1304, 32
      %v1399 = vpop.permute.xlu0 %1398
      %1400 = vrot.lane.b32.xlu0 %v1305, 32
      %v1401 = vpop.permute.xlu0 %1400
      %1434 = vst.msk [vmem:[#allocation4 + $0x4] sm:$0xf] %vm662, %v1339
      %1435 = vst.msk [vmem:[#allocation4 + $0x10] sm:$0xf] %vm662, %v1341
      %1436 = vst.msk [vmem:[#allocation4 + $0x1c] sm:$0xf] %vm662, %v1343
      %1437 = vst.msk [vmem:[#allocation4 + $0x28] sm:$0xf] %vm662, %v1345
      %1438 = vst.msk [vmem:[#allocation4 + $0x34] sm:$0xf] %vm662, %v1347
      %1439 = vst.msk [vmem:[#allocation4 + $0x40] sm:$0xf] %vm662, %v1349
      %1440 = vst.msk [vmem:[#allocation4 + $0x4c] sm:$0xf] %vm662, %v1351
      %1441 = vst.msk [vmem:[#allocation4 + $0x58] sm:$0xf] %vm662, %v1353
      %1442 = vst.msk [vmem:[#allocation4 + $0x64] sm:$0xf] %vm662, %v1355
      %1443 = vst.msk [vmem:[#allocation4 + $0x70] sm:$0xf] %vm662, %v1357
      %1444 = vst.msk [vmem:[#allocation4 + $0x7c] sm:$0xf] %vm662, %v1359
      %1445 = vst.msk [vmem:[#allocation4 + $0x88] sm:$0xf] %vm662, %v1361
      %1446 = vst.msk [vmem:[#allocation4 + $0x94] sm:$0xf] %vm662, %v1363
      %1447 = vst.msk [vmem:[#allocation4 + $0xa0] sm:$0xf] %vm662, %v1365
      %1448 = vst.msk [vmem:[#allocation4 + $0xac] sm:$0xf] %vm662, %v1367
      %1449 = vst.msk [vmem:[#allocation4 + $0xb8] sm:$0xf] %vm662, %v1369
      %1450 = vst.msk [vmem:[#allocation4 + $0xc4] sm:$0xf] %vm662, %v1371
      %1451 = vst.msk [vmem:[#allocation4 + $0xd0] sm:$0xf] %vm662, %v1373
      %1452 = vst.msk [vmem:[#allocation4 + $0xdc] sm:$0xf] %vm662, %v1375
      %1453 = vst.msk [vmem:[#allocation4 + $0xe8] sm:$0xf] %vm662, %v1377
      %1454 = vst.msk [vmem:[#allocation4 + $0xf4] sm:$0xf] %vm662, %v1379
      %1455 = vst.msk [vmem:[#allocation4 + $0x100] sm:$0xf] %vm662, %v1381
      %1456 = vst.msk [vmem:[#allocation4 + $0x10c] sm:$0xf] %vm662, %v1383
      %1457 = vst.msk [vmem:[#allocation4 + $0x118] sm:$0xf] %vm662, %v1385
      %1458 = vst.msk [vmem:[#allocation4 + $0x124] sm:$0xf] %vm662, %v1387
      %1459 = vst.msk [vmem:[#allocation4 + $0x130] sm:$0xf] %vm662, %v1389
      %1460 = vst.msk [vmem:[#allocation4 + $0x13c] sm:$0xf] %vm662, %v1391
      %1461 = vst.msk [vmem:[#allocation4 + $0x148] sm:$0xf] %vm662, %v1393
      %1462 = vst.msk [vmem:[#allocation4 + $0x154] sm:$0xf] %vm662, %v1395
      %1463 = vst.msk [vmem:[#allocation4 + $0x160] sm:$0xf] %vm662, %v1397
      %1464 = vst.msk [vmem:[#allocation4 + $0x16c] sm:$0xf] %vm662, %v1399
      %1465 = vst.msk [vmem:[#allocation4 + $0x178] sm:$0xf] %vm662, %v1401
      %s1466 = scalar_lea.vmem [#allocation2], 48
      %v1467 = vld [vmem:[%s1466] sm:$0xff]
      %v1468 = vld [vmem:[%s1466 + $0x8] sm:$0xff]
      %v1469 = vld [vmem:[%s1466 + $0x18] sm:$0xff]
      %v1470 = vld [vmem:[%s1466 + $0x20] sm:$0xff]
      %v1471 = vld [vmem:[%s1466 + $0x30] sm:$0xff]
      %v1472 = vld [vmem:[%s1466 + $0x38] sm:$0xff]
      %v1473 = vld [vmem:[%s1466 + $0x48] sm:$0xff]
      %v1474 = vld [vmem:[%s1466 + $0x50] sm:$0xff]
      %v1475 = vld [vmem:[%s1466 + $0x60] sm:$0xff]
      %v1476 = vld [vmem:[%s1466 + $0x68] sm:$0xff]
      %v1477 = vld [vmem:[%s1466 + $0x78] sm:$0xff]
      %v1478 = vld [vmem:[%s1466 + $0x80] sm:$0xff]
      %v1479 = vld [vmem:[%s1466 + $0x90] sm:$0xff]
      %v1480 = vld [vmem:[%s1466 + $0x98] sm:$0xff]
      %v1481 = vld [vmem:[%s1466 + $0xa8] sm:$0xff]
      %v1482 = vld [vmem:[%s1466 + $0xb0] sm:$0xff]
      %v1483 = vld [vmem:[%s1466 + $0xc0] sm:$0xff]
      %v1484 = vld [vmem:[%s1466 + $0xc8] sm:$0xff]
      %v1485 = vld [vmem:[%s1466 + $0xd8] sm:$0xff]
      %v1486 = vld [vmem:[%s1466 + $0xe0] sm:$0xff]
      %v1487 = vld [vmem:[%s1466 + $0xf0] sm:$0xff]
      %v1488 = vld [vmem:[%s1466 + $0xf8] sm:$0xff]
      %v1489 = vld [vmem:[%s1466 + $0x108] sm:$0xff]
      %v1490 = vld [vmem:[%s1466 + $0x110] sm:$0xff]
      %v1491 = vld [vmem:[%s1466 + $0x120] sm:$0xff]
      %v1492 = vld [vmem:[%s1466 + $0x128] sm:$0xff]
      %v1493 = vld [vmem:[%s1466 + $0x138] sm:$0xff]
      %v1494 = vld [vmem:[%s1466 + $0x140] sm:$0xff]
      %v1495 = vld [vmem:[%s1466 + $0x150] sm:$0xff]
      %v1496 = vld [vmem:[%s1466 + $0x158] sm:$0xff]
      %v1497 = vld [vmem:[%s1466 + $0x168] sm:$0xff]
      %v1498 = vld [vmem:[%s1466 + $0x170] sm:$0xff]
      %v1499 = vpack.c.bf16 %v1467, %v1467
      %v1500 = vpack.c.bf16 %v1468, %v1468
      %v1501 = vpack.c.bf16 %v1469, %v1469
      %v1502 = vpack.c.bf16 %v1470, %v1470
      %v1503 = vpack.c.bf16 %v1471, %v1471
      %v1504 = vpack.c.bf16 %v1472, %v1472
      %v1505 = vpack.c.bf16 %v1473, %v1473
      %v1506 = vpack.c.bf16 %v1474, %v1474
      %v1507 = vpack.c.bf16 %v1475, %v1475
      %v1508 = vpack.c.bf16 %v1476, %v1476
      %v1509 = vpack.c.bf16 %v1477, %v1477
      %v1510 = vpack.c.bf16 %v1478, %v1478
      %v1511 = vpack.c.bf16 %v1479, %v1479
      %v1512 = vpack.c.bf16 %v1480, %v1480
      %v1513 = vpack.c.bf16 %v1481, %v1481
      %v1514 = vpack.c.bf16 %v1482, %v1482
      %v1515 = vpack.c.bf16 %v1483, %v1483
      %v1516 = vpack.c.bf16 %v1484, %v1484
      %v1517 = vpack.c.bf16 %v1485, %v1485
      %v1518 = vpack.c.bf16 %v1486, %v1486
      %v1519 = vpack.c.bf16 %v1487, %v1487
      %v1520 = vpack.c.bf16 %v1488, %v1488
      %v1521 = vpack.c.bf16 %v1489, %v1489
      %v1522 = vpack.c.bf16 %v1490, %v1490
      %v1523 = vpack.c.bf16 %v1491, %v1491
      %v1524 = vpack.c.bf16 %v1492, %v1492
      %v1525 = vpack.c.bf16 %v1493, %v1493
      %v1526 = vpack.c.bf16 %v1494, %v1494
      %v1527 = vpack.c.bf16 %v1495, %v1495
      %v1528 = vpack.c.bf16 %v1496, %v1496
      %v1529 = vpack.c.bf16 %v1497, %v1497
      %v1530 = vpack.c.bf16 %v1498, %v1498
      %1563 = vrot.lane.b32.xlu0 %v1499, 64
      %v1564 = vpop.permute.xlu0 %1563
      %1565 = vrot.lane.b32.xlu0 %v1500, 64
      %v1566 = vpop.permute.xlu0 %1565
      %1567 = vrot.lane.b32.xlu0 %v1501, 64
      %v1568 = vpop.permute.xlu0 %1567
      %1569 = vrot.lane.b32.xlu0 %v1502, 64
      %v1570 = vpop.permute.xlu0 %1569
      %1571 = vrot.lane.b32.xlu0 %v1503, 64
      %v1572 = vpop.permute.xlu0 %1571
      %1573 = vrot.lane.b32.xlu0 %v1504, 64
      %v1574 = vpop.permute.xlu0 %1573
      %1575 = vrot.lane.b32.xlu0 %v1505, 64
      %v1576 = vpop.permute.xlu0 %1575
      %1577 = vrot.lane.b32.xlu0 %v1506, 64
      %v1578 = vpop.permute.xlu0 %1577
      %1579 = vrot.lane.b32.xlu0 %v1507, 64
      %v1580 = vpop.permute.xlu0 %1579
      %1581 = vrot.lane.b32.xlu0 %v1508, 64
      %v1582 = vpop.permute.xlu0 %1581
      %1583 = vrot.lane.b32.xlu0 %v1509, 64
      %v1584 = vpop.permute.xlu0 %1583
      %1585 = vrot.lane.b32.xlu0 %v1510, 64
      %v1586 = vpop.permute.xlu0 %1585
      %1587 = vrot.lane.b32.xlu0 %v1511, 64
      %v1588 = vpop.permute.xlu0 %1587
      %1589 = vrot.lane.b32.xlu0 %v1512, 64
      %v1590 = vpop.permute.xlu0 %1589
      %1591 = vrot.lane.b32.xlu0 %v1513, 64
      %v1592 = vpop.permute.xlu0 %1591
      %1593 = vrot.lane.b32.xlu0 %v1514, 64
      %v1594 = vpop.permute.xlu0 %1593
      %1595 = vrot.lane.b32.xlu0 %v1515, 64
      %v1596 = vpop.permute.xlu0 %1595
      %1597 = vrot.lane.b32.xlu0 %v1516, 64
      %v1598 = vpop.permute.xlu0 %1597
      %1599 = vrot.lane.b32.xlu0 %v1517, 64
      %v1600 = vpop.permute.xlu0 %1599
      %1601 = vrot.lane.b32.xlu0 %v1518, 64
      %v1602 = vpop.permute.xlu0 %1601
      %1603 = vrot.lane.b32.xlu0 %v1519, 64
      %v1604 = vpop.permute.xlu0 %1603
      %1605 = vrot.lane.b32.xlu0 %v1520, 64
      %v1606 = vpop.permute.xlu0 %1605
      %1607 = vrot.lane.b32.xlu0 %v1521, 64
      %v1608 = vpop.permute.xlu0 %1607
      %1609 = vrot.lane.b32.xlu0 %v1522, 64
      %v1610 = vpop.permute.xlu0 %1609
      %1611 = vrot.lane.b32.xlu0 %v1523, 64
      %v1612 = vpop.permute.xlu0 %1611
      %1613 = vrot.lane.b32.xlu0 %v1524, 64
      %v1614 = vpop.permute.xlu0 %1613
      %1615 = vrot.lane.b32.xlu0 %v1525, 64
      %v1616 = vpop.permute.xlu0 %1615
      %1617 = vrot.lane.b32.xlu0 %v1526, 64
      %v1618 = vpop.permute.xlu0 %1617
      %1619 = vrot.lane.b32.xlu0 %v1527, 64
      %v1620 = vpop.permute.xlu0 %1619
      %1621 = vrot.lane.b32.xlu0 %v1528, 64
      %v1622 = vpop.permute.xlu0 %1621
      %1623 = vrot.lane.b32.xlu0 %v1529, 64
      %v1624 = vpop.permute.xlu0 %1623
      %1625 = vrot.lane.b32.xlu0 %v1530, 64
      %v1626 = vpop.permute.xlu0 %1625
      %1659 = vst.msk [vmem:[#allocation4 + $0x4] sm:$0xf] %vm887, %v1564
      %1660 = vst.msk [vmem:[#allocation4 + $0x10] sm:$0xf] %vm887, %v1566
      %1661 = vst.msk [vmem:[#allocation4 + $0x1c] sm:$0xf] %vm887, %v1568
      %1662 = vst.msk [vmem:[#allocation4 + $0x28] sm:$0xf] %vm887, %v1570
      %1663 = vst.msk [vmem:[#allocation4 + $0x34] sm:$0xf] %vm887, %v1572
      %1664 = vst.msk [vmem:[#allocation4 + $0x40] sm:$0xf] %vm887, %v1574
      %1665 = vst.msk [vmem:[#allocation4 + $0x4c] sm:$0xf] %vm887, %v1576
      %1666 = vst.msk [vmem:[#allocation4 + $0x58] sm:$0xf] %vm887, %v1578
      %1667 = vst.msk [vmem:[#allocation4 + $0x64] sm:$0xf] %vm887, %v1580
      %1668 = vst.msk [vmem:[#allocation4 + $0x70] sm:$0xf] %vm887, %v1582
      %1669 = vst.msk [vmem:[#allocation4 + $0x7c] sm:$0xf] %vm887, %v1584
      %1670 = vst.msk [vmem:[#allocation4 + $0x88] sm:$0xf] %vm887, %v1586
      %1671 = vst.msk [vmem:[#allocation4 + $0x94] sm:$0xf] %vm887, %v1588
      %1672 = vst.msk [vmem:[#allocation4 + $0xa0] sm:$0xf] %vm887, %v1590
      %1673 = vst.msk [vmem:[#allocation4 + $0xac] sm:$0xf] %vm887, %v1592
      %1674 = vst.msk [vmem:[#allocation4 + $0xb8] sm:$0xf] %vm887, %v1594
      %1675 = vst.msk [vmem:[#allocation4 + $0xc4] sm:$0xf] %vm887, %v1596
      %1676 = vst.msk [vmem:[#allocation4 + $0xd0] sm:$0xf] %vm887, %v1598
      %1677 = vst.msk [vmem:[#allocation4 + $0xdc] sm:$0xf] %vm887, %v1600
      %1678 = vst.msk [vmem:[#allocation4 + $0xe8] sm:$0xf] %vm887, %v1602
      %1679 = vst.msk [vmem:[#allocation4 + $0xf4] sm:$0xf] %vm887, %v1604
      %1680 = vst.msk [vmem:[#allocation4 + $0x100] sm:$0xf] %vm887, %v1606
      %1681 = vst.msk [vmem:[#allocation4 + $0x10c] sm:$0xf] %vm887, %v1608
      %1682 = vst.msk [vmem:[#allocation4 + $0x118] sm:$0xf] %vm887, %v1610
      %1683 = vst.msk [vmem:[#allocation4 + $0x124] sm:$0xf] %vm887, %v1612
      %1684 = vst.msk [vmem:[#allocation4 + $0x130] sm:$0xf] %vm887, %v1614
      %1685 = vst.msk [vmem:[#allocation4 + $0x13c] sm:$0xf] %vm887, %v1616
      %1686 = vst.msk [vmem:[#allocation4 + $0x148] sm:$0xf] %vm887, %v1618
      %1687 = vst.msk [vmem:[#allocation4 + $0x154] sm:$0xf] %vm887, %v1620
      %1688 = vst.msk [vmem:[#allocation4 + $0x160] sm:$0xf] %vm887, %v1622
      %1689 = vst.msk [vmem:[#allocation4 + $0x16c] sm:$0xf] %vm887, %v1624
      %1690 = vst.msk [vmem:[#allocation4 + $0x178] sm:$0xf] %vm887, %v1626
      %v1691 = vld [vmem:[%s1466 + $0x1] sm:$0xff]
      %v1692 = vld [vmem:[%s1466 + $0x9] sm:$0xff]
      %v1693 = vld [vmem:[%s1466 + $0x19] sm:$0xff]
      %v1694 = vld [vmem:[%s1466 + $0x21] sm:$0xff]
      %v1695 = vld [vmem:[%s1466 + $0x31] sm:$0xff]
      %v1696 = vld [vmem:[%s1466 + $0x39] sm:$0xff]
      %v1697 = vld [vmem:[%s1466 + $0x49] sm:$0xff]
      %v1698 = vld [vmem:[%s1466 + $0x51] sm:$0xff]
      %v1699 = vld [vmem:[%s1466 + $0x61] sm:$0xff]
      %v1700 = vld [vmem:[%s1466 + $0x69] sm:$0xff]
      %v1701 = vld [vmem:[%s1466 + $0x79] sm:$0xff]
      %v1702 = vld [vmem:[%s1466 + $0x81] sm:$0xff]
      %v1703 = vld [vmem:[%s1466 + $0x91] sm:$0xff]
      %v1704 = vld [vmem:[%s1466 + $0x99] sm:$0xff]
      %v1705 = vld [vmem:[%s1466 + $0xa9] sm:$0xff]
      %v1706 = vld [vmem:[%s1466 + $0xb1] sm:$0xff]
      %v1707 = vld [vmem:[%s1466 + $0xc1] sm:$0xff]
      %v1708 = vld [vmem:[%s1466 + $0xc9] sm:$0xff]
      %v1709 = vld [vmem:[%s1466 + $0xd9] sm:$0xff]
      %v1710 = vld [vmem:[%s1466 + $0xe1] sm:$0xff]
      %v1711 = vld [vmem:[%s1466 + $0xf1] sm:$0xff]
      %v1712 = vld [vmem:[%s1466 + $0xf9] sm:$0xff]
      %v1713 = vld [vmem:[%s1466 + $0x109] sm:$0xff]
      %v1714 = vld [vmem:[%s1466 + $0x111] sm:$0xff]
      %v1715 = vld [vmem:[%s1466 + $0x121] sm:$0xff]
      %v1716 = vld [vmem:[%s1466 + $0x129] sm:$0xff]
      %v1717 = vld [vmem:[%s1466 + $0x139] sm:$0xff]
      %v1718 = vld [vmem:[%s1466 + $0x141] sm:$0xff]
      %v1719 = vld [vmem:[%s1466 + $0x151] sm:$0xff]
      %v1720 = vld [vmem:[%s1466 + $0x159] sm:$0xff]
      %v1721 = vld [vmem:[%s1466 + $0x169] sm:$0xff]
      %v1722 = vld [vmem:[%s1466 + $0x171] sm:$0xff]
      %v1723 = vpack.c.bf16 %v1691, %v1691
      %v1724 = vpack.c.bf16 %v1692, %v1692
      %v1725 = vpack.c.bf16 %v1693, %v1693
      %v1726 = vpack.c.bf16 %v1694, %v1694
      %v1727 = vpack.c.bf16 %v1695, %v1695
      %v1728 = vpack.c.bf16 %v1696, %v1696
      %v1729 = vpack.c.bf16 %v1697, %v1697
      %v1730 = vpack.c.bf16 %v1698, %v1698
      %v1731 = vpack.c.bf16 %v1699, %v1699
      %v1732 = vpack.c.bf16 %v1700, %v1700
      %v1733 = vpack.c.bf16 %v1701, %v1701
      %v1734 = vpack.c.bf16 %v1702, %v1702
      %v1735 = vpack.c.bf16 %v1703, %v1703
      %v1736 = vpack.c.bf16 %v1704, %v1704
      %v1737 = vpack.c.bf16 %v1705, %v1705
      %v1738 = vpack.c.bf16 %v1706, %v1706
      %v1739 = vpack.c.bf16 %v1707, %v1707
      %v1740 = vpack.c.bf16 %v1708, %v1708
      %v1741 = vpack.c.bf16 %v1709, %v1709
      %v1742 = vpack.c.bf16 %v1710, %v1710
      %v1743 = vpack.c.bf16 %v1711, %v1711
      %v1744 = vpack.c.bf16 %v1712, %v1712
      %v1745 = vpack.c.bf16 %v1713, %v1713
      %v1746 = vpack.c.bf16 %v1714, %v1714
      %v1747 = vpack.c.bf16 %v1715, %v1715
      %v1748 = vpack.c.bf16 %v1716, %v1716
      %v1749 = vpack.c.bf16 %v1717, %v1717
      %v1750 = vpack.c.bf16 %v1718, %v1718
      %v1751 = vpack.c.bf16 %v1719, %v1719
      %v1752 = vpack.c.bf16 %v1720, %v1720
      %v1753 = vpack.c.bf16 %v1721, %v1721
      %v1754 = vpack.c.bf16 %v1722, %v1722
      %1787 = vrot.lane.b32.xlu0 %v1723, 96
      %v1788 = vpop.permute.xlu0 %1787
      %1789 = vrot.lane.b32.xlu0 %v1724, 96
      %v1790 = vpop.permute.xlu0 %1789
      %1791 = vrot.lane.b32.xlu0 %v1725, 96
      %v1792 = vpop.permute.xlu0 %1791
      %1793 = vrot.lane.b32.xlu0 %v1726, 96
      %v1794 = vpop.permute.xlu0 %1793
      %1795 = vrot.lane.b32.xlu0 %v1727, 96
      %v1796 = vpop.permute.xlu0 %1795
      %1797 = vrot.lane.b32.xlu0 %v1728, 96
      %v1798 = vpop.permute.xlu0 %1797
      %1799 = vrot.lane.b32.xlu0 %v1729, 96
      %v1800 = vpop.permute.xlu0 %1799
      %1801 = vrot.lane.b32.xlu0 %v1730, 96
      %v1802 = vpop.permute.xlu0 %1801
      %1803 = vrot.lane.b32.xlu0 %v1731, 96
      %v1804 = vpop.permute.xlu0 %1803
      %1805 = vrot.lane.b32.xlu0 %v1732, 96
      %v1806 = vpop.permute.xlu0 %1805
      %1807 = vrot.lane.b32.xlu0 %v1733, 96
      %v1808 = vpop.permute.xlu0 %1807
      %1809 = vrot.lane.b32.xlu0 %v1734, 96
      %v1810 = vpop.permute.xlu0 %1809
      %1811 = vrot.lane.b32.xlu0 %v1735, 96
      %v1812 = vpop.permute.xlu0 %1811
      %1813 = vrot.lane.b32.xlu0 %v1736, 96
      %v1814 = vpop.permute.xlu0 %1813
      %1815 = vrot.lane.b32.xlu0 %v1737, 96
      %v1816 = vpop.permute.xlu0 %1815
      %1817 = vrot.lane.b32.xlu0 %v1738, 96
      %v1818 = vpop.permute.xlu0 %1817
      %1819 = vrot.lane.b32.xlu0 %v1739, 96
      %v1820 = vpop.permute.xlu0 %1819
      %1821 = vrot.lane.b32.xlu0 %v1740, 96
      %v1822 = vpop.permute.xlu0 %1821
      %1823 = vrot.lane.b32.xlu0 %v1741, 96
      %v1824 = vpop.permute.xlu0 %1823
      %1825 = vrot.lane.b32.xlu0 %v1742, 96
      %v1826 = vpop.permute.xlu0 %1825
      %1827 = vrot.lane.b32.xlu0 %v1743, 96
      %v1828 = vpop.permute.xlu0 %1827
      %1829 = vrot.lane.b32.xlu0 %v1744, 96
      %v1830 = vpop.permute.xlu0 %1829
      %1831 = vrot.lane.b32.xlu0 %v1745, 96
      %v1832 = vpop.permute.xlu0 %1831
      %1833 = vrot.lane.b32.xlu0 %v1746, 96
      %v1834 = vpop.permute.xlu0 %1833
      %1835 = vrot.lane.b32.xlu0 %v1747, 96
      %v1836 = vpop.permute.xlu0 %1835
      %1837 = vrot.lane.b32.xlu0 %v1748, 96
      %v1838 = vpop.permute.xlu0 %1837
      %1839 = vrot.lane.b32.xlu0 %v1749, 96
      %v1840 = vpop.permute.xlu0 %1839
      %1841 = vrot.lane.b32.xlu0 %v1750, 96
      %v1842 = vpop.permute.xlu0 %1841
      %1843 = vrot.lane.b32.xlu0 %v1751, 96
      %v1844 = vpop.permute.xlu0 %1843
      %1845 = vrot.lane.b32.xlu0 %v1752, 96
      %v1846 = vpop.permute.xlu0 %1845
      %1847 = vrot.lane.b32.xlu0 %v1753, 96
      %v1848 = vpop.permute.xlu0 %1847
      %1849 = vrot.lane.b32.xlu0 %v1754, 96
      %v1850 = vpop.permute.xlu0 %1849
      %1883 = vst.msk [vmem:[#allocation4 + $0x4] sm:$0xf] %vm1113, %v1788
      %1884 = vst.msk [vmem:[#allocation4 + $0x10] sm:$0xf] %vm1113, %v1790
      %1885 = vst.msk [vmem:[#allocation4 + $0x1c] sm:$0xf] %vm1113, %v1792
      %1886 = vst.msk [vmem:[#allocation4 + $0x28] sm:$0xf] %vm1113, %v1794
      %1887 = vst.msk [vmem:[#allocation4 + $0x34] sm:$0xf] %vm1113, %v1796
      %1888 = vst.msk [vmem:[#allocation4 + $0x40] sm:$0xf] %vm1113, %v1798
      %1889 = vst.msk [vmem:[#allocation4 + $0x4c] sm:$0xf] %vm1113, %v1800
      %1890 = vst.msk [vmem:[#allocation4 + $0x58] sm:$0xf] %vm1113, %v1802
      %1891 = vst.msk [vmem:[#allocation4 + $0x64] sm:$0xf] %vm1113, %v1804
      %1892 = vst.msk [vmem:[#allocation4 + $0x70] sm:$0xf] %vm1113, %v1806
      %1893 = vst.msk [vmem:[#allocation4 + $0x7c] sm:$0xf] %vm1113, %v1808
      %1894 = vst.msk [vmem:[#allocation4 + $0x88] sm:$0xf] %vm1113, %v1810
      %1895 = vst.msk [vmem:[#allocation4 + $0x94] sm:$0xf] %vm1113, %v1812
      %1896 = vst.msk [vmem:[#allocation4 + $0xa0] sm:$0xf] %vm1113, %v1814
      %1897 = vst.msk [vmem:[#allocation4 + $0xac] sm:$0xf] %vm1113, %v1816
      %1898 = vst.msk [vmem:[#allocation4 + $0xb8] sm:$0xf] %vm1113, %v1818
      %1899 = vst.msk [vmem:[#allocation4 + $0xc4] sm:$0xf] %vm1113, %v1820
      %1900 = vst.msk [vmem:[#allocation4 + $0xd0] sm:$0xf] %vm1113, %v1822
      %1901 = vst.msk [vmem:[#allocation4 + $0xdc] sm:$0xf] %vm1113, %v1824
      %1902 = vst.msk [vmem:[#allocation4 + $0xe8] sm:$0xf] %vm1113, %v1826
      %1903 = vst.msk [vmem:[#allocation4 + $0xf4] sm:$0xf] %vm1113, %v1828
      %1904 = vst.msk [vmem:[#allocation4 + $0x100] sm:$0xf] %vm1113, %v1830
      %1905 = vst.msk [vmem:[#allocation4 + $0x10c] sm:$0xf] %vm1113, %v1832
      %1906 = vst.msk [vmem:[#allocation4 + $0x118] sm:$0xf] %vm1113, %v1834
      %1907 = vst.msk [vmem:[#allocation4 + $0x124] sm:$0xf] %vm1113, %v1836
      %1908 = vst.msk [vmem:[#allocation4 + $0x130] sm:$0xf] %vm1113, %v1838
      %1909 = vst.msk [vmem:[#allocation4 + $0x13c] sm:$0xf] %vm1113, %v1840
      %1910 = vst.msk [vmem:[#allocation4 + $0x148] sm:$0xf] %vm1113, %v1842
      %1911 = vst.msk [vmem:[#allocation4 + $0x154] sm:$0xf] %vm1113, %v1844
      %1912 = vst.msk [vmem:[#allocation4 + $0x160] sm:$0xf] %vm1113, %v1846
      %1913 = vst.msk [vmem:[#allocation4 + $0x16c] sm:$0xf] %vm1113, %v1848
      %1914 = vst.msk [vmem:[#allocation4 + $0x178] sm:$0xf] %vm1113, %v1850
      %v1915 = vld [vmem:[%s1466 + $0x2] sm:$0xff]
      %v1916 = vld [vmem:[%s1466 + $0xa] sm:$0xff]
      %v1917 = vld [vmem:[%s1466 + $0x1a] sm:$0xff]
      %v1918 = vld [vmem:[%s1466 + $0x22] sm:$0xff]
      %v1919 = vld [vmem:[%s1466 + $0x32] sm:$0xff]
      %v1920 = vld [vmem:[%s1466 + $0x3a] sm:$0xff]
      %v1921 = vld [vmem:[%s1466 + $0x4a] sm:$0xff]
      %v1922 = vld [vmem:[%s1466 + $0x52] sm:$0xff]
      %v1923 = vld [vmem:[%s1466 + $0x62] sm:$0xff]
      %v1924 = vld [vmem:[%s1466 + $0x6a] sm:$0xff]
      %v1925 = vld [vmem:[%s1466 + $0x7a] sm:$0xff]
      %v1926 = vld [vmem:[%s1466 + $0x82] sm:$0xff]
      %v1927 = vld [vmem:[%s1466 + $0x92] sm:$0xff]
      %v1928 = vld [vmem:[%s1466 + $0x9a] sm:$0xff]
      %v1929 = vld [vmem:[%s1466 + $0xaa] sm:$0xff]
      %v1930 = vld [vmem:[%s1466 + $0xb2] sm:$0xff]
      %v1931 = vld [vmem:[%s1466 + $0xc2] sm:$0xff]
      %v1932 = vld [vmem:[%s1466 + $0xca] sm:$0xff]
      %v1933 = vld [vmem:[%s1466 + $0xda] sm:$0xff]
      %v1934 = vld [vmem:[%s1466 + $0xe2] sm:$0xff]
      %v1935 = vld [vmem:[%s1466 + $0xf2] sm:$0xff]
      %v1936 = vld [vmem:[%s1466 + $0xfa] sm:$0xff]
      %v1937 = vld [vmem:[%s1466 + $0x10a] sm:$0xff]
      %v1938 = vld [vmem:[%s1466 + $0x112] sm:$0xff]
      %v1939 = vld [vmem:[%s1466 + $0x122] sm:$0xff]
      %v1940 = vld [vmem:[%s1466 + $0x12a] sm:$0xff]
      %v1941 = vld [vmem:[%s1466 + $0x13a] sm:$0xff]
      %v1942 = vld [vmem:[%s1466 + $0x142] sm:$0xff]
      %v1943 = vld [vmem:[%s1466 + $0x152] sm:$0xff]
      %v1944 = vld [vmem:[%s1466 + $0x15a] sm:$0xff]
      %v1945 = vld [vmem:[%s1466 + $0x16a] sm:$0xff]
      %v1946 = vld [vmem:[%s1466 + $0x172] sm:$0xff]
      %v1947 = vpack.c.bf16 %v1915, %v1915
      %v1948 = vpack.c.bf16 %v1916, %v1916
      %v1949 = vpack.c.bf16 %v1917, %v1917
      %v1950 = vpack.c.bf16 %v1918, %v1918
      %v1951 = vpack.c.bf16 %v1919, %v1919
      %v1952 = vpack.c.bf16 %v1920, %v1920
      %v1953 = vpack.c.bf16 %v1921, %v1921
      %v1954 = vpack.c.bf16 %v1922, %v1922
      %v1955 = vpack.c.bf16 %v1923, %v1923
      %v1956 = vpack.c.bf16 %v1924, %v1924
      %v1957 = vpack.c.bf16 %v1925, %v1925
      %v1958 = vpack.c.bf16 %v1926, %v1926
      %v1959 = vpack.c.bf16 %v1927, %v1927
      %v1960 = vpack.c.bf16 %v1928, %v1928
      %v1961 = vpack.c.bf16 %v1929, %v1929
      %v1962 = vpack.c.bf16 %v1930, %v1930
      %v1963 = vpack.c.bf16 %v1931, %v1931
      %v1964 = vpack.c.bf16 %v1932, %v1932
      %v1965 = vpack.c.bf16 %v1933, %v1933
      %v1966 = vpack.c.bf16 %v1934, %v1934
      %v1967 = vpack.c.bf16 %v1935, %v1935
      %v1968 = vpack.c.bf16 %v1936, %v1936
      %v1969 = vpack.c.bf16 %v1937, %v1937
      %v1970 = vpack.c.bf16 %v1938, %v1938
      %v1971 = vpack.c.bf16 %v1939, %v1939
      %v1972 = vpack.c.bf16 %v1940, %v1940
      %v1973 = vpack.c.bf16 %v1941, %v1941
      %v1974 = vpack.c.bf16 %v1942, %v1942
      %v1975 = vpack.c.bf16 %v1943, %v1943
      %v1976 = vpack.c.bf16 %v1944, %v1944
      %v1977 = vpack.c.bf16 %v1945, %v1945
      %v1978 = vpack.c.bf16 %v1946, %v1946
      %1979 = vst.msk [vmem:[#allocation4 + $0x8] sm:$0xf] %vm437, %v1947
      %1980 = vst.msk [vmem:[#allocation4 + $0x14] sm:$0xf] %vm437, %v1948
      %1981 = vst.msk [vmem:[#allocation4 + $0x20] sm:$0xf] %vm437, %v1949
      %1982 = vst.msk [vmem:[#allocation4 + $0x2c] sm:$0xf] %vm437, %v1950
      %1983 = vst.msk [vmem:[#allocation4 + $0x38] sm:$0xf] %vm437, %v1951
      %1984 = vst.msk [vmem:[#allocation4 + $0x44] sm:$0xf] %vm437, %v1952
      %1985 = vst.msk [vmem:[#allocation4 + $0x50] sm:$0xf] %vm437, %v1953
      %1986 = vst.msk [vmem:[#allocation4 + $0x5c] sm:$0xf] %vm437, %v1954
      %1987 = vst.msk [vmem:[#allocation4 + $0x68] sm:$0xf] %vm437, %v1955
      %1988 = vst.msk [vmem:[#allocation4 + $0x74] sm:$0xf] %vm437, %v1956
      %1989 = vst.msk [vmem:[#allocation4 + $0x80] sm:$0xf] %vm437, %v1957
      %1990 = vst.msk [vmem:[#allocation4 + $0x8c] sm:$0xf] %vm437, %v1958
      %1991 = vst.msk [vmem:[#allocation4 + $0x98] sm:$0xf] %vm437, %v1959
      %1992 = vst.msk [vmem:[#allocation4 + $0xa4] sm:$0xf] %vm437, %v1960
      %1993 = vst.msk [vmem:[#allocation4 + $0xb0] sm:$0xf] %vm437, %v1961
      %1994 = vst.msk [vmem:[#allocation4 + $0xbc] sm:$0xf] %vm437, %v1962
      %1995 = vst.msk [vmem:[#allocation4 + $0xc8] sm:$0xf] %vm437, %v1963
      %1996 = vst.msk [vmem:[#allocation4 + $0xd4] sm:$0xf] %vm437, %v1964
      %1997 = vst.msk [vmem:[#allocation4 + $0xe0] sm:$0xf] %vm437, %v1965
      %1998 = vst.msk [vmem:[#allocation4 + $0xec] sm:$0xf] %vm437, %v1966
      %1999 = vst.msk [vmem:[#allocation4 + $0xf8] sm:$0xf] %vm437, %v1967
      %2000 = vst.msk [vmem:[#allocation4 + $0x104] sm:$0xf] %vm437, %v1968
      %2001 = vst.msk [vmem:[#allocation4 + $0x110] sm:$0xf] %vm437, %v1969
      %2002 = vst.msk [vmem:[#allocation4 + $0x11c] sm:$0xf] %vm437, %v1970
      %2003 = vst.msk [vmem:[#allocation4 + $0x128] sm:$0xf] %vm437, %v1971
      %2004 = vst.msk [vmem:[#allocation4 + $0x134] sm:$0xf] %vm437, %v1972
      %2005 = vst.msk [vmem:[#allocation4 + $0x140] sm:$0xf] %vm437, %v1973
      %2006 = vst.msk [vmem:[#allocation4 + $0x14c] sm:$0xf] %vm437, %v1974
      %2007 = vst.msk [vmem:[#allocation4 + $0x158] sm:$0xf] %vm437, %v1975
      %2008 = vst.msk [vmem:[#allocation4 + $0x164] sm:$0xf] %vm437, %v1976
      %2009 = vst.msk [vmem:[#allocation4 + $0x170] sm:$0xf] %vm437, %v1977
      %2010 = vst.msk [vmem:[#allocation4 + $0x17c] sm:$0xf] %vm437, %v1978
      %v2011 = vld [vmem:[%s274] sm:$0xf]
      %v2012 = vld [vmem:[%s274 + $0x4] sm:$0xf]
      %v2013 = vld [vmem:[%s274 + $0x8] sm:$0xf]
      %v2014 = vld [vmem:[%s274 + $0xc] sm:$0xf]
      %v2015 = vld [vmem:[%s274 + $0x10] sm:$0xf]
      %v2016 = vld [vmem:[%s274 + $0x14] sm:$0xf]
      %v2017 = vld [vmem:[%s274 + $0x18] sm:$0xf]
      %v2018 = vld [vmem:[%s274 + $0x1c] sm:$0xf]
      %v2019 = vld [vmem:[%s274 + $0x20] sm:$0xf]
      %v2020 = vld [vmem:[%s274 + $0x24] sm:$0xf]
      %v2021 = vld [vmem:[%s274 + $0x28] sm:$0xf]
      %v2022 = vld [vmem:[%s274 + $0x2c] sm:$0xf]
      %v2023 = vld [vmem:[%s274 + $0x30] sm:$0xf]
      %v2024 = vld [vmem:[%s274 + $0x34] sm:$0xf]
      %v2025 = vld [vmem:[%s274 + $0x38] sm:$0xf]
      %v2026 = vld [vmem:[%s274 + $0x3c] sm:$0xf]
      %v2027 = vld [vmem:[#allocation4] sm:$0xff]
      %v2028 = vld [vmem:[#allocation4 + $0x8] sm:$0xf]
      %v2029 = vld [vmem:[#allocation4 + $0xc] sm:$0xff]
      %v2030 = vld [vmem:[#allocation4 + $0x14] sm:$0xf]
      %v2031 = vld [vmem:[#allocation4 + $0x18] sm:$0xff]
      %v2032 = vld [vmem:[#allocation4 + $0x20] sm:$0xf]
      %v2033 = vld [vmem:[#allocation4 + $0x24] sm:$0xff]
      %v2034 = vld [vmem:[#allocation4 + $0x2c] sm:$0xf]
      %v2035 = vld [vmem:[#allocation4 + $0x30] sm:$0xff]
      %v2036 = vld [vmem:[#allocation4 + $0x38] sm:$0xf]
      %v2037 = vld [vmem:[#allocation4 + $0x3c] sm:$0xff]
      %v2038 = vld [vmem:[#allocation4 + $0x44] sm:$0xf]
      %v2039 = vld [vmem:[#allocation4 + $0x48] sm:$0xff]
      %v2040 = vld [vmem:[#allocation4 + $0x50] sm:$0xf]
      %v2041 = vld [vmem:[#allocation4 + $0x54] sm:$0xff]
      %v2042 = vld [vmem:[#allocation4 + $0x5c] sm:$0xf]
      %v2043 = vld [vmem:[#allocation4 + $0x60] sm:$0xff]
      %v2044 = vld [vmem:[#allocation4 + $0x68] sm:$0xf]
      %v2045 = vld [vmem:[#allocation4 + $0x6c] sm:$0xff]
      %v2046 = vld [vmem:[#allocation4 + $0x74] sm:$0xf]
      %v2047 = vld [vmem:[#allocation4 + $0x78] sm:$0xff]
      %v2048 = vld [vmem:[#allocation4 + $0x80] sm:$0xf]
      %v2049 = vld [vmem:[#allocation4 + $0x84] sm:$0xff]
      %v2050 = vld [vmem:[#allocation4 + $0x8c] sm:$0xf]
      %v2051 = vld [vmem:[#allocation4 + $0x90] sm:$0xff]
      %v2052 = vld [vmem:[#allocation4 + $0x98] sm:$0xf]
      %v2053 = vld [vmem:[#allocation4 + $0x9c] sm:$0xff]
      %v2054 = vld [vmem:[#allocation4 + $0xa4] sm:$0xf]
      %v2055 = vld [vmem:[#allocation4 + $0xa8] sm:$0xff]
      %v2056 = vld [vmem:[#allocation4 + $0xb0] sm:$0xf]
      %v2057 = vld [vmem:[#allocation4 + $0xb4] sm:$0xff]
      %v2058 = vld [vmem:[#allocation4 + $0xbc] sm:$0xf]
      %v2059 = vld [vmem:[%s1] sm:$0xf]
      %v2060 = vld [vmem:[%s1 + $0x4] sm:$0xf]
      %v2061 = vld [vmem:[%s1 + $0x8] sm:$0xf]
      %v2062 = vld [vmem:[%s1 + $0xc] sm:$0xf]
      %v2063 = vld [vmem:[%s1 + $0x10] sm:$0x3]
      %v2064 = vld [vmem:[%s2] sm:$0xf]
      %v2065 = vld [vmem:[%s2 + $0x4] sm:$0xf]
      %v2066 = vld [vmem:[%s2 + $0x8] sm:$0xf]
      %v2067 = vld [vmem:[%s2 + $0xc] sm:$0xf]
      %v2068 = vld [vmem:[%s2 + $0x10] sm:$0xf]
      %v2069 = vld [vmem:[%s2 + $0x14] sm:$0xf]
      %v2070 = vld [vmem:[%s2 + $0x18] sm:$0xf]
      %v2071 = vld [vmem:[%s2 + $0x1c] sm:$0xf]
      %v2072 = vld [vmem:[%s2 + $0x20] sm:$0xf]
      %v2073 = vld [vmem:[%s2 + $0x24] sm:$0xf]
      %v2074 = vld [vmem:[%s2 + $0x28] sm:$0xf]
      %v2075 = vld [vmem:[%s2 + $0x2c] sm:$0xf]
      %v2076 = vld [vmem:[%s2 + $0x30] sm:$0xf]
      %v2077 = vld [vmem:[%s2 + $0x34] sm:$0xf]
      %v2078 = vld [vmem:[%s2 + $0x38] sm:$0xf]
      %v2079 = vld [vmem:[%s2 + $0x3c] sm:$0xf]
      %v2080 = vld [vmem:[%s2 + $0x40] sm:$0xf]
      %v2081 = vld [vmem:[%s2 + $0x44] sm:$0xf]
      %v2082 = vld [vmem:[%s2 + $0x48] sm:$0xf]
      %v2083 = vld [vmem:[%s2 + $0x4c] sm:$0xf]
      %v2084 = vld [vmem:[%s2 + $0x50] sm:$0xf]
      %v2085 = vld [vmem:[%s2 + $0x54] sm:$0xf]
      %v2086 = vld [vmem:[%s2 + $0x58] sm:$0xf]
      %v2087 = vld [vmem:[%s2 + $0x5c] sm:$0xf]
      %v2088 = vld [vmem:[%s2 + $0x60] sm:$0xf]
      %v2089 = vld [vmem:[%s2 + $0x64] sm:$0xf]
      %v2090 = vld [vmem:[%s2 + $0x68] sm:$0xf]
      %v2091 = vld [vmem:[%s2 + $0x6c] sm:$0xf]
      %v2092 = vld [vmem:[%s2 + $0x70] sm:$0xf]
      %v2093 = vld [vmem:[%s2 + $0x74] sm:$0xf]
      %v2094 = vld [vmem:[%s2 + $0x78] sm:$0xf]
      %v2095 = vld [vmem:[%s2 + $0x7c] sm:$0xf]
      %v2096 = vld [vmem:[%s2 + $0x80] sm:$0xf]
      %v2097 = vld [vmem:[%s2 + $0x84] sm:$0xf]
      %v2098 = vld [vmem:[%s2 + $0x88] sm:$0xf]
      %v2099 = vld [vmem:[%s2 + $0x8c] sm:$0xf]
      %v2132 = vunpack.c.l.b16 %v2027
      %v2133 = vunpack.c.h.b16 %v2027
      %v2134 = vunpack.c.l.b16 %v2028
      %v2135 = vunpack.c.l.b16 %v2029
      %v2136 = vunpack.c.h.b16 %v2029
      %v2137 = vunpack.c.l.b16 %v2030
      %v2138 = vunpack.c.l.b16 %v2031
      %v2139 = vunpack.c.h.b16 %v2031
      %v2140 = vunpack.c.l.b16 %v2032
      %v2141 = vunpack.c.l.b16 %v2033
      %v2142 = vunpack.c.h.b16 %v2033
      %v2143 = vunpack.c.l.b16 %v2034
      %v2144 = vunpack.c.l.b16 %v2035
      %v2145 = vunpack.c.h.b16 %v2035
      %v2146 = vunpack.c.l.b16 %v2036
      %v2147 = vunpack.c.l.b16 %v2037
      %v2148 = vunpack.c.h.b16 %v2037
      %v2149 = vunpack.c.l.b16 %v2038
      %v2150 = vunpack.c.l.b16 %v2039
      %v2151 = vunpack.c.h.b16 %v2039
      %v2152 = vunpack.c.l.b16 %v2040
      %v2153 = vunpack.c.l.b16 %v2041
      %v2154 = vunpack.c.h.b16 %v2041
      %v2155 = vunpack.c.l.b16 %v2042
      %v2156 = vunpack.c.l.b16 %v2043
      %v2157 = vunpack.c.h.b16 %v2043
      %v2158 = vunpack.c.l.b16 %v2044
      %v2159 = vunpack.c.l.b16 %v2045
      %v2160 = vunpack.c.h.b16 %v2045
      %v2161 = vunpack.c.l.b16 %v2046
      %v2162 = vunpack.c.l.b16 %v2047
      %v2163 = vunpack.c.h.b16 %v2047
      %v2164 = vunpack.c.l.b16 %v2048
      %v2165 = vunpack.c.l.b16 %v2049
      %v2166 = vunpack.c.h.b16 %v2049
      %v2167 = vunpack.c.l.b16 %v2050
      %v2168 = vunpack.c.l.b16 %v2051
      %v2169 = vunpack.c.h.b16 %v2051
      %v2170 = vunpack.c.l.b16 %v2052
      %v2171 = vunpack.c.l.b16 %v2053
      %v2172 = vunpack.c.h.b16 %v2053
      %v2173 = vunpack.c.l.b16 %v2054
      %v2174 = vunpack.c.l.b16 %v2055
      %v2175 = vunpack.c.h.b16 %v2055
      %v2176 = vunpack.c.l.b16 %v2056
      %v2177 = vunpack.c.l.b16 %v2057
      %v2178 = vunpack.c.h.b16 %v2057
      %v2179 = vunpack.c.l.b16 %v2058
      %v2180 = vpack.c.b16 %v2135, %v2132
      %v2181 = vpack.c.b16 %v2136, %v2133
      %v2182 = vpack.c.b16 %v2137, %v2134
      %v2183 = vpack.c.b16 %v2141, %v2138
      %v2184 = vpack.c.b16 %v2142, %v2139
      %v2185 = vpack.c.b16 %v2143, %v2140
      %v2186 = vpack.c.b16 %v2147, %v2144
      %v2187 = vpack.c.b16 %v2148, %v2145
      %v2188 = vpack.c.b16 %v2149, %v2146
      %v2189 = vpack.c.b16 %v2153, %v2150
      %v2190 = vpack.c.b16 %v2154, %v2151
      %v2191 = vpack.c.b16 %v2155, %v2152
      %v2192 = vpack.c.b16 %v2159, %v2156
      %v2193 = vpack.c.b16 %v2160, %v2157
      %v2194 = vpack.c.b16 %v2161, %v2158
      %v2195 = vpack.c.b16 %v2165, %v2162
      %v2196 = vpack.c.b16 %v2166, %v2163
      %v2197 = vpack.c.b16 %v2167, %v2164
      %v2198 = vpack.c.b16 %v2171, %v2168
      %v2199 = vpack.c.b16 %v2172, %v2169
      %v2200 = vpack.c.b16 %v2173, %v2170
      %v2201 = vpack.c.b16 %v2177, %v2174
      %v2202 = vpack.c.b16 %v2178, %v2175
      %v2203 = vpack.c.b16 %v2179, %v2176
      %v2256 = vunpack.c.l.b16 %v2064
      %v2257 = vunpack.c.l.b16 %v2065
      %v2258 = vunpack.c.l.b16 %v2066
      %v2259 = vunpack.c.l.b16 %v2067
      %v2260 = vunpack.c.l.b16 %v2068
      %v2261 = vunpack.c.l.b16 %v2069
      %v2262 = vunpack.c.l.b16 %v2070
      %v2263 = vunpack.c.l.b16 %v2071
      %v2264 = vunpack.c.l.b16 %v2072
      %v2265 = vunpack.c.l.b16 %v2073
      %v2266 = vunpack.c.l.b16 %v2074
      %v2267 = vunpack.c.l.b16 %v2075
      %v2268 = vunpack.c.l.b16 %v2076
      %v2269 = vunpack.c.l.b16 %v2077
      %v2270 = vunpack.c.l.b16 %v2078
      %v2271 = vunpack.c.l.b16 %v2079
      %v2272 = vunpack.c.l.b16 %v2080
      %v2273 = vunpack.c.l.b16 %v2081
      %v2274 = vunpack.c.l.b16 %v2082
      %v2275 = vunpack.c.l.b16 %v2083
      %v2276 = vunpack.c.l.b16 %v2084
      %v2277 = vunpack.c.l.b16 %v2085
      %v2278 = vunpack.c.l.b16 %v2086
      %v2279 = vunpack.c.l.b16 %v2087
      %v2280 = vunpack.c.l.b16 %v2088
      %v2281 = vunpack.c.l.b16 %v2089
      %v2282 = vunpack.c.l.b16 %v2090
      %v2283 = vunpack.c.l.b16 %v2091
      %v2284 = vunpack.c.l.b16 %v2092
      %v2285 = vunpack.c.l.b16 %v2093
      %v2286 = vunpack.c.l.b16 %v2094
      %v2287 = vunpack.c.l.b16 %v2095
      %v2288 = vunpack.c.l.b16 %v2096
      %v2289 = vunpack.c.l.b16 %v2097
      %v2290 = vunpack.c.l.b16 %v2098
      %v2291 = vunpack.c.l.b16 %v2099
      %v2292 = vpack.c.b16 %v2257, %v2256
      %v2293 = vpack.c.b16 %v2259, %v2258
      %v2294 = vpack.c.b16 %v2261, %v2260
      %v2295 = vpack.c.b16 %v2263, %v2262
      %v2296 = vpack.c.b16 %v2265, %v2264
      %v2297 = vpack.c.b16 %v2267, %v2266
      %v2298 = vpack.c.b16 %v2269, %v2268
      %v2299 = vpack.c.b16 %v2271, %v2270
      %v2300 = vpack.c.b16 %v2273, %v2272
      %v2301 = vpack.c.b16 %v2275, %v2274
      %v2302 = vpack.c.b16 %v2277, %v2276
      %v2303 = vpack.c.b16 %v2279, %v2278
      %v2304 = vpack.c.b16 %v2281, %v2280
      %v2305 = vpack.c.b16 %v2283, %v2282
      %v2306 = vpack.c.b16 %v2285, %v2284
      %v2307 = vpack.c.b16 %v2287, %v2286
      %v2308 = vpack.c.b16 %v2289, %v2288
      %v2309 = vpack.c.b16 %v2291, %v2290
      %vm2328 = vcmask 261120
      %v2330 = vsel %vm2328, %v2182, 0
      %v2333 = vsel %vm2328, %v2185, 0
      %v2336 = vsel %vm2328, %v2188, 0
      %v2339 = vsel %vm2328, %v2191, 0
      %v2342 = vsel %vm2328, %v2194, 0
      %v2345 = vsel %vm2328, %v2197, 0
      %v2348 = vsel %vm2328, %v2200, 0
      %v2351 = vsel %vm2328, %v2203, 0
      %2353 = vmatpush.bf16.msra.mxu0 %v2299
      %2354 = vmatpush.bf16.msra.mxu0 %v2298
      %2355 = vmatpush.bf16.msra.mxu0 %v2297
      %2356 = vmatpush.bf16.msra.mxu0 %v2296
      %2357 = vmatpush.bf16.msra.mxu0 %v2295
      %2358 = vmatpush.bf16.msra.mxu0 %v2294
      %2359 = vmatpush.bf16.msra.mxu0 %v2293
      %2360 = vmatpush.bf16.msra.mxu0 %v2292
      %2361 = vmatmul.bf16.gmra.mxu0 %v2180
      %v2362 = vpop.f32.mrf.mxu0
      %v2363 = vadd.f32 0.0, %v2362
      %v2364 = vpop.f32.mrf.mxu0
      %v2365 = vadd.f32 0.0, %v2364
      %2366 = vmatmul.bf16.gmra.mxu0 %v2183
      %v2367 = vpop.f32.mrf.mxu0
      %v2368 = vadd.f32 0.0, %v2367
      %v2369 = vpop.f32.mrf.mxu0
      %v2370 = vadd.f32 0.0, %v2369
      %2371 = vmatmul.bf16.gmra.mxu0 %v2186
      %v2372 = vpop.f32.mrf.mxu0
      %v2373 = vadd.f32 0.0, %v2372
      %v2374 = vpop.f32.mrf.mxu0
      %v2375 = vadd.f32 0.0, %v2374
      %2376 = vmatmul.bf16.gmra.mxu0 %v2189
      %v2377 = vpop.f32.mrf.mxu0
      %v2378 = vadd.f32 0.0, %v2377
      %v2379 = vpop.f32.mrf.mxu0
      %v2380 = vadd.f32 0.0, %v2379
      %2381 = vmatmul.bf16.gmra.mxu0 %v2192
      %v2382 = vpop.f32.mrf.mxu0
      %v2383 = vadd.f32 0.0, %v2382
      %v2384 = vpop.f32.mrf.mxu0
      %v2385 = vadd.f32 0.0, %v2384
      %2386 = vmatmul.bf16.gmra.mxu0 %v2195
      %v2387 = vpop.f32.mrf.mxu0
      %v2388 = vadd.f32 0.0, %v2387
      %v2389 = vpop.f32.mrf.mxu0
      %v2390 = vadd.f32 0.0, %v2389
      %2391 = vmatmul.bf16.gmra.mxu0 %v2198
      %v2392 = vpop.f32.mrf.mxu0
      %v2393 = vadd.f32 0.0, %v2392
      %v2394 = vpop.f32.mrf.mxu0
      %v2395 = vadd.f32 0.0, %v2394
      %2396 = vmatmul.bf16.gmra.mxu0 %v2201
      %v2397 = vpop.f32.mrf.mxu0
      %v2398 = vadd.f32 0.0, %v2397
      %v2399 = vpop.f32.mrf.mxu0
      %v2400 = vadd.f32 0.0, %v2399
      %2401 = vdwg.mxu0
      %2402 = vmatpush.bf16.msra.mxu0 %v2307
      %2403 = vmatpush.bf16.msra.mxu0 %v2306
      %2404 = vmatpush.bf16.msra.mxu0 %v2305
      %2405 = vmatpush.bf16.msra.mxu0 %v2304
      %2406 = vmatpush.bf16.msra.mxu0 %v2303
      %2407 = vmatpush.bf16.msra.mxu0 %v2302
      %2408 = vmatpush.bf16.msra.mxu0 %v2301
      %2409 = vmatpush.bf16.msra.mxu0 %v2300
      %2410 = vmatmul.bf16.gmra.mxu0 %v2181
      %v2411 = vpop.f32.mrf.mxu0
      %v2412 = vadd.f32 %v2363, %v2411
      %v2413 = vpop.f32.mrf.mxu0
      %v2414 = vadd.f32 %v2365, %v2413
      %2415 = vmatmul.bf16.gmra.mxu0 %v2184
      %v2416 = vpop.f32.mrf.mxu0
      %v2417 = vadd.f32 %v2368, %v2416
      %v2418 = vpop.f32.mrf.mxu0
      %v2419 = vadd.f32 %v2370, %v2418
      %2420 = vmatmul.bf16.gmra.mxu0 %v2187
      %v2421 = vpop.f32.mrf.mxu0
      %v2422 = vadd.f32 %v2373, %v2421
      %v2423 = vpop.f32.mrf.mxu0
      %v2424 = vadd.f32 %v2375, %v2423
      %2425 = vmatmul.bf16.gmra.mxu0 %v2190
      %v2426 = vpop.f32.mrf.mxu0
      %v2427 = vadd.f32 %v2378, %v2426
      %v2428 = vpop.f32.mrf.mxu0
      %v2429 = vadd.f32 %v2380, %v2428
      %2430 = vmatmul.bf16.gmra.mxu0 %v2193
      %v2431 = vpop.f32.mrf.mxu0
      %v2432 = vadd.f32 %v2383, %v2431
      %v2433 = vpop.f32.mrf.mxu0
      %v2434 = vadd.f32 %v2385, %v2433
      %2435 = vmatmul.bf16.gmra.mxu0 %v2196
      %v2436 = vpop.f32.mrf.mxu0
      %v2437 = vadd.f32 %v2388, %v2436
      %v2438 = vpop.f32.mrf.mxu0
      %v2439 = vadd.f32 %v2390, %v2438
      %2440 = vmatmul.bf16.gmra.mxu0 %v2199
      %v2441 = vpop.f32.mrf.mxu0
      %v2442 = vadd.f32 %v2393, %v2441
      %v2443 = vpop.f32.mrf.mxu0
      %v2444 = vadd.f32 %v2395, %v2443
      %2445 = vmatmul.bf16.gmra.mxu0 %v2202
      %v2446 = vpop.f32.mrf.mxu0
      %v2447 = vadd.f32 %v2398, %v2446
      %v2448 = vpop.f32.mrf.mxu0
      %v2449 = vadd.f32 %v2400, %v2448
      %2450 = vdwg.mxu0
      %2451 = vmatpush.bf16.msra.mxu0 0
      %2452 = vmatpush.bf16.msra.mxu0 0
      %2453 = vmatpush.bf16.msra.mxu0 0
      %2454 = vmatpush.bf16.msra.mxu0 0
      %2455 = vmatpush.bf16.msra.mxu0 0
      %2456 = vmatpush.bf16.msra.mxu0 0
      %2457 = vmatpush.bf16.msra.mxu0 %v2309
      %2458 = vmatpush.bf16.msra.mxu0 %v2308
      %2459 = vmatmul.bf16.gmra.mxu0 %v2330
      %v2460 = vpop.f32.mrf.mxu0
      %v2461 = vadd.f32 %v2412, %v2460
      %v2462 = vpop.f32.mrf.mxu0
      %v2463 = vadd.f32 %v2414, %v2462
      %2464 = vmatmul.bf16.gmra.mxu0 %v2333
      %v2465 = vpop.f32.mrf.mxu0
      %v2466 = vadd.f32 %v2417, %v2465
      %v2467 = vpop.f32.mrf.mxu0
      %v2468 = vadd.f32 %v2419, %v2467
      %2469 = vmatmul.bf16.gmra.mxu0 %v2336
      %v2470 = vpop.f32.mrf.mxu0
      %v2471 = vadd.f32 %v2422, %v2470
      %v2472 = vpop.f32.mrf.mxu0
      %v2473 = vadd.f32 %v2424, %v2472
      %2474 = vmatmul.bf16.gmra.mxu0 %v2339
      %v2475 = vpop.f32.mrf.mxu0
      %v2476 = vadd.f32 %v2427, %v2475
      %v2477 = vpop.f32.mrf.mxu0
      %v2478 = vadd.f32 %v2429, %v2477
      %2479 = vmatmul.bf16.gmra.mxu0 %v2342
      %v2480 = vpop.f32.mrf.mxu0
      %v2481 = vadd.f32 %v2432, %v2480
      %v2482 = vpop.f32.mrf.mxu0
      %v2483 = vadd.f32 %v2434, %v2482
      %2484 = vmatmul.bf16.gmra.mxu0 %v2345
      %v2485 = vpop.f32.mrf.mxu0
      %v2486 = vadd.f32 %v2437, %v2485
      %v2487 = vpop.f32.mrf.mxu0
      %v2488 = vadd.f32 %v2439, %v2487
      %2489 = vmatmul.bf16.gmra.mxu0 %v2348
      %v2490 = vpop.f32.mrf.mxu0
      %v2491 = vadd.f32 %v2442, %v2490
      %v2492 = vpop.f32.mrf.mxu0
      %v2493 = vadd.f32 %v2444, %v2492
      %2494 = vmatmul.bf16.gmra.mxu0 %v2351
      %v2495 = vpop.f32.mrf.mxu0
      %v2496 = vadd.f32 %v2447, %v2495
      %v2497 = vpop.f32.mrf.mxu0
      %v2498 = vadd.f32 %v2449, %v2497
      %2499 = vdwg.mxu0
      %v2516 = vunpack.c.l.b16 %v2011
      %v2517 = vunpack.c.l.b16 %v2012
      %v2518 = vunpack.c.l.b16 %v2013
      %v2519 = vunpack.c.l.b16 %v2014
      %v2520 = vunpack.c.l.b16 %v2015
      %v2521 = vunpack.c.l.b16 %v2016
      %v2522 = vunpack.c.l.b16 %v2017
      %v2523 = vunpack.c.l.b16 %v2018
      %v2524 = vunpack.c.l.b16 %v2019
      %v2525 = vunpack.c.l.b16 %v2020
      %v2526 = vunpack.c.l.b16 %v2021
      %v2527 = vunpack.c.l.b16 %v2022
      %v2528 = vunpack.c.l.b16 %v2023
      %v2529 = vunpack.c.l.b16 %v2024
      %v2530 = vunpack.c.l.b16 %v2025
      %v2531 = vunpack.c.l.b16 %v2026
      %v2532 = vpack.c.b16 %v2517, %v2516
      %v2533 = vpack.c.b16 %v2519, %v2518
      %v2534 = vpack.c.b16 %v2521, %v2520
      %v2535 = vpack.c.b16 %v2523, %v2522
      %v2536 = vpack.c.b16 %v2525, %v2524
      %v2537 = vpack.c.b16 %v2527, %v2526
      %v2538 = vpack.c.b16 %v2529, %v2528
      %v2539 = vpack.c.b16 %v2531, %v2530
      %v2545 = vunpack.c.l.b16 %v2059
      %v2546 = vunpack.c.l.b16 %v2060
      %v2547 = vunpack.c.l.b16 %v2061
      %v2548 = vunpack.c.l.b16 %v2062
      %v2549 = vunpack.c.l.b16 %v2063
      %v2550 = vpack.c.b16 %v2546, %v2545
      %v2551 = vpack.c.b16 %v2548, %v2547
      %v2552 = vpack.c.b16 %v2549, %v2549
      %vm2555 = vcmask 293888
      %v2557 = vsel %vm2555, %v2532, 0
      %v2560 = vsel %vm2555, %v2533, 0
      %v2563 = vsel %vm2555, %v2534, 0
      %v2566 = vsel %vm2555, %v2535, 0
      %v2569 = vsel %vm2555, %v2536, 0
      %v2572 = vsel %vm2555, %v2537, 0
      %v2575 = vsel %vm2555, %v2538, 0
      %v2578 = vsel %vm2555, %v2539, 0
      %vm2580 = vcmask 1041408
      %v2582 = vsel %vm2580, %v2552, 0
      %2584 = vmatpush.bf16.msra.mxu0 0
      %2585 = vmatpush.bf16.msra.mxu0 0
      %2586 = vmatpush.bf16.msra.mxu0 0
      %2587 = vmatpush.bf16.msra.mxu0 0
      %2588 = vmatpush.bf16.msra.mxu0 0
      %2589 = vmatpush.bf16.msra.mxu0 %v2582
      %2590 = vmatpush.bf16.msra.mxu0 %v2551
      %2591 = vmatpush.bf16.msra.mxu0 %v2550
      %2592 = vmatmul.bf16.gmra.mxu0 %v2557
      %v2593 = vpop.f32.mrf.mxu0
      %v2594 = vadd.f32 %v2461, %v2593
      %v2595 = vpop.f32.mrf.mxu0
      %v2596 = vadd.f32 %v2463, %v2595
      %2597 = vmatmul.bf16.gmra.mxu0 %v2560
      %v2598 = vpop.f32.mrf.mxu0
      %v2599 = vadd.f32 %v2466, %v2598
      %v2600 = vpop.f32.mrf.mxu0
      %v2601 = vadd.f32 %v2468, %v2600
      %2602 = vmatmul.bf16.gmra.mxu0 %v2563
      %v2603 = vpop.f32.mrf.mxu0
      %v2604 = vadd.f32 %v2471, %v2603
      %v2605 = vpop.f32.mrf.mxu0
      %v2606 = vadd.f32 %v2473, %v2605
      %2607 = vmatmul.bf16.gmra.mxu0 %v2566
      %v2608 = vpop.f32.mrf.mxu0
      %v2609 = vadd.f32 %v2476, %v2608
      %v2610 = vpop.f32.mrf.mxu0
      %v2611 = vadd.f32 %v2478, %v2610
      %2612 = vmatmul.bf16.gmra.mxu0 %v2569
      %v2613 = vpop.f32.mrf.mxu0
      %v2614 = vadd.f32 %v2481, %v2613
      %v2615 = vpop.f32.mrf.mxu0
      %v2616 = vadd.f32 %v2483, %v2615
      %2617 = vmatmul.bf16.gmra.mxu0 %v2572
      %v2618 = vpop.f32.mrf.mxu0
      %v2619 = vadd.f32 %v2486, %v2618
      %v2620 = vpop.f32.mrf.mxu0
      %v2621 = vadd.f32 %v2488, %v2620
      %2622 = vmatmul.bf16.gmra.mxu0 %v2575
      %v2623 = vpop.f32.mrf.mxu0
      %v2624 = vadd.f32 %v2491, %v2623
      %v2625 = vpop.f32.mrf.mxu0
      %v2626 = vadd.f32 %v2493, %v2625
      %2627 = vmatmul.bf16.gmra.mxu0 %v2578
      %v2628 = vpop.f32.mrf.mxu0
      %v2629 = vadd.f32 %v2496, %v2628
      %v2630 = vpop.f32.mrf.mxu0
      %v2631 = vadd.f32 %v2498, %v2630
      %2632 = vdwg.mxu0
      %v2633 = vld [vmem:[%s3] sm:$0x1]
      %v2635 = vperm.slane %v2633, 0
      %v2637 = vadd.f32 %v2594, %v2635
      %v2638 = vadd.f32 %v2596, %v2635
      %v2639 = vadd.f32 %v2599, %v2635
      %v2640 = vadd.f32 %v2601, %v2635
      %v2641 = vadd.f32 %v2604, %v2635
      %v2642 = vadd.f32 %v2606, %v2635
      %v2643 = vadd.f32 %v2609, %v2635
      %v2644 = vadd.f32 %v2611, %v2635
      %v2645 = vadd.f32 %v2614, %v2635
      %v2646 = vadd.f32 %v2616, %v2635
      %v2647 = vadd.f32 %v2619, %v2635
      %v2648 = vadd.f32 %v2621, %v2635
      %v2649 = vadd.f32 %v2624, %v2635
      %v2650 = vadd.f32 %v2626, %v2635
      %v2651 = vadd.f32 %v2629, %v2635
      %v2652 = vadd.f32 %v2631, %v2635
      %v2653 = vxor.u32 %v2637, 2147483648
      %v2654 = vxor.u32 %v2638, 2147483648
      %v2655 = vxor.u32 %v2639, 2147483648
      %v2656 = vxor.u32 %v2640, 2147483648
      %v2657 = vxor.u32 %v2641, 2147483648
      %v2658 = vxor.u32 %v2642, 2147483648
      %v2659 = vxor.u32 %v2643, 2147483648
      %v2660 = vxor.u32 %v2644, 2147483648
      %v2661 = vxor.u32 %v2645, 2147483648
      %v2662 = vxor.u32 %v2646, 2147483648
      %v2663 = vxor.u32 %v2647, 2147483648
      %v2664 = vxor.u32 %v2648, 2147483648
      %v2665 = vxor.u32 %v2649, 2147483648
      %v2666 = vxor.u32 %v2650, 2147483648
      %v2667 = vxor.u32 %v2651, 2147483648
      %v2668 = vxor.u32 %v2652, 2147483648
      %v2669 = vmul.f32 %v2653, 1.442695
      %v2670 = vpow.pop %v2669
      %v2671 = vmul.f32 %v2654, 1.442695
      %v2672 = vpow.pop %v2671
      %v2673 = vmul.f32 %v2655, 1.442695
      %v2674 = vpow.pop %v2673
      %v2675 = vmul.f32 %v2656, 1.442695
      %v2676 = vpow.pop %v2675
      %v2677 = vmul.f32 %v2657, 1.442695
      %v2678 = vpow.pop %v2677
      %v2679 = vmul.f32 %v2658, 1.442695
      %v2680 = vpow.pop %v2679
      %v2681 = vmul.f32 %v2659, 1.442695
      %v2682 = vpow.pop %v2681
      %v2683 = vmul.f32 %v2660, 1.442695
      %v2684 = vpow.pop %v2683
      %v2685 = vmul.f32 %v2661, 1.442695
      %v2686 = vpow.pop %v2685
      %v2687 = vmul.f32 %v2662, 1.442695
      %v2688 = vpow.pop %v2687
      %v2689 = vmul.f32 %v2663, 1.442695
      %v2690 = vpow.pop %v2689
      %v2691 = vmul.f32 %v2664, 1.442695
      %v2692 = vpow.pop %v2691
      %v2693 = vmul.f32 %v2665, 1.442695
      %v2694 = vpow.pop %v2693
      %v2695 = vmul.f32 %v2666, 1.442695
      %v2696 = vpow.pop %v2695
      %v2697 = vmul.f32 %v2667, 1.442695
      %v2698 = vpow.pop %v2697
      %v2699 = vmul.f32 %v2668, 1.442695
      %v2700 = vpow.pop %v2699
      %v2701 = vadd.f32 %v2670, 1.0
      %v2702 = vadd.f32 %v2672, 1.0
      %v2703 = vadd.f32 %v2674, 1.0
      %v2704 = vadd.f32 %v2676, 1.0
      %v2705 = vadd.f32 %v2678, 1.0
      %v2706 = vadd.f32 %v2680, 1.0
      %v2707 = vadd.f32 %v2682, 1.0
      %v2708 = vadd.f32 %v2684, 1.0
      %v2709 = vadd.f32 %v2686, 1.0
      %v2710 = vadd.f32 %v2688, 1.0
      %v2711 = vadd.f32 %v2690, 1.0
      %v2712 = vadd.f32 %v2692, 1.0
      %v2713 = vadd.f32 %v2694, 1.0
      %v2714 = vadd.f32 %v2696, 1.0
      %v2715 = vadd.f32 %v2698, 1.0
      %v2716 = vadd.f32 %v2700, 1.0
      %v2717 = vrcp.pop %v2701
      %v2718 = vmul.f32 %v2701, %v2717
      %v2719 = vsub.f32 1.0, %v2718
      %v2720 = vmul.f32 %v2717, %v2719
      %v2721 = vadd.f32 %v2717, %v2720
      %vm2722 = vweird.f32 %v2701
      %vm2723 = vweird.f32 %v2717
      %vm2724 = vmor %vm2722, %vm2723
      %v2725 = vsel %vm2724, %v2717, %v2721
      %v2726 = vand.u32 2147483647, %v2701
      %vm2727 = vcmp.eq.f32.partialorder %v2726, 8.507059e+37
      %v2728 = vand.u32 %v2701, 2147483648
      %v2729 = vor.u32 1.1754944e-38, %v2728
      %v2730 = vsel %vm2727, %v2729, %v2725
      %v2731 = vmul.f32 1.0, %v2730
      %v2732 = vrcp.pop %v2702
      %v2733 = vmul.f32 %v2702, %v2732
      %v2734 = vsub.f32 1.0, %v2733
      %v2735 = vmul.f32 %v2732, %v2734
      %v2736 = vadd.f32 %v2732, %v2735
      %vm2737 = vweird.f32 %v2702
      %vm2738 = vweird.f32 %v2732
      %vm2739 = vmor %vm2737, %vm2738
      %v2740 = vsel %vm2739, %v2732, %v2736
      %v2741 = vand.u32 2147483647, %v2702
      %vm2742 = vcmp.eq.f32.partialorder %v2741, 8.507059e+37
      %v2743 = vand.u32 %v2702, 2147483648
      %v2744 = vor.u32 1.1754944e-38, %v2743
      %v2745 = vsel %vm2742, %v2744, %v2740
      %v2746 = vmul.f32 1.0, %v2745
      %v2747 = vrcp.pop %v2703
      %v2748 = vmul.f32 %v2703, %v2747
      %v2749 = vsub.f32 1.0, %v2748
      %v2750 = vmul.f32 %v2747, %v2749
      %v2751 = vadd.f32 %v2747, %v2750
      %vm2752 = vweird.f32 %v2703
      %vm2753 = vweird.f32 %v2747
      %vm2754 = vmor %vm2752, %vm2753
      %v2755 = vsel %vm2754, %v2747, %v2751
      %v2756 = vand.u32 2147483647, %v2703
      %vm2757 = vcmp.eq.f32.partialorder %v2756, 8.507059e+37
      %v2758 = vand.u32 %v2703, 2147483648
      %v2759 = vor.u32 1.1754944e-38, %v2758
      %v2760 = vsel %vm2757, %v2759, %v2755
      %v2761 = vmul.f32 1.0, %v2760
      %v2762 = vrcp.pop %v2704
      %v2763 = vmul.f32 %v2704, %v2762
      %v2764 = vsub.f32 1.0, %v2763
      %v2765 = vmul.f32 %v2762, %v2764
      %v2766 = vadd.f32 %v2762, %v2765
      %vm2767 = vweird.f32 %v2704
      %vm2768 = vweird.f32 %v2762
      %vm2769 = vmor %vm2767, %vm2768
      %v2770 = vsel %vm2769, %v2762, %v2766
      %v2771 = vand.u32 2147483647, %v2704
      %vm2772 = vcmp.eq.f32.partialorder %v2771, 8.507059e+37
      %v2773 = vand.u32 %v2704, 2147483648
      %v2774 = vor.u32 1.1754944e-38, %v2773
      %v2775 = vsel %vm2772, %v2774, %v2770
      %v2776 = vmul.f32 1.0, %v2775
      %v2777 = vrcp.pop %v2705
      %v2778 = vmul.f32 %v2705, %v2777
      %v2779 = vsub.f32 1.0, %v2778
      %v2780 = vmul.f32 %v2777, %v2779
      %v2781 = vadd.f32 %v2777, %v2780
      %vm2782 = vweird.f32 %v2705
      %vm2783 = vweird.f32 %v2777
      %vm2784 = vmor %vm2782, %vm2783
      %v2785 = vsel %vm2784, %v2777, %v2781
      %v2786 = vand.u32 2147483647, %v2705
      %vm2787 = vcmp.eq.f32.partialorder %v2786, 8.507059e+37
      %v2788 = vand.u32 %v2705, 2147483648
      %v2789 = vor.u32 1.1754944e-38, %v2788
      %v2790 = vsel %vm2787, %v2789, %v2785
      %v2791 = vmul.f32 1.0, %v2790
      %v2792 = vrcp.pop %v2706
      %v2793 = vmul.f32 %v2706, %v2792
      %v2794 = vsub.f32 1.0, %v2793
      %v2795 = vmul.f32 %v2792, %v2794
      %v2796 = vadd.f32 %v2792, %v2795
      %vm2797 = vweird.f32 %v2706
      %vm2798 = vweird.f32 %v2792
      %vm2799 = vmor %vm2797, %vm2798
      %v2800 = vsel %vm2799, %v2792, %v2796
      %v2801 = vand.u32 2147483647, %v2706
      %vm2802 = vcmp.eq.f32.partialorder %v2801, 8.507059e+37
      %v2803 = vand.u32 %v2706, 2147483648
      %v2804 = vor.u32 1.1754944e-38, %v2803
      %v2805 = vsel %vm2802, %v2804, %v2800
      %v2806 = vmul.f32 1.0, %v2805
      %v2807 = vrcp.pop %v2707
      %v2808 = vmul.f32 %v2707, %v2807
      %v2809 = vsub.f32 1.0, %v2808
      %v2810 = vmul.f32 %v2807, %v2809
      %v2811 = vadd.f32 %v2807, %v2810
      %vm2812 = vweird.f32 %v2707
      %vm2813 = vweird.f32 %v2807
      %vm2814 = vmor %vm2812, %vm2813
      %v2815 = vsel %vm2814, %v2807, %v2811
      %v2816 = vand.u32 2147483647, %v2707
      %vm2817 = vcmp.eq.f32.partialorder %v2816, 8.507059e+37
      %v2818 = vand.u32 %v2707, 2147483648
      %v2819 = vor.u32 1.1754944e-38, %v2818
      %v2820 = vsel %vm2817, %v2819, %v2815
      %v2821 = vmul.f32 1.0, %v2820
      %v2822 = vrcp.pop %v2708
      %v2823 = vmul.f32 %v2708, %v2822
      %v2824 = vsub.f32 1.0, %v2823
      %v2825 = vmul.f32 %v2822, %v2824
      %v2826 = vadd.f32 %v2822, %v2825
      %vm2827 = vweird.f32 %v2708
      %vm2828 = vweird.f32 %v2822
      %vm2829 = vmor %vm2827, %vm2828
      %v2830 = vsel %vm2829, %v2822, %v2826
      %v2831 = vand.u32 2147483647, %v2708
      %vm2832 = vcmp.eq.f32.partialorder %v2831, 8.507059e+37
      %v2833 = vand.u32 %v2708, 2147483648
      %v2834 = vor.u32 1.1754944e-38, %v2833
      %v2835 = vsel %vm2832, %v2834, %v2830
      %v2836 = vmul.f32 1.0, %v2835
      %v2837 = vrcp.pop %v2709
      %v2838 = vmul.f32 %v2709, %v2837
      %v2839 = vsub.f32 1.0, %v2838
      %v2840 = vmul.f32 %v2837, %v2839
      %v2841 = vadd.f32 %v2837, %v2840
      %vm2842 = vweird.f32 %v2709
      %vm2843 = vweird.f32 %v2837
      %vm2844 = vmor %vm2842, %vm2843
      %v2845 = vsel %vm2844, %v2837, %v2841
      %v2846 = vand.u32 2147483647, %v2709
      %vm2847 = vcmp.eq.f32.partialorder %v2846, 8.507059e+37
      %v2848 = vand.u32 %v2709, 2147483648
      %v2849 = vor.u32 1.1754944e-38, %v2848
      %v2850 = vsel %vm2847, %v2849, %v2845
      %v2851 = vmul.f32 1.0, %v2850
      %v2852 = vrcp.pop %v2710
      %v2853 = vmul.f32 %v2710, %v2852
      %v2854 = vsub.f32 1.0, %v2853
      %v2855 = vmul.f32 %v2852, %v2854
      %v2856 = vadd.f32 %v2852, %v2855
      %vm2857 = vweird.f32 %v2710
      %vm2858 = vweird.f32 %v2852
      %vm2859 = vmor %vm2857, %vm2858
      %v2860 = vsel %vm2859, %v2852, %v2856
      %v2861 = vand.u32 2147483647, %v2710
      %vm2862 = vcmp.eq.f32.partialorder %v2861, 8.507059e+37
      %v2863 = vand.u32 %v2710, 2147483648
      %v2864 = vor.u32 1.1754944e-38, %v2863
      %v2865 = vsel %vm2862, %v2864, %v2860
      %v2866 = vmul.f32 1.0, %v2865
      %v2867 = vrcp.pop %v2711
      %v2868 = vmul.f32 %v2711, %v2867
      %v2869 = vsub.f32 1.0, %v2868
      %v2870 = vmul.f32 %v2867, %v2869
      %v2871 = vadd.f32 %v2867, %v2870
      %vm2872 = vweird.f32 %v2711
      %vm2873 = vweird.f32 %v2867
      %vm2874 = vmor %vm2872, %vm2873
      %v2875 = vsel %vm2874, %v2867, %v2871
      %v2876 = vand.u32 2147483647, %v2711
      %vm2877 = vcmp.eq.f32.partialorder %v2876, 8.507059e+37
      %v2878 = vand.u32 %v2711, 2147483648
      %v2879 = vor.u32 1.1754944e-38, %v2878
      %v2880 = vsel %vm2877, %v2879, %v2875
      %v2881 = vmul.f32 1.0, %v2880
      %v2882 = vrcp.pop %v2712
      %v2883 = vmul.f32 %v2712, %v2882
      %v2884 = vsub.f32 1.0, %v2883
      %v2885 = vmul.f32 %v2882, %v2884
      %v2886 = vadd.f32 %v2882, %v2885
      %vm2887 = vweird.f32 %v2712
      %vm2888 = vweird.f32 %v2882
      %vm2889 = vmor %vm2887, %vm2888
      %v2890 = vsel %vm2889, %v2882, %v2886
      %v2891 = vand.u32 2147483647, %v2712
      %vm2892 = vcmp.eq.f32.partialorder %v2891, 8.507059e+37
      %v2893 = vand.u32 %v2712, 2147483648
      %v2894 = vor.u32 1.1754944e-38, %v2893
      %v2895 = vsel %vm2892, %v2894, %v2890
      %v2896 = vmul.f32 1.0, %v2895
      %v2897 = vrcp.pop %v2713
      %v2898 = vmul.f32 %v2713, %v2897
      %v2899 = vsub.f32 1.0, %v2898
      %v2900 = vmul.f32 %v2897, %v2899
      %v2901 = vadd.f32 %v2897, %v2900
      %vm2902 = vweird.f32 %v2713
      %vm2903 = vweird.f32 %v2897
      %vm2904 = vmor %vm2902, %vm2903
      %v2905 = vsel %vm2904, %v2897, %v2901
      %v2906 = vand.u32 2147483647, %v2713
      %vm2907 = vcmp.eq.f32.partialorder %v2906, 8.507059e+37
      %v2908 = vand.u32 %v2713, 2147483648
      %v2909 = vor.u32 1.1754944e-38, %v2908
      %v2910 = vsel %vm2907, %v2909, %v2905
      %v2911 = vmul.f32 1.0, %v2910
      %v2912 = vrcp.pop %v2714
      %v2913 = vmul.f32 %v2714, %v2912
      %v2914 = vsub.f32 1.0, %v2913
      %v2915 = vmul.f32 %v2912, %v2914
      %v2916 = vadd.f32 %v2912, %v2915
      %vm2917 = vweird.f32 %v2714
      %vm2918 = vweird.f32 %v2912
      %vm2919 = vmor %vm2917, %vm2918
      %v2920 = vsel %vm2919, %v2912, %v2916
      %v2921 = vand.u32 2147483647, %v2714
      %vm2922 = vcmp.eq.f32.partialorder %v2921, 8.507059e+37
      %v2923 = vand.u32 %v2714, 2147483648
      %v2924 = vor.u32 1.1754944e-38, %v2923
      %v2925 = vsel %vm2922, %v2924, %v2920
      %v2926 = vmul.f32 1.0, %v2925
      %v2927 = vrcp.pop %v2715
      %v2928 = vmul.f32 %v2715, %v2927
      %v2929 = vsub.f32 1.0, %v2928
      %v2930 = vmul.f32 %v2927, %v2929
      %v2931 = vadd.f32 %v2927, %v2930
      %vm2932 = vweird.f32 %v2715
      %vm2933 = vweird.f32 %v2927
      %vm2934 = vmor %vm2932, %vm2933
      %v2935 = vsel %vm2934, %v2927, %v2931
      %v2936 = vand.u32 2147483647, %v2715
      %vm2937 = vcmp.eq.f32.partialorder %v2936, 8.507059e+37
      %v2938 = vand.u32 %v2715, 2147483648
      %v2939 = vor.u32 1.1754944e-38, %v2938
      %v2940 = vsel %vm2937, %v2939, %v2935
      %v2941 = vmul.f32 1.0, %v2940
      %v2942 = vrcp.pop %v2716
      %v2943 = vmul.f32 %v2716, %v2942
      %v2944 = vsub.f32 1.0, %v2943
      %v2945 = vmul.f32 %v2942, %v2944
      %v2946 = vadd.f32 %v2942, %v2945
      %vm2947 = vweird.f32 %v2716
      %vm2948 = vweird.f32 %v2942
      %vm2949 = vmor %vm2947, %vm2948
      %v2950 = vsel %vm2949, %v2942, %v2946
      %v2951 = vand.u32 2147483647, %v2716
      %vm2952 = vcmp.eq.f32.partialorder %v2951, 8.507059e+37
      %v2953 = vand.u32 %v2716, 2147483648
      %v2954 = vor.u32 1.1754944e-38, %v2953
      %v2955 = vsel %vm2952, %v2954, %v2950
      %v2956 = vmul.f32 1.0, %v2955
      %v2957 = vtanh.pop %v2637
      %v2958 = vtanh.pop %v2638
      %v2959 = vtanh.pop %v2639
      %v2960 = vtanh.pop %v2640
      %v2961 = vtanh.pop %v2641
      %v2962 = vtanh.pop %v2642
      %v2963 = vtanh.pop %v2643
      %v2964 = vtanh.pop %v2644
      %v2965 = vtanh.pop %v2645
      %v2966 = vtanh.pop %v2646
      %v2967 = vtanh.pop %v2647
      %v2968 = vtanh.pop %v2648
      %v2969 = vtanh.pop %v2649
      %v2970 = vtanh.pop %v2650
      %v2971 = vtanh.pop %v2651
      %v2972 = vtanh.pop %v2652
      %v2973 = vld [vmem:[#allocation3] sm:$0xff]
      %v2974 = vld [vmem:[#allocation3 + $0x8] sm:$0xff]
      %v2975 = vld [vmem:[#allocation3 + $0x10] sm:$0xff]
      %v2976 = vld [vmem:[#allocation3 + $0x18] sm:$0xff]
      %v2977 = vld [vmem:[#allocation3 + $0x20] sm:$0xff]
      %v2978 = vld [vmem:[#allocation3 + $0x28] sm:$0xff]
      %v2979 = vld [vmem:[#allocation3 + $0x30] sm:$0xff]
      %v2980 = vld [vmem:[#allocation3 + $0x38] sm:$0xff]
      %v2981 = vld [vmem:[#allocation3 + $0x40] sm:$0xff]
      %v2982 = vld [vmem:[#allocation3 + $0x48] sm:$0xff]
      %v2983 = vld [vmem:[#allocation3 + $0x50] sm:$0xff]
      %v2984 = vld [vmem:[#allocation3 + $0x58] sm:$0xff]
      %v2985 = vld [vmem:[#allocation3 + $0x60] sm:$0xff]
      %v2986 = vld [vmem:[#allocation3 + $0x68] sm:$0xff]
      %v2987 = vld [vmem:[#allocation3 + $0x70] sm:$0xff]
      %v2988 = vld [vmem:[#allocation3 + $0x78] sm:$0xff]
      %3005 = vrot.lane.b32.xlu0 %v2973, 32
      %v3006 = vpop.permute.xlu0 %3005
      %3007 = vrot.lane.b32.xlu0 %v2974, 32
      %v3008 = vpop.permute.xlu0 %3007
      %3009 = vrot.lane.b32.xlu0 %v2975, 32
      %v3010 = vpop.permute.xlu0 %3009
      %3011 = vrot.lane.b32.xlu0 %v2976, 32
      %v3012 = vpop.permute.xlu0 %3011
      %3013 = vrot.lane.b32.xlu0 %v2977, 32
      %v3014 = vpop.permute.xlu0 %3013
      %3015 = vrot.lane.b32.xlu0 %v2978, 32
      %v3016 = vpop.permute.xlu0 %3015
      %3017 = vrot.lane.b32.xlu0 %v2979, 32
      %v3018 = vpop.permute.xlu0 %3017
      %3019 = vrot.lane.b32.xlu0 %v2980, 32
      %v3020 = vpop.permute.xlu0 %3019
      %3021 = vrot.lane.b32.xlu0 %v2981, 32
      %v3022 = vpop.permute.xlu0 %3021
      %3023 = vrot.lane.b32.xlu0 %v2982, 32
      %v3024 = vpop.permute.xlu0 %3023
      %3025 = vrot.lane.b32.xlu0 %v2983, 32
      %v3026 = vpop.permute.xlu0 %3025
      %3027 = vrot.lane.b32.xlu0 %v2984, 32
      %v3028 = vpop.permute.xlu0 %3027
      %3029 = vrot.lane.b32.xlu0 %v2985, 32
      %v3030 = vpop.permute.xlu0 %3029
      %3031 = vrot.lane.b32.xlu0 %v2986, 32
      %v3032 = vpop.permute.xlu0 %3031
      %3033 = vrot.lane.b32.xlu0 %v2987, 32
      %v3034 = vpop.permute.xlu0 %3033
      %3035 = vrot.lane.b32.xlu0 %v2988, 32
      %v3036 = vpop.permute.xlu0 %3035
      %v3053 = vmul.f32 %v2731, %v3006
      %v3054 = vmul.f32 %v2746, %v3008
      %v3055 = vmul.f32 %v2761, %v3010
      %v3056 = vmul.f32 %v2776, %v3012
      %v3057 = vmul.f32 %v2791, %v3014
      %v3058 = vmul.f32 %v2806, %v3016
      %v3059 = vmul.f32 %v2821, %v3018
      %v3060 = vmul.f32 %v2836, %v3020
      %v3061 = vmul.f32 %v2851, %v3022
      %v3062 = vmul.f32 %v2866, %v3024
      %v3063 = vmul.f32 %v2881, %v3026
      %v3064 = vmul.f32 %v2896, %v3028
      %v3065 = vmul.f32 %v2911, %v3030
      %v3066 = vmul.f32 %v2926, %v3032
      %v3067 = vmul.f32 %v2941, %v3034
      %v3068 = vmul.f32 %v2956, %v3036
      %3085 = vrot.lane.b32.xlu0 %v2957, 64
      %v3086 = vpop.permute.xlu0 %3085
      %3087 = vrot.lane.b32.xlu0 %v2958, 64
      %v3088 = vpop.permute.xlu0 %3087
      %3089 = vrot.lane.b32.xlu0 %v2959, 64
      %v3090 = vpop.permute.xlu0 %3089
      %3091 = vrot.lane.b32.xlu0 %v2960, 64
      %v3092 = vpop.permute.xlu0 %3091
      %3093 = vrot.lane.b32.xlu0 %v2961, 64
      %v3094 = vpop.permute.xlu0 %3093
      %3095 = vrot.lane.b32.xlu0 %v2962, 64
      %v3096 = vpop.permute.xlu0 %3095
      %3097 = vrot.lane.b32.xlu0 %v2963, 64
      %v3098 = vpop.permute.xlu0 %3097
      %3099 = vrot.lane.b32.xlu0 %v2964, 64
      %v3100 = vpop.permute.xlu0 %3099
      %3101 = vrot.lane.b32.xlu0 %v2965, 64
      %v3102 = vpop.permute.xlu0 %3101
      %3103 = vrot.lane.b32.xlu0 %v2966, 64
      %v3104 = vpop.permute.xlu0 %3103
      %3105 = vrot.lane.b32.xlu0 %v2967, 64
      %v3106 = vpop.permute.xlu0 %3105
      %3107 = vrot.lane.b32.xlu0 %v2968, 64
      %v3108 = vpop.permute.xlu0 %3107
      %3109 = vrot.lane.b32.xlu0 %v2969, 64
      %v3110 = vpop.permute.xlu0 %3109
      %3111 = vrot.lane.b32.xlu0 %v2970, 64
      %v3112 = vpop.permute.xlu0 %3111
      %3113 = vrot.lane.b32.xlu0 %v2971, 64
      %v3114 = vpop.permute.xlu0 %3113
      %3115 = vrot.lane.b32.xlu0 %v2972, 64
      %v3116 = vpop.permute.xlu0 %3115
      %v3133 = vmul.f32 %v2731, %v3086
      %v3134 = vmul.f32 %v2746, %v3088
      %v3135 = vmul.f32 %v2761, %v3090
      %v3136 = vmul.f32 %v2776, %v3092
      %v3137 = vmul.f32 %v2791, %v3094
      %v3138 = vmul.f32 %v2806, %v3096
      %v3139 = vmul.f32 %v2821, %v3098
      %v3140 = vmul.f32 %v2836, %v3100
      %v3141 = vmul.f32 %v2851, %v3102
      %v3142 = vmul.f32 %v2866, %v3104
      %v3143 = vmul.f32 %v2881, %v3106
      %v3144 = vmul.f32 %v2896, %v3108
      %v3145 = vmul.f32 %v2911, %v3110
      %v3146 = vmul.f32 %v2926, %v3112
      %v3147 = vmul.f32 %v2941, %v3114
      %v3148 = vmul.f32 %v2956, %v3116
      %3165 = vrot.lane.b32.xlu0 %v3133, 32
      %v3166 = vpop.permute.xlu0 %3165
      %3167 = vrot.lane.b32.xlu0 %v3134, 32
      %v3168 = vpop.permute.xlu0 %3167
      %3169 = vrot.lane.b32.xlu0 %v3135, 32
      %v3170 = vpop.permute.xlu0 %3169
      %3171 = vrot.lane.b32.xlu0 %v3136, 32
      %v3172 = vpop.permute.xlu0 %3171
      %3173 = vrot.lane.b32.xlu0 %v3137, 32
      %v3174 = vpop.permute.xlu0 %3173
      %3175 = vrot.lane.b32.xlu0 %v3138, 32
      %v3176 = vpop.permute.xlu0 %3175
      %3177 = vrot.lane.b32.xlu0 %v3139, 32
      %v3178 = vpop.permute.xlu0 %3177
      %3179 = vrot.lane.b32.xlu0 %v3140, 32
      %v3180 = vpop.permute.xlu0 %3179
      %3181 = vrot.lane.b32.xlu0 %v3141, 32
      %v3182 = vpop.permute.xlu0 %3181
      %3183 = vrot.lane.b32.xlu0 %v3142, 32
      %v3184 = vpop.permute.xlu0 %3183
      %3185 = vrot.lane.b32.xlu0 %v3143, 32
      %v3186 = vpop.permute.xlu0 %3185
      %3187 = vrot.lane.b32.xlu0 %v3144, 32
      %v3188 = vpop.permute.xlu0 %3187
      %3189 = vrot.lane.b32.xlu0 %v3145, 32
      %v3190 = vpop.permute.xlu0 %3189
      %3191 = vrot.lane.b32.xlu0 %v3146, 32
      %v3192 = vpop.permute.xlu0 %3191
      %3193 = vrot.lane.b32.xlu0 %v3147, 32
      %v3194 = vpop.permute.xlu0 %3193
      %3195 = vrot.lane.b32.xlu0 %v3148, 32
      %v3196 = vpop.permute.xlu0 %3195
      %v3213 = vadd.f32 %v3053, %v3166
      %v3214 = vadd.f32 %v3054, %v3168
      %v3215 = vadd.f32 %v3055, %v3170
      %v3216 = vadd.f32 %v3056, %v3172
      %v3217 = vadd.f32 %v3057, %v3174
      %v3218 = vadd.f32 %v3058, %v3176
      %v3219 = vadd.f32 %v3059, %v3178
      %v3220 = vadd.f32 %v3060, %v3180
      %v3221 = vadd.f32 %v3061, %v3182
      %v3222 = vadd.f32 %v3062, %v3184
      %v3223 = vadd.f32 %v3063, %v3186
      %v3224 = vadd.f32 %v3064, %v3188
      %v3225 = vadd.f32 %v3065, %v3190
      %v3226 = vadd.f32 %v3066, %v3192
      %v3227 = vadd.f32 %v3067, %v3194
      %v3228 = vadd.f32 %v3068, %v3196
      %v3229 = vtanh.pop %v3213
      %v3230 = vtanh.pop %v3214
      %v3231 = vtanh.pop %v3215
      %v3232 = vtanh.pop %v3216
      %v3233 = vtanh.pop %v3217
      %v3234 = vtanh.pop %v3218
      %v3235 = vtanh.pop %v3219
      %v3236 = vtanh.pop %v3220
      %v3237 = vtanh.pop %v3221
      %v3238 = vtanh.pop %v3222
      %v3239 = vtanh.pop %v3223
      %v3240 = vtanh.pop %v3224
      %v3241 = vtanh.pop %v3225
      %v3242 = vtanh.pop %v3226
      %v3243 = vtanh.pop %v3227
      %v3244 = vtanh.pop %v3228
      %3261 = vrot.lane.b32.xlu0 %v3229, 64
      %v3262 = vpop.permute.xlu0 %3261
      %3263 = vrot.lane.b32.xlu0 %v3230, 64
      %v3264 = vpop.permute.xlu0 %3263
      %3265 = vrot.lane.b32.xlu0 %v3231, 64
      %v3266 = vpop.permute.xlu0 %3265
      %3267 = vrot.lane.b32.xlu0 %v3232, 64
      %v3268 = vpop.permute.xlu0 %3267
      %3269 = vrot.lane.b32.xlu0 %v3233, 64
      %v3270 = vpop.permute.xlu0 %3269
      %3271 = vrot.lane.b32.xlu0 %v3234, 64
      %v3272 = vpop.permute.xlu0 %3271
      %3273 = vrot.lane.b32.xlu0 %v3235, 64
      %v3274 = vpop.permute.xlu0 %3273
      %3275 = vrot.lane.b32.xlu0 %v3236, 64
      %v3276 = vpop.permute.xlu0 %3275
      %3277 = vrot.lane.b32.xlu0 %v3237, 64
      %v3278 = vpop.permute.xlu0 %3277
      %3279 = vrot.lane.b32.xlu0 %v3238, 64
      %v3280 = vpop.permute.xlu0 %3279
      %3281 = vrot.lane.b32.xlu0 %v3239, 64
      %v3282 = vpop.permute.xlu0 %3281
      %3283 = vrot.lane.b32.xlu0 %v3240, 64
      %v3284 = vpop.permute.xlu0 %3283
      %3285 = vrot.lane.b32.xlu0 %v3241, 64
      %v3286 = vpop.permute.xlu0 %3285
      %3287 = vrot.lane.b32.xlu0 %v3242, 64
      %v3288 = vpop.permute.xlu0 %3287
      %3289 = vrot.lane.b32.xlu0 %v3243, 64
      %v3290 = vpop.permute.xlu0 %3289
      %3291 = vrot.lane.b32.xlu0 %v3244, 64
      %v3292 = vpop.permute.xlu0 %3291
      %v3309 = vmul.f32 %v2731, %v3262
      %v3310 = vmul.f32 %v2746, %v3264
      %v3311 = vmul.f32 %v2761, %v3266
      %v3312 = vmul.f32 %v2776, %v3268
      %v3313 = vmul.f32 %v2791, %v3270
      %v3314 = vmul.f32 %v2806, %v3272
      %v3315 = vmul.f32 %v2821, %v3274
      %v3316 = vmul.f32 %v2836, %v3276
      %v3317 = vmul.f32 %v2851, %v3278
      %v3318 = vmul.f32 %v2866, %v3280
      %v3319 = vmul.f32 %v2881, %v3282
      %v3320 = vmul.f32 %v2896, %v3284
      %v3321 = vmul.f32 %v2911, %v3286
      %v3322 = vmul.f32 %v2926, %v3288
      %v3323 = vmul.f32 %v2941, %v3290
      %v3324 = vmul.f32 %v2956, %v3292
      %3341 = vrot.lane.b32.xlu0 %v3213, 96
      %v3342 = vpop.permute.xlu0 %3341
      %3343 = vrot.lane.b32.xlu0 %v3214, 96
      %v3344 = vpop.permute.xlu0 %3343
      %3345 = vrot.lane.b32.xlu0 %v3215, 96
      %v3346 = vpop.permute.xlu0 %3345
      %3347 = vrot.lane.b32.xlu0 %v3216, 96
      %v3348 = vpop.permute.xlu0 %3347
      %3349 = vrot.lane.b32.xlu0 %v3217, 96
      %v3350 = vpop.permute.xlu0 %3349
      %3351 = vrot.lane.b32.xlu0 %v3218, 96
      %v3352 = vpop.permute.xlu0 %3351
      %3353 = vrot.lane.b32.xlu0 %v3219, 96
      %v3354 = vpop.permute.xlu0 %3353
      %3355 = vrot.lane.b32.xlu0 %v3220, 96
      %v3356 = vpop.permute.xlu0 %3355
      %3357 = vrot.lane.b32.xlu0 %v3221, 96
      %v3358 = vpop.permute.xlu0 %3357
      %3359 = vrot.lane.b32.xlu0 %v3222, 96
      %v3360 = vpop.permute.xlu0 %3359
      %3361 = vrot.lane.b32.xlu0 %v3223, 96
      %v3362 = vpop.permute.xlu0 %3361
      %3363 = vrot.lane.b32.xlu0 %v3224, 96
      %v3364 = vpop.permute.xlu0 %3363
      %3365 = vrot.lane.b32.xlu0 %v3225, 96
      %v3366 = vpop.permute.xlu0 %3365
      %3367 = vrot.lane.b32.xlu0 %v3226, 96
      %v3368 = vpop.permute.xlu0 %3367
      %3369 = vrot.lane.b32.xlu0 %v3227, 96
      %v3370 = vpop.permute.xlu0 %3369
      %3371 = vrot.lane.b32.xlu0 %v3228, 96
      %v3372 = vpop.permute.xlu0 %3371
      %3389 = vst.msk [vmem:[#allocation3] sm:$0xff] %vm2328, %v3342
      %3390 = vst.msk [vmem:[#allocation3 + $0x8] sm:$0xff] %vm2328, %v3344
      %3391 = vst.msk [vmem:[#allocation3 + $0x10] sm:$0xff] %vm2328, %v3346
      %3392 = vst.msk [vmem:[#allocation3 + $0x18] sm:$0xff] %vm2328, %v3348
      %3393 = vst.msk [vmem:[#allocation3 + $0x20] sm:$0xff] %vm2328, %v3350
      %3394 = vst.msk [vmem:[#allocation3 + $0x28] sm:$0xff] %vm2328, %v3352
      %3395 = vst.msk [vmem:[#allocation3 + $0x30] sm:$0xff] %vm2328, %v3354
      %3396 = vst.msk [vmem:[#allocation3 + $0x38] sm:$0xff] %vm2328, %v3356
      %3397 = vst.msk [vmem:[#allocation3 + $0x40] sm:$0xff] %vm2328, %v3358
      %3398 = vst.msk [vmem:[#allocation3 + $0x48] sm:$0xff] %vm2328, %v3360
      %3399 = vst.msk [vmem:[#allocation3 + $0x50] sm:$0xff] %vm2328, %v3362
      %3400 = vst.msk [vmem:[#allocation3 + $0x58] sm:$0xff] %vm2328, %v3364
      %3401 = vst.msk [vmem:[#allocation3 + $0x60] sm:$0xff] %vm2328, %v3366
      %3402 = vst.msk [vmem:[#allocation3 + $0x68] sm:$0xff] %vm2328, %v3368
      %3403 = vst.msk [vmem:[#allocation3 + $0x70] sm:$0xff] %vm2328, %v3370
      %3404 = vst.msk [vmem:[#allocation3 + $0x78] sm:$0xff] %vm2328, %v3372
      %3421 = vrot.lane.b32.xlu0 %v3309, 32
      %v3422 = vpop.permute.xlu0 %3421
      %3423 = vrot.lane.b32.xlu0 %v3310, 32
      %v3424 = vpop.permute.xlu0 %3423
      %3425 = vrot.lane.b32.xlu0 %v3311, 32
      %v3426 = vpop.permute.xlu0 %3425
      %3427 = vrot.lane.b32.xlu0 %v3312, 32
      %v3428 = vpop.permute.xlu0 %3427
      %3429 = vrot.lane.b32.xlu0 %v3313, 32
      %v3430 = vpop.permute.xlu0 %3429
      %3431 = vrot.lane.b32.xlu0 %v3314, 32
      %v3432 = vpop.permute.xlu0 %3431
      %3433 = vrot.lane.b32.xlu0 %v3315, 32
      %v3434 = vpop.permute.xlu0 %3433
      %3435 = vrot.lane.b32.xlu0 %v3316, 32
      %v3436 = vpop.permute.xlu0 %3435
      %3437 = vrot.lane.b32.xlu0 %v3317, 32
      %v3438 = vpop.permute.xlu0 %3437
      %3439 = vrot.lane.b32.xlu0 %v3318, 32
      %v3440 = vpop.permute.xlu0 %3439
      %3441 = vrot.lane.b32.xlu0 %v3319, 32
      %v3442 = vpop.permute.xlu0 %3441
      %3443 = vrot.lane.b32.xlu0 %v3320, 32
      %v3444 = vpop.permute.xlu0 %3443
      %3445 = vrot.lane.b32.xlu0 %v3321, 32
      %v3446 = vpop.permute.xlu0 %3445
      %3447 = vrot.lane.b32.xlu0 %v3322, 32
      %v3448 = vpop.permute.xlu0 %3447
      %3449 = vrot.lane.b32.xlu0 %v3323, 32
      %v3450 = vpop.permute.xlu0 %3449
      %3451 = vrot.lane.b32.xlu0 %v3324, 32
      %v3452 = vpop.permute.xlu0 %3451
      %3469 = vst.msk [vmem:[%s920 + $0x1] sm:$0xff] %vm2328, %v3422
      %3470 = vst.msk [vmem:[%s920 + $0x9] sm:$0xff] %vm2328, %v3424
      %3471 = vst.msk [vmem:[%s920 + $0x19] sm:$0xff] %vm2328, %v3426
      %3472 = vst.msk [vmem:[%s920 + $0x21] sm:$0xff] %vm2328, %v3428
      %3473 = vst.msk [vmem:[%s920 + $0x31] sm:$0xff] %vm2328, %v3430
      %3474 = vst.msk [vmem:[%s920 + $0x39] sm:$0xff] %vm2328, %v3432
      %3475 = vst.msk [vmem:[%s920 + $0x49] sm:$0xff] %vm2328, %v3434
      %3476 = vst.msk [vmem:[%s920 + $0x51] sm:$0xff] %vm2328, %v3436
      %3477 = vst.msk [vmem:[%s920 + $0x61] sm:$0xff] %vm2328, %v3438
      %3478 = vst.msk [vmem:[%s920 + $0x69] sm:$0xff] %vm2328, %v3440
      %3479 = vst.msk [vmem:[%s920 + $0x79] sm:$0xff] %vm2328, %v3442
      %3480 = vst.msk [vmem:[%s920 + $0x81] sm:$0xff] %vm2328, %v3444
      %3481 = vst.msk [vmem:[%s920 + $0x91] sm:$0xff] %vm2328, %v3446
      %3482 = vst.msk [vmem:[%s920 + $0x99] sm:$0xff] %vm2328, %v3448
      %3483 = vst.msk [vmem:[%s920 + $0xa9] sm:$0xff] %vm2328, %v3450
      %3484 = vst.msk [vmem:[%s920 + $0xb1] sm:$0xff] %vm2328, %v3452
      %p3485 = scmp.eq.s32.totalorder %s24, 7
      // Predicated region
      $region49: #{tpu_custom_call.1} parent=43 // pred_check
        %p3486 = pneg %p3485
      $region50: #{tpu_custom_call.1} parent=43 // pred_check_branch
        %3488 = sbr.rel (%p3486) target = $region52
      $region51: #{tpu_custom_call.1} parent=43 // pred_region
        %v3489 = vld [vmem:[%s4] sm:$0x1]
        %v3491 = vperm.slane %v3489, 0
        %3492 = vrot.lane.b32.xlu0 %v3491, 96
        %v3493 = vpop.permute.xlu0 %3492
        %v3495 = vmul.f32 %v3309, %v3493
        %v3496 = vmul.f32 %v3310, %v3493
        %v3497 = vmul.f32 %v3311, %v3493
        %v3498 = vmul.f32 %v3312, %v3493
        %v3499 = vmul.f32 %v3313, %v3493
        %v3500 = vmul.f32 %v3314, %v3493
        %v3501 = vmul.f32 %v3315, %v3493
        %v3502 = vmul.f32 %v3316, %v3493
        %v3503 = vmul.f32 %v3317, %v3493
        %v3504 = vmul.f32 %v3318, %v3493
        %v3505 = vmul.f32 %v3319, %v3493
        %v3506 = vmul.f32 %v3320, %v3493
        %v3507 = vmul.f32 %v3321, %v3493
        %v3508 = vmul.f32 %v3322, %v3493
        %v3509 = vmul.f32 %v3323, %v3493
        %v3510 = vmul.f32 %v3324, %v3493
        %3527 = vrot.lane.b32.xlu0 %v3495, 32
        %v3528 = vpop.permute.xlu0 %3527
        %3529 = vrot.lane.b32.xlu0 %v3496, 32
        %v3530 = vpop.permute.xlu0 %3529
        %3531 = vrot.lane.b32.xlu0 %v3497, 32
        %v3532 = vpop.permute.xlu0 %3531
        %3533 = vrot.lane.b32.xlu0 %v3498, 32
        %v3534 = vpop.permute.xlu0 %3533
        %3535 = vrot.lane.b32.xlu0 %v3499, 32
        %v3536 = vpop.permute.xlu0 %3535
        %3537 = vrot.lane.b32.xlu0 %v3500, 32
        %v3538 = vpop.permute.xlu0 %3537
        %3539 = vrot.lane.b32.xlu0 %v3501, 32
        %v3540 = vpop.permute.xlu0 %3539
        %3541 = vrot.lane.b32.xlu0 %v3502, 32
        %v3542 = vpop.permute.xlu0 %3541
        %3543 = vrot.lane.b32.xlu0 %v3503, 32
        %v3544 = vpop.permute.xlu0 %3543
        %3545 = vrot.lane.b32.xlu0 %v3504, 32
        %v3546 = vpop.permute.xlu0 %3545
        %3547 = vrot.lane.b32.xlu0 %v3505, 32
        %v3548 = vpop.permute.xlu0 %3547
        %3549 = vrot.lane.b32.xlu0 %v3506, 32
        %v3550 = vpop.permute.xlu0 %3549
        %3551 = vrot.lane.b32.xlu0 %v3507, 32
        %v3552 = vpop.permute.xlu0 %3551
        %3553 = vrot.lane.b32.xlu0 %v3508, 32
        %v3554 = vpop.permute.xlu0 %3553
        %3555 = vrot.lane.b32.xlu0 %v3509, 32
        %v3556 = vpop.permute.xlu0 %3555
        %3557 = vrot.lane.b32.xlu0 %v3510, 32
        %v3558 = vpop.permute.xlu0 %3557
        %v3575 = vsel %vm2328, %v3528, 0.0
        %3576 = vadd.xlane.f32.xlu0 %v3575
        %v3577 = vpop.xlane.xlu0 %3576
        %v3578 = vsel %vm2328, %v3530, 0.0
        %3579 = vadd.xlane.f32.xlu0 %v3578
        %v3580 = vpop.xlane.xlu0 %3579
        %v3581 = vsel %vm2328, %v3532, 0.0
        %3582 = vadd.xlane.f32.xlu0 %v3581
        %v3583 = vpop.xlane.xlu0 %3582
        %v3584 = vsel %vm2328, %v3534, 0.0
        %3585 = vadd.xlane.f32.xlu0 %v3584
        %v3586 = vpop.xlane.xlu0 %3585
        %v3587 = vsel %vm2328, %v3536, 0.0
        %3588 = vadd.xlane.f32.xlu0 %v3587
        %v3589 = vpop.xlane.xlu0 %3588
        %v3590 = vsel %vm2328, %v3538, 0.0
        %3591 = vadd.xlane.f32.xlu0 %v3590
        %v3592 = vpop.xlane.xlu0 %3591
        %v3593 = vsel %vm2328, %v3540, 0.0
        %3594 = vadd.xlane.f32.xlu0 %v3593
        %v3595 = vpop.xlane.xlu0 %3594
        %v3596 = vsel %vm2328, %v3542, 0.0
        %3597 = vadd.xlane.f32.xlu0 %v3596
        %v3598 = vpop.xlane.xlu0 %3597
        %v3599 = vsel %vm2328, %v3544, 0.0
        %3600 = vadd.xlane.f32.xlu0 %v3599
        %v3601 = vpop.xlane.xlu0 %3600
        %v3602 = vsel %vm2328, %v3546, 0.0
        %3603 = vadd.xlane.f32.xlu0 %v3602
        %v3604 = vpop.xlane.xlu0 %3603
        %v3605 = vsel %vm2328, %v3548, 0.0
        %3606 = vadd.xlane.f32.xlu0 %v3605
        %v3607 = vpop.xlane.xlu0 %3606
        %v3608 = vsel %vm2328, %v3550, 0.0
        %3609 = vadd.xlane.f32.xlu0 %v3608
        %v3610 = vpop.xlane.xlu0 %3609
        %v3611 = vsel %vm2328, %v3552, 0.0
        %3612 = vadd.xlane.f32.xlu0 %v3611
        %v3613 = vpop.xlane.xlu0 %3612
        %v3614 = vsel %vm2328, %v3554, 0.0
        %3615 = vadd.xlane.f32.xlu0 %v3614
        %v3616 = vpop.xlane.xlu0 %3615
        %v3617 = vsel %vm2328, %v3556, 0.0
        %3618 = vadd.xlane.f32.xlu0 %v3617
        %v3619 = vpop.xlane.xlu0 %3618
        %v3620 = vsel %vm2328, %v3558, 0.0
        %3621 = vadd.xlane.f32.xlu0 %v3620
        %v3622 = vpop.xlane.xlu0 %3621
        %v3623 = vld [vmem:[#allocation5] sm:$0x1]
        %v3625 = vperm.slane %v3623, 0
        %v3627 = vadd.f32 %v3577, %v3625
        %v3628 = vadd.f32 %v3580, %v3625
        %v3629 = vadd.f32 %v3583, %v3625
        %v3630 = vadd.f32 %v3586, %v3625
        %v3631 = vadd.f32 %v3589, %v3625
        %v3632 = vadd.f32 %v3592, %v3625
        %v3633 = vadd.f32 %v3595, %v3625
        %v3634 = vadd.f32 %v3598, %v3625
        %v3635 = vadd.f32 %v3601, %v3625
        %v3636 = vadd.f32 %v3604, %v3625
        %v3637 = vadd.f32 %v3607, %v3625
        %v3638 = vadd.f32 %v3610, %v3625
        %v3639 = vadd.f32 %v3613, %v3625
        %v3640 = vadd.f32 %v3616, %v3625
        %v3641 = vadd.f32 %v3619, %v3625
        %v3642 = vadd.f32 %v3622, %v3625
        %vm3643 = vcmask 7168
        %3644 = vst.msk [vmem:[%s279] sm:$0xff] %vm3643, %v3627
        %3645 = vst.msk [vmem:[%s279 + $0x8] sm:$0xff] %vm3643, %v3628
        %3646 = vst.msk [vmem:[%s279 + $0x10] sm:$0xff] %vm3643, %v3629
        %3647 = vst.msk [vmem:[%s279 + $0x18] sm:$0xff] %vm3643, %v3630
        %3648 = vst.msk [vmem:[%s279 + $0x20] sm:$0xff] %vm3643, %v3631
        %3649 = vst.msk [vmem:[%s279 + $0x28] sm:$0xff] %vm3643, %v3632
        %3650 = vst.msk [vmem:[%s279 + $0x30] sm:$0xff] %vm3643, %v3633
        %3651 = vst.msk [vmem:[%s279 + $0x38] sm:$0xff] %vm3643, %v3634
        %3652 = vst.msk [vmem:[%s279 + $0x40] sm:$0xff] %vm3643, %v3635
        %3653 = vst.msk [vmem:[%s279 + $0x48] sm:$0xff] %vm3643, %v3636
        %3654 = vst.msk [vmem:[%s279 + $0x50] sm:$0xff] %vm3643, %v3637
        %3655 = vst.msk [vmem:[%s279 + $0x58] sm:$0xff] %vm3643, %v3638
        %3656 = vst.msk [vmem:[%s279 + $0x60] sm:$0xff] %vm3643, %v3639
        %3657 = vst.msk [vmem:[%s279 + $0x68] sm:$0xff] %vm3643, %v3640
        %3658 = vst.msk [vmem:[%s279 + $0x70] sm:$0xff] %vm3643, %v3641
        %3659 = vst.msk [vmem:[%s279 + $0x78] sm:$0xff] %vm3643, %v3642
      $region52: #{tpu_custom_call.1} parent=43 // pred_fallthru
        _
      %v3660 = vld [vmem:[%s274 + $0x40] sm:$0xf]
      %v3661 = vld [vmem:[%s274 + $0x44] sm:$0xf]
      %v3662 = vld [vmem:[%s274 + $0x48] sm:$0xf]
      %v3663 = vld [vmem:[%s274 + $0x4c] sm:$0xf]
      %v3664 = vld [vmem:[%s274 + $0x50] sm:$0xf]
      %v3665 = vld [vmem:[%s274 + $0x54] sm:$0xf]
      %v3666 = vld [vmem:[%s274 + $0x58] sm:$0xf]
      %v3667 = vld [vmem:[%s274 + $0x5c] sm:$0xf]
      %v3668 = vld [vmem:[%s274 + $0x60] sm:$0xf]
      %v3669 = vld [vmem:[%s274 + $0x64] sm:$0xf]
      %v3670 = vld [vmem:[%s274 + $0x68] sm:$0xf]
      %v3671 = vld [vmem:[%s274 + $0x6c] sm:$0xf]
      %v3672 = vld [vmem:[%s274 + $0x70] sm:$0xf]
      %v3673 = vld [vmem:[%s274 + $0x74] sm:$0xf]
      %v3674 = vld [vmem:[%s274 + $0x78] sm:$0xf]
      %v3675 = vld [vmem:[%s274 + $0x7c] sm:$0xf]
      %v3676 = vld [vmem:[#allocation4 + $0xc0] sm:$0xff]
      %v3677 = vld [vmem:[#allocation4 + $0xc8] sm:$0xf]
      %v3678 = vld [vmem:[#allocation4 + $0xcc] sm:$0xff]
      %v3679 = vld [vmem:[#allocation4 + $0xd4] sm:$0xf]
      %v3680 = vld [vmem:[#allocation4 + $0xd8] sm:$0xff]
      %v3681 = vld [vmem:[#allocation4 + $0xe0] sm:$0xf]
      %v3682 = vld [vmem:[#allocation4 + $0xe4] sm:$0xff]
      %v3683 = vld [vmem:[#allocation4 + $0xec] sm:$0xf]
      %v3684 = vld [vmem:[#allocation4 + $0xf0] sm:$0xff]
      %v3685 = vld [vmem:[#allocation4 + $0xf8] sm:$0xf]
      %v3686 = vld [vmem:[#allocation4 + $0xfc] sm:$0xff]
      %v3687 = vld [vmem:[#allocation4 + $0x104] sm:$0xf]
      %v3688 = vld [vmem:[#allocation4 + $0x108] sm:$0xff]
      %v3689 = vld [vmem:[#allocation4 + $0x110] sm:$0xf]
      %v3690 = vld [vmem:[#allocation4 + $0x114] sm:$0xff]
      %v3691 = vld [vmem:[#allocation4 + $0x11c] sm:$0xf]
      %v3692 = vld [vmem:[#allocation4 + $0x120] sm:$0xff]
      %v3693 = vld [vmem:[#allocation4 + $0x128] sm:$0xf]
      %v3694 = vld [vmem:[#allocation4 + $0x12c] sm:$0xff]
      %v3695 = vld [vmem:[#allocation4 + $0x134] sm:$0xf]
      %v3696 = vld [vmem:[#allocation4 + $0x138] sm:$0xff]
      %v3697 = vld [vmem:[#allocation4 + $0x140] sm:$0xf]
      %v3698 = vld [vmem:[#allocation4 + $0x144] sm:$0xff]
      %v3699 = vld [vmem:[#allocation4 + $0x14c] sm:$0xf]
      %v3700 = vld [vmem:[#allocation4 + $0x150] sm:$0xff]
      %v3701 = vld [vmem:[#allocation4 + $0x158] sm:$0xf]
      %v3702 = vld [vmem:[#allocation4 + $0x15c] sm:$0xff]
      %v3703 = vld [vmem:[#allocation4 + $0x164] sm:$0xf]
      %v3704 = vld [vmem:[#allocation4 + $0x168] sm:$0xff]
      %v3705 = vld [vmem:[#allocation4 + $0x170] sm:$0xf]
      %v3706 = vld [vmem:[#allocation4 + $0x174] sm:$0xff]
      %v3707 = vld [vmem:[#allocation4 + $0x17c] sm:$0xf]
      %v3708 = vld [vmem:[%s1] sm:$0xf]
      %v3709 = vld [vmem:[%s1 + $0x4] sm:$0xf]
      %v3710 = vld [vmem:[%s1 + $0x8] sm:$0xf]
      %v3711 = vld [vmem:[%s1 + $0xc] sm:$0xf]
      %v3712 = vld [vmem:[%s1 + $0x10] sm:$0x3]
      %v3713 = vld [vmem:[%s2] sm:$0xf]
      %v3714 = vld [vmem:[%s2 + $0x4] sm:$0xf]
      %v3715 = vld [vmem:[%s2 + $0x8] sm:$0xf]
      %v3716 = vld [vmem:[%s2 + $0xc] sm:$0xf]
      %v3717 = vld [vmem:[%s2 + $0x10] sm:$0xf]
      %v3718 = vld [vmem:[%s2 + $0x14] sm:$0xf]
      %v3719 = vld [vmem:[%s2 + $0x18] sm:$0xf]
      %v3720 = vld [vmem:[%s2 + $0x1c] sm:$0xf]
      %v3721 = vld [vmem:[%s2 + $0x20] sm:$0xf]
      %v3722 = vld [vmem:[%s2 + $0x24] sm:$0xf]
      %v3723 = vld [vmem:[%s2 + $0x28] sm:$0xf]
      %v3724 = vld [vmem:[%s2 + $0x2c] sm:$0xf]
      %v3725 = vld [vmem:[%s2 + $0x30] sm:$0xf]
      %v3726 = vld [vmem:[%s2 + $0x34] sm:$0xf]
      %v3727 = vld [vmem:[%s2 + $0x38] sm:$0xf]
      %v3728 = vld [vmem:[%s2 + $0x3c] sm:$0xf]
      %v3729 = vld [vmem:[%s2 + $0x40] sm:$0xf]
      %v3730 = vld [vmem:[%s2 + $0x44] sm:$0xf]
      %v3731 = vld [vmem:[%s2 + $0x48] sm:$0xf]
      %v3732 = vld [vmem:[%s2 + $0x4c] sm:$0xf]
      %v3733 = vld [vmem:[%s2 + $0x50] sm:$0xf]
      %v3734 = vld [vmem:[%s2 + $0x54] sm:$0xf]
      %v3735 = vld [vmem:[%s2 + $0x58] sm:$0xf]
      %v3736 = vld [vmem:[%s2 + $0x5c] sm:$0xf]
      %v3737 = vld [vmem:[%s2 + $0x60] sm:$0xf]
      %v3738 = vld [vmem:[%s2 + $0x64] sm:$0xf]
      %v3739 = vld [vmem:[%s2 + $0x68] sm:$0xf]
      %v3740 = vld [vmem:[%s2 + $0x6c] sm:$0xf]
      %v3741 = vld [vmem:[%s2 + $0x70] sm:$0xf]
      %v3742 = vld [vmem:[%s2 + $0x74] sm:$0xf]
      %v3743 = vld [vmem:[%s2 + $0x78] sm:$0xf]
      %v3744 = vld [vmem:[%s2 + $0x7c] sm:$0xf]
      %v3745 = vld [vmem:[%s2 + $0x80] sm:$0xf]
      %v3746 = vld [vmem:[%s2 + $0x84] sm:$0xf]
      %v3747 = vld [vmem:[%s2 + $0x88] sm:$0xf]
      %v3748 = vld [vmem:[%s2 + $0x8c] sm:$0xf]
      %v3781 = vunpack.c.l.b16 %v3676
      %v3782 = vunpack.c.h.b16 %v3676
      %v3783 = vunpack.c.l.b16 %v3677
      %v3784 = vunpack.c.l.b16 %v3678
      %v3785 = vunpack.c.h.b16 %v3678
      %v3786 = vunpack.c.l.b16 %v3679
      %v3787 = vunpack.c.l.b16 %v3680
      %v3788 = vunpack.c.h.b16 %v3680
      %v3789 = vunpack.c.l.b16 %v3681
      %v3790 = vunpack.c.l.b16 %v3682
      %v3791 = vunpack.c.h.b16 %v3682
      %v3792 = vunpack.c.l.b16 %v3683
      %v3793 = vunpack.c.l.b16 %v3684
      %v3794 = vunpack.c.h.b16 %v3684
      %v3795 = vunpack.c.l.b16 %v3685
      %v3796 = vunpack.c.l.b16 %v3686
      %v3797 = vunpack.c.h.b16 %v3686
      %v3798 = vunpack.c.l.b16 %v3687
      %v3799 = vunpack.c.l.b16 %v3688
      %v3800 = vunpack.c.h.b16 %v3688
      %v3801 = vunpack.c.l.b16 %v3689
      %v3802 = vunpack.c.l.b16 %v3690
      %v3803 = vunpack.c.h.b16 %v3690
      %v3804 = vunpack.c.l.b16 %v3691
      %v3805 = vunpack.c.l.b16 %v3692
      %v3806 = vunpack.c.h.b16 %v3692
      %v3807 = vunpack.c.l.b16 %v3693
      %v3808 = vunpack.c.l.b16 %v3694
      %v3809 = vunpack.c.h.b16 %v3694
      %v3810 = vunpack.c.l.b16 %v3695
      %v3811 = vunpack.c.l.b16 %v3696
      %v3812 = vunpack.c.h.b16 %v3696
      %v3813 = vunpack.c.l.b16 %v3697
      %v3814 = vunpack.c.l.b16 %v3698
      %v3815 = vunpack.c.h.b16 %v3698
      %v3816 = vunpack.c.l.b16 %v3699
      %v3817 = vunpack.c.l.b16 %v3700
      %v3818 = vunpack.c.h.b16 %v3700
      %v3819 = vunpack.c.l.b16 %v3701
      %v3820 = vunpack.c.l.b16 %v3702
      %v3821 = vunpack.c.h.b16 %v3702
      %v3822 = vunpack.c.l.b16 %v3703
      %v3823 = vunpack.c.l.b16 %v3704
      %v3824 = vunpack.c.h.b16 %v3704
      %v3825 = vunpack.c.l.b16 %v3705
      %v3826 = vunpack.c.l.b16 %v3706
      %v3827 = vunpack.c.h.b16 %v3706
      %v3828 = vunpack.c.l.b16 %v3707
      %v3829 = vpack.c.b16 %v3784, %v3781
      %v3830 = vpack.c.b16 %v3785, %v3782
      %v3831 = vpack.c.b16 %v3786, %v3783
      %v3832 = vpack.c.b16 %v3790, %v3787
      %v3833 = vpack.c.b16 %v3791, %v3788
      %v3834 = vpack.c.b16 %v3792, %v3789
      %v3835 = vpack.c.b16 %v3796, %v3793
      %v3836 = vpack.c.b16 %v3797, %v3794
      %v3837 = vpack.c.b16 %v3798, %v3795
      %v3838 = vpack.c.b16 %v3802, %v3799
      %v3839 = vpack.c.b16 %v3803, %v3800
      %v3840 = vpack.c.b16 %v3804, %v3801
      %v3841 = vpack.c.b16 %v3808, %v3805
      %v3842 = vpack.c.b16 %v3809, %v3806
      %v3843 = vpack.c.b16 %v3810, %v3807
      %v3844 = vpack.c.b16 %v3814, %v3811
      %v3845 = vpack.c.b16 %v3815, %v3812
      %v3846 = vpack.c.b16 %v3816, %v3813
      %v3847 = vpack.c.b16 %v3820, %v3817
      %v3848 = vpack.c.b16 %v3821, %v3818
      %v3849 = vpack.c.b16 %v3822, %v3819
      %v3850 = vpack.c.b16 %v3826, %v3823
      %v3851 = vpack.c.b16 %v3827, %v3824
      %v3852 = vpack.c.b16 %v3828, %v3825
      %v3905 = vunpack.c.l.b16 %v3713
      %v3906 = vunpack.c.l.b16 %v3714
      %v3907 = vunpack.c.l.b16 %v3715
      %v3908 = vunpack.c.l.b16 %v3716
      %v3909 = vunpack.c.l.b16 %v3717
      %v3910 = vunpack.c.l.b16 %v3718
      %v3911 = vunpack.c.l.b16 %v3719
      %v3912 = vunpack.c.l.b16 %v3720
      %v3913 = vunpack.c.l.b16 %v3721
      %v3914 = vunpack.c.l.b16 %v3722
      %v3915 = vunpack.c.l.b16 %v3723
      %v3916 = vunpack.c.l.b16 %v3724
      %v3917 = vunpack.c.l.b16 %v3725
      %v3918 = vunpack.c.l.b16 %v3726
      %v3919 = vunpack.c.l.b16 %v3727
      %v3920 = vunpack.c.l.b16 %v3728
      %v3921 = vunpack.c.l.b16 %v3729
      %v3922 = vunpack.c.l.b16 %v3730
      %v3923 = vunpack.c.l.b16 %v3731
      %v3924 = vunpack.c.l.b16 %v3732
      %v3925 = vunpack.c.l.b16 %v3733
      %v3926 = vunpack.c.l.b16 %v3734
      %v3927 = vunpack.c.l.b16 %v3735
      %v3928 = vunpack.c.l.b16 %v3736
      %v3929 = vunpack.c.l.b16 %v3737
      %v3930 = vunpack.c.l.b16 %v3738
      %v3931 = vunpack.c.l.b16 %v3739
      %v3932 = vunpack.c.l.b16 %v3740
      %v3933 = vunpack.c.l.b16 %v3741
      %v3934 = vunpack.c.l.b16 %v3742
      %v3935 = vunpack.c.l.b16 %v3743
      %v3936 = vunpack.c.l.b16 %v3744
      %v3937 = vunpack.c.l.b16 %v3745
      %v3938 = vunpack.c.l.b16 %v3746
      %v3939 = vunpack.c.l.b16 %v3747
      %v3940 = vunpack.c.l.b16 %v3748
      %v3941 = vpack.c.b16 %v3906, %v3905
      %v3942 = vpack.c.b16 %v3908, %v3907
      %v3943 = vpack.c.b16 %v3910, %v3909
      %v3944 = vpack.c.b16 %v3912, %v3911
      %v3945 = vpack.c.b16 %v3914, %v3913
      %v3946 = vpack.c.b16 %v3916, %v3915
      %v3947 = vpack.c.b16 %v3918, %v3917
      %v3948 = vpack.c.b16 %v3920, %v3919
      %v3949 = vpack.c.b16 %v3922, %v3921
      %v3950 = vpack.c.b16 %v3924, %v3923
      %v3951 = vpack.c.b16 %v3926, %v3925
      %v3952 = vpack.c.b16 %v3928, %v3927
      %v3953 = vpack.c.b16 %v3930, %v3929
      %v3954 = vpack.c.b16 %v3932, %v3931
      %v3955 = vpack.c.b16 %v3934, %v3933
      %v3956 = vpack.c.b16 %v3936, %v3935
      %v3957 = vpack.c.b16 %v3938, %v3937
      %v3958 = vpack.c.b16 %v3940, %v3939
      %v3978 = vsel %vm2328, %v3831, 0
      %v3981 = vsel %vm2328, %v3834, 0
      %v3984 = vsel %vm2328, %v3837, 0
      %v3987 = vsel %vm2328, %v3840, 0
      %v3990 = vsel %vm2328, %v3843, 0
      %v3993 = vsel %vm2328, %v3846, 0
      %v3996 = vsel %vm2328, %v3849, 0
      %v3999 = vsel %vm2328, %v3852, 0
      %4001 = vmatpush.bf16.msra.mxu0 %v3948
      %4002 = vmatpush.bf16.msra.mxu0 %v3947
      %4003 = vmatpush.bf16.msra.mxu0 %v3946
      %4004 = vmatpush.bf16.msra.mxu0 %v3945
      %4005 = vmatpush.bf16.msra.mxu0 %v3944
      %4006 = vmatpush.bf16.msra.mxu0 %v3943
      %4007 = vmatpush.bf16.msra.mxu0 %v3942
      %4008 = vmatpush.bf16.msra.mxu0 %v3941
      %4009 = vmatmul.bf16.gmra.mxu0 %v3829
      %v4010 = vpop.f32.mrf.mxu0
      %v4011 = vadd.f32 0.0, %v4010
      %v4012 = vpop.f32.mrf.mxu0
      %v4013 = vadd.f32 0.0, %v4012
      %4014 = vmatmul.bf16.gmra.mxu0 %v3832
      %v4015 = vpop.f32.mrf.mxu0
      %v4016 = vadd.f32 0.0, %v4015
      %v4017 = vpop.f32.mrf.mxu0
      %v4018 = vadd.f32 0.0, %v4017
      %4019 = vmatmul.bf16.gmra.mxu0 %v3835
      %v4020 = vpop.f32.mrf.mxu0
      %v4021 = vadd.f32 0.0, %v4020
      %v4022 = vpop.f32.mrf.mxu0
      %v4023 = vadd.f32 0.0, %v4022
      %4024 = vmatmul.bf16.gmra.mxu0 %v3838
      %v4025 = vpop.f32.mrf.mxu0
      %v4026 = vadd.f32 0.0, %v4025
      %v4027 = vpop.f32.mrf.mxu0
      %v4028 = vadd.f32 0.0, %v4027
      %4029 = vmatmul.bf16.gmra.mxu0 %v3841
      %v4030 = vpop.f32.mrf.mxu0
      %v4031 = vadd.f32 0.0, %v4030
      %v4032 = vpop.f32.mrf.mxu0
      %v4033 = vadd.f32 0.0, %v4032
      %4034 = vmatmul.bf16.gmra.mxu0 %v3844
      %v4035 = vpop.f32.mrf.mxu0
      %v4036 = vadd.f32 0.0, %v4035
      %v4037 = vpop.f32.mrf.mxu0
      %v4038 = vadd.f32 0.0, %v4037
      %4039 = vmatmul.bf16.gmra.mxu0 %v3847
      %v4040 = vpop.f32.mrf.mxu0
      %v4041 = vadd.f32 0.0, %v4040
      %v4042 = vpop.f32.mrf.mxu0
      %v4043 = vadd.f32 0.0, %v4042
      %4044 = vmatmul.bf16.gmra.mxu0 %v3850
      %v4045 = vpop.f32.mrf.mxu0
      %v4046 = vadd.f32 0.0, %v4045
      %v4047 = vpop.f32.mrf.mxu0
      %v4048 = vadd.f32 0.0, %v4047
      %4049 = vdwg.mxu0
      %4050 = vmatpush.bf16.msra.mxu0 %v3956
      %4051 = vmatpush.bf16.msra.mxu0 %v3955
      %4052 = vmatpush.bf16.msra.mxu0 %v3954
      %4053 = vmatpush.bf16.msra.mxu0 %v3953
      %4054 = vmatpush.bf16.msra.mxu0 %v3952
      %4055 = vmatpush.bf16.msra.mxu0 %v3951
      %4056 = vmatpush.bf16.msra.mxu0 %v3950
      %4057 = vmatpush.bf16.msra.mxu0 %v3949
      %4058 = vmatmul.bf16.gmra.mxu0 %v3830
      %v4059 = vpop.f32.mrf.mxu0
      %v4060 = vadd.f32 %v4011, %v4059
      %v4061 = vpop.f32.mrf.mxu0
      %v4062 = vadd.f32 %v4013, %v4061
      %4063 = vmatmul.bf16.gmra.mxu0 %v3833
      %v4064 = vpop.f32.mrf.mxu0
      %v4065 = vadd.f32 %v4016, %v4064
      %v4066 = vpop.f32.mrf.mxu0
      %v4067 = vadd.f32 %v4018, %v4066
      %4068 = vmatmul.bf16.gmra.mxu0 %v3836
      %v4069 = vpop.f32.mrf.mxu0
      %v4070 = vadd.f32 %v4021, %v4069
      %v4071 = vpop.f32.mrf.mxu0
      %v4072 = vadd.f32 %v4023, %v4071
      %4073 = vmatmul.bf16.gmra.mxu0 %v3839
      %v4074 = vpop.f32.mrf.mxu0
      %v4075 = vadd.f32 %v4026, %v4074
      %v4076 = vpop.f32.mrf.mxu0
      %v4077 = vadd.f32 %v4028, %v4076
      %4078 = vmatmul.bf16.gmra.mxu0 %v3842
      %v4079 = vpop.f32.mrf.mxu0
      %v4080 = vadd.f32 %v4031, %v4079
      %v4081 = vpop.f32.mrf.mxu0
      %v4082 = vadd.f32 %v4033, %v4081
      %4083 = vmatmul.bf16.gmra.mxu0 %v3845
      %v4084 = vpop.f32.mrf.mxu0
      %v4085 = vadd.f32 %v4036, %v4084
      %v4086 = vpop.f32.mrf.mxu0
      %v4087 = vadd.f32 %v4038, %v4086
      %4088 = vmatmul.bf16.gmra.mxu0 %v3848
      %v4089 = vpop.f32.mrf.mxu0
      %v4090 = vadd.f32 %v4041, %v4089
      %v4091 = vpop.f32.mrf.mxu0
      %v4092 = vadd.f32 %v4043, %v4091
      %4093 = vmatmul.bf16.gmra.mxu0 %v3851
      %v4094 = vpop.f32.mrf.mxu0
      %v4095 = vadd.f32 %v4046, %v4094
      %v4096 = vpop.f32.mrf.mxu0
      %v4097 = vadd.f32 %v4048, %v4096
      %4098 = vdwg.mxu0
      %4099 = vmatpush.bf16.msra.mxu0 0
      %4100 = vmatpush.bf16.msra.mxu0 0
      %4101 = vmatpush.bf16.msra.mxu0 0
      %4102 = vmatpush.bf16.msra.mxu0 0
      %4103 = vmatpush.bf16.msra.mxu0 0
      %4104 = vmatpush.bf16.msra.mxu0 0
      %4105 = vmatpush.bf16.msra.mxu0 %v3958
      %4106 = vmatpush.bf16.msra.mxu0 %v3957
      %4107 = vmatmul.bf16.gmra.mxu0 %v3978
      %v4108 = vpop.f32.mrf.mxu0
      %v4109 = vadd.f32 %v4060, %v4108
      %v4110 = vpop.f32.mrf.mxu0
      %v4111 = vadd.f32 %v4062, %v4110
      %4112 = vmatmul.bf16.gmra.mxu0 %v3981
      %v4113 = vpop.f32.mrf.mxu0
      %v4114 = vadd.f32 %v4065, %v4113
      %v4115 = vpop.f32.mrf.mxu0
      %v4116 = vadd.f32 %v4067, %v4115
      %4117 = vmatmul.bf16.gmra.mxu0 %v3984
      %v4118 = vpop.f32.mrf.mxu0
      %v4119 = vadd.f32 %v4070, %v4118
      %v4120 = vpop.f32.mrf.mxu0
      %v4121 = vadd.f32 %v4072, %v4120
      %4122 = vmatmul.bf16.gmra.mxu0 %v3987
      %v4123 = vpop.f32.mrf.mxu0
      %v4124 = vadd.f32 %v4075, %v4123
      %v4125 = vpop.f32.mrf.mxu0
      %v4126 = vadd.f32 %v4077, %v4125
      %4127 = vmatmul.bf16.gmra.mxu0 %v3990
      %v4128 = vpop.f32.mrf.mxu0
      %v4129 = vadd.f32 %v4080, %v4128
      %v4130 = vpop.f32.mrf.mxu0
      %v4131 = vadd.f32 %v4082, %v4130
      %4132 = vmatmul.bf16.gmra.mxu0 %v3993
      %v4133 = vpop.f32.mrf.mxu0
      %v4134 = vadd.f32 %v4085, %v4133
      %v4135 = vpop.f32.mrf.mxu0
      %v4136 = vadd.f32 %v4087, %v4135
      %4137 = vmatmul.bf16.gmra.mxu0 %v3996
      %v4138 = vpop.f32.mrf.mxu0
      %v4139 = vadd.f32 %v4090, %v4138
      %v4140 = vpop.f32.mrf.mxu0
      %v4141 = vadd.f32 %v4092, %v4140
      %4142 = vmatmul.bf16.gmra.mxu0 %v3999
      %v4143 = vpop.f32.mrf.mxu0
      %v4144 = vadd.f32 %v4095, %v4143
      %v4145 = vpop.f32.mrf.mxu0
      %v4146 = vadd.f32 %v4097, %v4145
      %4147 = vdwg.mxu0
      %v4164 = vunpack.c.l.b16 %v3660
      %v4165 = vunpack.c.l.b16 %v3661
      %v4166 = vunpack.c.l.b16 %v3662
      %v4167 = vunpack.c.l.b16 %v3663
      %v4168 = vunpack.c.l.b16 %v3664
      %v4169 = vunpack.c.l.b16 %v3665
      %v4170 = vunpack.c.l.b16 %v3666
      %v4171 = vunpack.c.l.b16 %v3667
      %v4172 = vunpack.c.l.b16 %v3668
      %v4173 = vunpack.c.l.b16 %v3669
      %v4174 = vunpack.c.l.b16 %v3670
      %v4175 = vunpack.c.l.b16 %v3671
      %v4176 = vunpack.c.l.b16 %v3672
      %v4177 = vunpack.c.l.b16 %v3673
      %v4178 = vunpack.c.l.b16 %v3674
      %v4179 = vunpack.c.l.b16 %v3675
      %v4180 = vpack.c.b16 %v4165, %v4164
      %v4181 = vpack.c.b16 %v4167, %v4166
      %v4182 = vpack.c.b16 %v4169, %v4168
      %v4183 = vpack.c.b16 %v4171, %v4170
      %v4184 = vpack.c.b16 %v4173, %v4172
      %v4185 = vpack.c.b16 %v4175, %v4174
      %v4186 = vpack.c.b16 %v4177, %v4176
      %v4187 = vpack.c.b16 %v4179, %v4178
      %v4193 = vunpack.c.l.b16 %v3708
      %v4194 = vunpack.c.l.b16 %v3709
      %v4195 = vunpack.c.l.b16 %v3710
      %v4196 = vunpack.c.l.b16 %v3711
      %v4197 = vunpack.c.l.b16 %v3712
      %v4198 = vpack.c.b16 %v4194, %v4193
      %v4199 = vpack.c.b16 %v4196, %v4195
      %v4200 = vpack.c.b16 %v4197, %v4197
      %v4204 = vsel %vm2555, %v4180, 0
      %v4207 = vsel %vm2555, %v4181, 0
      %v4210 = vsel %vm2555, %v4182, 0
      %v4213 = vsel %vm2555, %v4183, 0
      %v4216 = vsel %vm2555, %v4184, 0
      %v4219 = vsel %vm2555, %v4185, 0
      %v4222 = vsel %vm2555, %v4186, 0
      %v4225 = vsel %vm2555, %v4187, 0
      %v4228 = vsel %vm2580, %v4200, 0
      %4230 = vmatpush.bf16.msra.mxu0 0
      %4231 = vmatpush.bf16.msra.mxu0 0
      %4232 = vmatpush.bf16.msra.mxu0 0
      %4233 = vmatpush.bf16.msra.mxu0 0
      %4234 = vmatpush.bf16.msra.mxu0 0
      %4235 = vmatpush.bf16.msra.mxu0 %v4228
      %4236 = vmatpush.bf16.msra.mxu0 %v4199
      %4237 = vmatpush.bf16.msra.mxu0 %v4198
      %4238 = vmatmul.bf16.gmra.mxu0 %v4204
      %v4239 = vpop.f32.mrf.mxu0
      %v4240 = vadd.f32 %v4109, %v4239
      %v4241 = vpop.f32.mrf.mxu0
      %v4242 = vadd.f32 %v4111, %v4241
      %4243 = vmatmul.bf16.gmra.mxu0 %v4207
      %v4244 = vpop.f32.mrf.mxu0
      %v4245 = vadd.f32 %v4114, %v4244
      %v4246 = vpop.f32.mrf.mxu0
      %v4247 = vadd.f32 %v4116, %v4246
      %4248 = vmatmul.bf16.gmra.mxu0 %v4210
      %v4249 = vpop.f32.mrf.mxu0
      %v4250 = vadd.f32 %v4119, %v4249
      %v4251 = vpop.f32.mrf.mxu0
      %v4252 = vadd.f32 %v4121, %v4251
      %4253 = vmatmul.bf16.gmra.mxu0 %v4213
      %v4254 = vpop.f32.mrf.mxu0
      %v4255 = vadd.f32 %v4124, %v4254
      %v4256 = vpop.f32.mrf.mxu0
      %v4257 = vadd.f32 %v4126, %v4256
      %4258 = vmatmul.bf16.gmra.mxu0 %v4216
      %v4259 = vpop.f32.mrf.mxu0
      %v4260 = vadd.f32 %v4129, %v4259
      %v4261 = vpop.f32.mrf.mxu0
      %v4262 = vadd.f32 %v4131, %v4261
      %4263 = vmatmul.bf16.gmra.mxu0 %v4219
      %v4264 = vpop.f32.mrf.mxu0
      %v4265 = vadd.f32 %v4134, %v4264
      %v4266 = vpop.f32.mrf.mxu0
      %v4267 = vadd.f32 %v4136, %v4266
      %4268 = vmatmul.bf16.gmra.mxu0 %v4222
      %v4269 = vpop.f32.mrf.mxu0
      %v4270 = vadd.f32 %v4139, %v4269
      %v4271 = vpop.f32.mrf.mxu0
      %v4272 = vadd.f32 %v4141, %v4271
      %4273 = vmatmul.bf16.gmra.mxu0 %v4225
      %v4274 = vpop.f32.mrf.mxu0
      %v4275 = vadd.f32 %v4144, %v4274
      %v4276 = vpop.f32.mrf.mxu0
      %v4277 = vadd.f32 %v4146, %v4276
      %4278 = vdwg.mxu0
      %v4279 = vld [vmem:[%s3] sm:$0x1]
      %v4281 = vperm.slane %v4279, 0
      %v4283 = vadd.f32 %v4240, %v4281
      %v4284 = vadd.f32 %v4242, %v4281
      %v4285 = vadd.f32 %v4245, %v4281
      %v4286 = vadd.f32 %v4247, %v4281
      %v4287 = vadd.f32 %v4250, %v4281
      %v4288 = vadd.f32 %v4252, %v4281
      %v4289 = vadd.f32 %v4255, %v4281
      %v4290 = vadd.f32 %v4257, %v4281
      %v4291 = vadd.f32 %v4260, %v4281
      %v4292 = vadd.f32 %v4262, %v4281
      %v4293 = vadd.f32 %v4265, %v4281
      %v4294 = vadd.f32 %v4267, %v4281
      %v4295 = vadd.f32 %v4270, %v4281
      %v4296 = vadd.f32 %v4272, %v4281
      %v4297 = vadd.f32 %v4275, %v4281
      %v4298 = vadd.f32 %v4277, %v4281
      %v4299 = vxor.u32 %v4283, 2147483648
      %v4300 = vxor.u32 %v4284, 2147483648
      %v4301 = vxor.u32 %v4285, 2147483648
      %v4302 = vxor.u32 %v4286, 2147483648
      %v4303 = vxor.u32 %v4287, 2147483648
      %v4304 = vxor.u32 %v4288, 2147483648
      %v4305 = vxor.u32 %v4289, 2147483648
      %v4306 = vxor.u32 %v4290, 2147483648
      %v4307 = vxor.u32 %v4291, 2147483648
      %v4308 = vxor.u32 %v4292, 2147483648
      %v4309 = vxor.u32 %v4293, 2147483648
      %v4310 = vxor.u32 %v4294, 2147483648
      %v4311 = vxor.u32 %v4295, 2147483648
      %v4312 = vxor.u32 %v4296, 2147483648
      %v4313 = vxor.u32 %v4297, 2147483648
      %v4314 = vxor.u32 %v4298, 2147483648
      %v4315 = vmul.f32 %v4299, 1.442695
      %v4316 = vpow.pop %v4315
      %v4317 = vmul.f32 %v4300, 1.442695
      %v4318 = vpow.pop %v4317
      %v4319 = vmul.f32 %v4301, 1.442695
      %v4320 = vpow.pop %v4319
      %v4321 = vmul.f32 %v4302, 1.442695
      %v4322 = vpow.pop %v4321
      %v4323 = vmul.f32 %v4303, 1.442695
      %v4324 = vpow.pop %v4323
      %v4325 = vmul.f32 %v4304, 1.442695
      %v4326 = vpow.pop %v4325
      %v4327 = vmul.f32 %v4305, 1.442695
      %v4328 = vpow.pop %v4327
      %v4329 = vmul.f32 %v4306, 1.442695
      %v4330 = vpow.pop %v4329
      %v4331 = vmul.f32 %v4307, 1.442695
      %v4332 = vpow.pop %v4331
      %v4333 = vmul.f32 %v4308, 1.442695
      %v4334 = vpow.pop %v4333
      %v4335 = vmul.f32 %v4309, 1.442695
      %v4336 = vpow.pop %v4335
      %v4337 = vmul.f32 %v4310, 1.442695
      %v4338 = vpow.pop %v4337
      %v4339 = vmul.f32 %v4311, 1.442695
      %v4340 = vpow.pop %v4339
      %v4341 = vmul.f32 %v4312, 1.442695
      %v4342 = vpow.pop %v4341
      %v4343 = vmul.f32 %v4313, 1.442695
      %v4344 = vpow.pop %v4343
      %v4345 = vmul.f32 %v4314, 1.442695
      %v4346 = vpow.pop %v4345
      %v4347 = vadd.f32 %v4316, 1.0
      %v4348 = vadd.f32 %v4318, 1.0
      %v4349 = vadd.f32 %v4320, 1.0
      %v4350 = vadd.f32 %v4322, 1.0
      %v4351 = vadd.f32 %v4324, 1.0
      %v4352 = vadd.f32 %v4326, 1.0
      %v4353 = vadd.f32 %v4328, 1.0
      %v4354 = vadd.f32 %v4330, 1.0
      %v4355 = vadd.f32 %v4332, 1.0
      %v4356 = vadd.f32 %v4334, 1.0
      %v4357 = vadd.f32 %v4336, 1.0
      %v4358 = vadd.f32 %v4338, 1.0
      %v4359 = vadd.f32 %v4340, 1.0
      %v4360 = vadd.f32 %v4342, 1.0
      %v4361 = vadd.f32 %v4344, 1.0
      %v4362 = vadd.f32 %v4346, 1.0
      %v4363 = vrcp.pop %v4347
      %v4364 = vmul.f32 %v4347, %v4363
      %v4365 = vsub.f32 1.0, %v4364
      %v4366 = vmul.f32 %v4363, %v4365
      %v4367 = vadd.f32 %v4363, %v4366
      %vm4368 = vweird.f32 %v4347
      %vm4369 = vweird.f32 %v4363
      %vm4370 = vmor %vm4368, %vm4369
      %v4371 = vsel %vm4370, %v4363, %v4367
      %v4372 = vand.u32 2147483647, %v4347
      %vm4373 = vcmp.eq.f32.partialorder %v4372, 8.507059e+37
      %v4374 = vand.u32 %v4347, 2147483648
      %v4375 = vor.u32 1.1754944e-38, %v4374
      %v4376 = vsel %vm4373, %v4375, %v4371
      %v4377 = vmul.f32 1.0, %v4376
      %v4378 = vrcp.pop %v4348
      %v4379 = vmul.f32 %v4348, %v4378
      %v4380 = vsub.f32 1.0, %v4379
      %v4381 = vmul.f32 %v4378, %v4380
      %v4382 = vadd.f32 %v4378, %v4381
      %vm4383 = vweird.f32 %v4348
      %vm4384 = vweird.f32 %v4378
      %vm4385 = vmor %vm4383, %vm4384
      %v4386 = vsel %vm4385, %v4378, %v4382
      %v4387 = vand.u32 2147483647, %v4348
      %vm4388 = vcmp.eq.f32.partialorder %v4387, 8.507059e+37
      %v4389 = vand.u32 %v4348, 2147483648
      %v4390 = vor.u32 1.1754944e-38, %v4389
      %v4391 = vsel %vm4388, %v4390, %v4386
      %v4392 = vmul.f32 1.0, %v4391
      %v4393 = vrcp.pop %v4349
      %v4394 = vmul.f32 %v4349, %v4393
      %v4395 = vsub.f32 1.0, %v4394
      %v4396 = vmul.f32 %v4393, %v4395
      %v4397 = vadd.f32 %v4393, %v4396
      %vm4398 = vweird.f32 %v4349
      %vm4399 = vweird.f32 %v4393
      %vm4400 = vmor %vm4398, %vm4399
      %v4401 = vsel %vm4400, %v4393, %v4397
      %v4402 = vand.u32 2147483647, %v4349
      %vm4403 = vcmp.eq.f32.partialorder %v4402, 8.507059e+37
      %v4404 = vand.u32 %v4349, 2147483648
      %v4405 = vor.u32 1.1754944e-38, %v4404
      %v4406 = vsel %vm4403, %v4405, %v4401
      %v4407 = vmul.f32 1.0, %v4406
      %v4408 = vrcp.pop %v4350
      %v4409 = vmul.f32 %v4350, %v4408
      %v4410 = vsub.f32 1.0, %v4409
      %v4411 = vmul.f32 %v4408, %v4410
      %v4412 = vadd.f32 %v4408, %v4411
      %vm4413 = vweird.f32 %v4350
      %vm4414 = vweird.f32 %v4408
      %vm4415 = vmor %vm4413, %vm4414
      %v4416 = vsel %vm4415, %v4408, %v4412
      %v4417 = vand.u32 2147483647, %v4350
      %vm4418 = vcmp.eq.f32.partialorder %v4417, 8.507059e+37
      %v4419 = vand.u32 %v4350, 2147483648
      %v4420 = vor.u32 1.1754944e-38, %v4419
      %v4421 = vsel %vm4418, %v4420, %v4416
      %v4422 = vmul.f32 1.0, %v4421
      %v4423 = vrcp.pop %v4351
      %v4424 = vmul.f32 %v4351, %v4423
      %v4425 = vsub.f32 1.0, %v4424
      %v4426 = vmul.f32 %v4423, %v4425
      %v4427 = vadd.f32 %v4423, %v4426
      %vm4428 = vweird.f32 %v4351
      %vm4429 = vweird.f32 %v4423
      %vm4430 = vmor %vm4428, %vm4429
      %v4431 = vsel %vm4430, %v4423, %v4427
      %v4432 = vand.u32 2147483647, %v4351
      %vm4433 = vcmp.eq.f32.partialorder %v4432, 8.507059e+37
      %v4434 = vand.u32 %v4351, 2147483648
      %v4435 = vor.u32 1.1754944e-38, %v4434
      %v4436 = vsel %vm4433, %v4435, %v4431
      %v4437 = vmul.f32 1.0, %v4436
      %v4438 = vrcp.pop %v4352
      %v4439 = vmul.f32 %v4352, %v4438
      %v4440 = vsub.f32 1.0, %v4439
      %v4441 = vmul.f32 %v4438, %v4440
      %v4442 = vadd.f32 %v4438, %v4441
      %vm4443 = vweird.f32 %v4352
      %vm4444 = vweird.f32 %v4438
      %vm4445 = vmor %vm4443, %vm4444
      %v4446 = vsel %vm4445, %v4438, %v4442
      %v4447 = vand.u32 2147483647, %v4352
      %vm4448 = vcmp.eq.f32.partialorder %v4447, 8.507059e+37
      %v4449 = vand.u32 %v4352, 2147483648
      %v4450 = vor.u32 1.1754944e-38, %v4449
      %v4451 = vsel %vm4448, %v4450, %v4446
      %v4452 = vmul.f32 1.0, %v4451
      %v4453 = vrcp.pop %v4353
      %v4454 = vmul.f32 %v4353, %v4453
      %v4455 = vsub.f32 1.0, %v4454
      %v4456 = vmul.f32 %v4453, %v4455
      %v4457 = vadd.f32 %v4453, %v4456
      %vm4458 = vweird.f32 %v4353
      %vm4459 = vweird.f32 %v4453
      %vm4460 = vmor %vm4458, %vm4459
      %v4461 = vsel %vm4460, %v4453, %v4457
      %v4462 = vand.u32 2147483647, %v4353
      %vm4463 = vcmp.eq.f32.partialorder %v4462, 8.507059e+37
      %v4464 = vand.u32 %v4353, 2147483648
      %v4465 = vor.u32 1.1754944e-38, %v4464
      %v4466 = vsel %vm4463, %v4465, %v4461
      %v4467 = vmul.f32 1.0, %v4466
      %v4468 = vrcp.pop %v4354
      %v4469 = vmul.f32 %v4354, %v4468
      %v4470 = vsub.f32 1.0, %v4469
      %v4471 = vmul.f32 %v4468, %v4470
      %v4472 = vadd.f32 %v4468, %v4471
      %vm4473 = vweird.f32 %v4354
      %vm4474 = vweird.f32 %v4468
      %vm4475 = vmor %vm4473, %vm4474
      %v4476 = vsel %vm4475, %v4468, %v4472
      %v4477 = vand.u32 2147483647, %v4354
      %vm4478 = vcmp.eq.f32.partialorder %v4477, 8.507059e+37
      %v4479 = vand.u32 %v4354, 2147483648
      %v4480 = vor.u32 1.1754944e-38, %v4479
      %v4481 = vsel %vm4478, %v4480, %v4476
      %v4482 = vmul.f32 1.0, %v4481
      %v4483 = vrcp.pop %v4355
      %v4484 = vmul.f32 %v4355, %v4483
      %v4485 = vsub.f32 1.0, %v4484
      %v4486 = vmul.f32 %v4483, %v4485
      %v4487 = vadd.f32 %v4483, %v4486
      %vm4488 = vweird.f32 %v4355
      %vm4489 = vweird.f32 %v4483
      %vm4490 = vmor %vm4488, %vm4489
      %v4491 = vsel %vm4490, %v4483, %v4487
      %v4492 = vand.u32 2147483647, %v4355
      %vm4493 = vcmp.eq.f32.partialorder %v4492, 8.507059e+37
      %v4494 = vand.u32 %v4355, 2147483648
      %v4495 = vor.u32 1.1754944e-38, %v4494
      %v4496 = vsel %vm4493, %v4495, %v4491
      %v4497 = vmul.f32 1.0, %v4496
      %v4498 = vrcp.pop %v4356
      %v4499 = vmul.f32 %v4356, %v4498
      %v4500 = vsub.f32 1.0, %v4499
      %v4501 = vmul.f32 %v4498, %v4500
      %v4502 = vadd.f32 %v4498, %v4501
      %vm4503 = vweird.f32 %v4356
      %vm4504 = vweird.f32 %v4498
      %vm4505 = vmor %vm4503, %vm4504
      %v4506 = vsel %vm4505, %v4498, %v4502
      %v4507 = vand.u32 2147483647, %v4356
      %vm4508 = vcmp.eq.f32.partialorder %v4507, 8.507059e+37
      %v4509 = vand.u32 %v4356, 2147483648
      %v4510 = vor.u32 1.1754944e-38, %v4509
      %v4511 = vsel %vm4508, %v4510, %v4506
      %v4512 = vmul.f32 1.0, %v4511
      %v4513 = vrcp.pop %v4357
      %v4514 = vmul.f32 %v4357, %v4513
      %v4515 = vsub.f32 1.0, %v4514
      %v4516 = vmul.f32 %v4513, %v4515
      %v4517 = vadd.f32 %v4513, %v4516
      %vm4518 = vweird.f32 %v4357
      %vm4519 = vweird.f32 %v4513
      %vm4520 = vmor %vm4518, %vm4519
      %v4521 = vsel %vm4520, %v4513, %v4517
      %v4522 = vand.u32 2147483647, %v4357
      %vm4523 = vcmp.eq.f32.partialorder %v4522, 8.507059e+37
      %v4524 = vand.u32 %v4357, 2147483648
      %v4525 = vor.u32 1.1754944e-38, %v4524
      %v4526 = vsel %vm4523, %v4525, %v4521
      %v4527 = vmul.f32 1.0, %v4526
      %v4528 = vrcp.pop %v4358
      %v4529 = vmul.f32 %v4358, %v4528
      %v4530 = vsub.f32 1.0, %v4529
      %v4531 = vmul.f32 %v4528, %v4530
      %v4532 = vadd.f32 %v4528, %v4531
      %vm4533 = vweird.f32 %v4358
      %vm4534 = vweird.f32 %v4528
      %vm4535 = vmor %vm4533, %vm4534
      %v4536 = vsel %vm4535, %v4528, %v4532
      %v4537 = vand.u32 2147483647, %v4358
      %vm4538 = vcmp.eq.f32.partialorder %v4537, 8.507059e+37
      %v4539 = vand.u32 %v4358, 2147483648
      %v4540 = vor.u32 1.1754944e-38, %v4539
      %v4541 = vsel %vm4538, %v4540, %v4536
      %v4542 = vmul.f32 1.0, %v4541
      %v4543 = vrcp.pop %v4359
      %v4544 = vmul.f32 %v4359, %v4543
      %v4545 = vsub.f32 1.0, %v4544
      %v4546 = vmul.f32 %v4543, %v4545
      %v4547 = vadd.f32 %v4543, %v4546
      %vm4548 = vweird.f32 %v4359
      %vm4549 = vweird.f32 %v4543
      %vm4550 = vmor %vm4548, %vm4549
      %v4551 = vsel %vm4550, %v4543, %v4547
      %v4552 = vand.u32 2147483647, %v4359
      %vm4553 = vcmp.eq.f32.partialorder %v4552, 8.507059e+37
      %v4554 = vand.u32 %v4359, 2147483648
      %v4555 = vor.u32 1.1754944e-38, %v4554
      %v4556 = vsel %vm4553, %v4555, %v4551
      %v4557 = vmul.f32 1.0, %v4556
      %v4558 = vrcp.pop %v4360
      %v4559 = vmul.f32 %v4360, %v4558
      %v4560 = vsub.f32 1.0, %v4559
      %v4561 = vmul.f32 %v4558, %v4560
      %v4562 = vadd.f32 %v4558, %v4561
      %vm4563 = vweird.f32 %v4360
      %vm4564 = vweird.f32 %v4558
      %vm4565 = vmor %vm4563, %vm4564
      %v4566 = vsel %vm4565, %v4558, %v4562
      %v4567 = vand.u32 2147483647, %v4360
      %vm4568 = vcmp.eq.f32.partialorder %v4567, 8.507059e+37
      %v4569 = vand.u32 %v4360, 2147483648
      %v4570 = vor.u32 1.1754944e-38, %v4569
      %v4571 = vsel %vm4568, %v4570, %v4566
      %v4572 = vmul.f32 1.0, %v4571
      %v4573 = vrcp.pop %v4361
      %v4574 = vmul.f32 %v4361, %v4573
      %v4575 = vsub.f32 1.0, %v4574
      %v4576 = vmul.f32 %v4573, %v4575
      %v4577 = vadd.f32 %v4573, %v4576
      %vm4578 = vweird.f32 %v4361
      %vm4579 = vweird.f32 %v4573
      %vm4580 = vmor %vm4578, %vm4579
      %v4581 = vsel %vm4580, %v4573, %v4577
      %v4582 = vand.u32 2147483647, %v4361
      %vm4583 = vcmp.eq.f32.partialorder %v4582, 8.507059e+37
      %v4584 = vand.u32 %v4361, 2147483648
      %v4585 = vor.u32 1.1754944e-38, %v4584
      %v4586 = vsel %vm4583, %v4585, %v4581
      %v4587 = vmul.f32 1.0, %v4586
      %v4588 = vrcp.pop %v4362
      %v4589 = vmul.f32 %v4362, %v4588
      %v4590 = vsub.f32 1.0, %v4589
      %v4591 = vmul.f32 %v4588, %v4590
      %v4592 = vadd.f32 %v4588, %v4591
      %vm4593 = vweird.f32 %v4362
      %vm4594 = vweird.f32 %v4588
      %vm4595 = vmor %vm4593, %vm4594
      %v4596 = vsel %vm4595, %v4588, %v4592
      %v4597 = vand.u32 2147483647, %v4362
      %vm4598 = vcmp.eq.f32.partialorder %v4597, 8.507059e+37
      %v4599 = vand.u32 %v4362, 2147483648
      %v4600 = vor.u32 1.1754944e-38, %v4599
      %v4601 = vsel %vm4598, %v4600, %v4596
      %v4602 = vmul.f32 1.0, %v4601
      %v4603 = vtanh.pop %v4283
      %v4604 = vtanh.pop %v4284
      %v4605 = vtanh.pop %v4285
      %v4606 = vtanh.pop %v4286
      %v4607 = vtanh.pop %v4287
      %v4608 = vtanh.pop %v4288
      %v4609 = vtanh.pop %v4289
      %v4610 = vtanh.pop %v4290
      %v4611 = vtanh.pop %v4291
      %v4612 = vtanh.pop %v4292
      %v4613 = vtanh.pop %v4293
      %v4614 = vtanh.pop %v4294
      %v4615 = vtanh.pop %v4295
      %v4616 = vtanh.pop %v4296
      %v4617 = vtanh.pop %v4297
      %v4618 = vtanh.pop %v4298
      %v4619 = vld [vmem:[#allocation3 + $0x80] sm:$0xff]
      %v4620 = vld [vmem:[#allocation3 + $0x88] sm:$0xff]
      %v4621 = vld [vmem:[#allocation3 + $0x90] sm:$0xff]
      %v4622 = vld [vmem:[#allocation3 + $0x98] sm:$0xff]
      %v4623 = vld [vmem:[#allocation3 + $0xa0] sm:$0xff]
      %v4624 = vld [vmem:[#allocation3 + $0xa8] sm:$0xff]
      %v4625 = vld [vmem:[#allocation3 + $0xb0] sm:$0xff]
      %v4626 = vld [vmem:[#allocation3 + $0xb8] sm:$0xff]
      %v4627 = vld [vmem:[#allocation3 + $0xc0] sm:$0xff]
      %v4628 = vld [vmem:[#allocation3 + $0xc8] sm:$0xff]
      %v4629 = vld [vmem:[#allocation3 + $0xd0] sm:$0xff]
      %v4630 = vld [vmem:[#allocation3 + $0xd8] sm:$0xff]
      %v4631 = vld [vmem:[#allocation3 + $0xe0] sm:$0xff]
      %v4632 = vld [vmem:[#allocation3 + $0xe8] sm:$0xff]
      %v4633 = vld [vmem:[#allocation3 + $0xf0] sm:$0xff]
      %v4634 = vld [vmem:[#allocation3 + $0xf8] sm:$0xff]
      %4651 = vrot.lane.b32.xlu0 %v4619, 32
      %v4652 = vpop.permute.xlu0 %4651
      %4653 = vrot.lane.b32.xlu0 %v4620, 32
      %v4654 = vpop.permute.xlu0 %4653
      %4655 = vrot.lane.b32.xlu0 %v4621, 32
      %v4656 = vpop.permute.xlu0 %4655
      %4657 = vrot.lane.b32.xlu0 %v4622, 32
      %v4658 = vpop.permute.xlu0 %4657
      %4659 = vrot.lane.b32.xlu0 %v4623, 32
      %v4660 = vpop.permute.xlu0 %4659
      %4661 = vrot.lane.b32.xlu0 %v4624, 32
      %v4662 = vpop.permute.xlu0 %4661
      %4663 = vrot.lane.b32.xlu0 %v4625, 32
      %v4664 = vpop.permute.xlu0 %4663
      %4665 = vrot.lane.b32.xlu0 %v4626, 32
      %v4666 = vpop.permute.xlu0 %4665
      %4667 = vrot.lane.b32.xlu0 %v4627, 32
      %v4668 = vpop.permute.xlu0 %4667
      %4669 = vrot.lane.b32.xlu0 %v4628, 32
      %v4670 = vpop.permute.xlu0 %4669
      %4671 = vrot.lane.b32.xlu0 %v4629, 32
      %v4672 = vpop.permute.xlu0 %4671
      %4673 = vrot.lane.b32.xlu0 %v4630, 32
      %v4674 = vpop.permute.xlu0 %4673
      %4675 = vrot.lane.b32.xlu0 %v4631, 32
      %v4676 = vpop.permute.xlu0 %4675
      %4677 = vrot.lane.b32.xlu0 %v4632, 32
      %v4678 = vpop.permute.xlu0 %4677
      %4679 = vrot.lane.b32.xlu0 %v4633, 32
      %v4680 = vpop.permute.xlu0 %4679
      %4681 = vrot.lane.b32.xlu0 %v4634, 32
      %v4682 = vpop.permute.xlu0 %4681
      %v4699 = vmul.f32 %v4377, %v4652
      %v4700 = vmul.f32 %v4392, %v4654
      %v4701 = vmul.f32 %v4407, %v4656
      %v4702 = vmul.f32 %v4422, %v4658
      %v4703 = vmul.f32 %v4437, %v4660
      %v4704 = vmul.f32 %v4452, %v4662
      %v4705 = vmul.f32 %v4467, %v4664
      %v4706 = vmul.f32 %v4482, %v4666
      %v4707 = vmul.f32 %v4497, %v4668
      %v4708 = vmul.f32 %v4512, %v4670
      %v4709 = vmul.f32 %v4527, %v4672
      %v4710 = vmul.f32 %v4542, %v4674
      %v4711 = vmul.f32 %v4557, %v4676
      %v4712 = vmul.f32 %v4572, %v4678
      %v4713 = vmul.f32 %v4587, %v4680
      %v4714 = vmul.f32 %v4602, %v4682
      %4731 = vrot.lane.b32.xlu0 %v4603, 64
      %v4732 = vpop.permute.xlu0 %4731
      %4733 = vrot.lane.b32.xlu0 %v4604, 64
      %v4734 = vpop.permute.xlu0 %4733
      %4735 = vrot.lane.b32.xlu0 %v4605, 64
      %v4736 = vpop.permute.xlu0 %4735
      %4737 = vrot.lane.b32.xlu0 %v4606, 64
      %v4738 = vpop.permute.xlu0 %4737
      %4739 = vrot.lane.b32.xlu0 %v4607, 64
      %v4740 = vpop.permute.xlu0 %4739
      %4741 = vrot.lane.b32.xlu0 %v4608, 64
      %v4742 = vpop.permute.xlu0 %4741
      %4743 = vrot.lane.b32.xlu0 %v4609, 64
      %v4744 = vpop.permute.xlu0 %4743
      %4745 = vrot.lane.b32.xlu0 %v4610, 64
      %v4746 = vpop.permute.xlu0 %4745
      %4747 = vrot.lane.b32.xlu0 %v4611, 64
      %v4748 = vpop.permute.xlu0 %4747
      %4749 = vrot.lane.b32.xlu0 %v4612, 64
      %v4750 = vpop.permute.xlu0 %4749
      %4751 = vrot.lane.b32.xlu0 %v4613, 64
      %v4752 = vpop.permute.xlu0 %4751
      %4753 = vrot.lane.b32.xlu0 %v4614, 64
      %v4754 = vpop.permute.xlu0 %4753
      %4755 = vrot.lane.b32.xlu0 %v4615, 64
      %v4756 = vpop.permute.xlu0 %4755
      %4757 = vrot.lane.b32.xlu0 %v4616, 64
      %v4758 = vpop.permute.xlu0 %4757
      %4759 = vrot.lane.b32.xlu0 %v4617, 64
      %v4760 = vpop.permute.xlu0 %4759
      %4761 = vrot.lane.b32.xlu0 %v4618, 64
      %v4762 = vpop.permute.xlu0 %4761
      %v4779 = vmul.f32 %v4377, %v4732
      %v4780 = vmul.f32 %v4392, %v4734
      %v4781 = vmul.f32 %v4407, %v4736
      %v4782 = vmul.f32 %v4422, %v4738
      %v4783 = vmul.f32 %v4437, %v4740
      %v4784 = vmul.f32 %v4452, %v4742
      %v4785 = vmul.f32 %v4467, %v4744
      %v4786 = vmul.f32 %v4482, %v4746
      %v4787 = vmul.f32 %v4497, %v4748
      %v4788 = vmul.f32 %v4512, %v4750
      %v4789 = vmul.f32 %v4527, %v4752
      %v4790 = vmul.f32 %v4542, %v4754
      %v4791 = vmul.f32 %v4557, %v4756
      %v4792 = vmul.f32 %v4572, %v4758
      %v4793 = vmul.f32 %v4587, %v4760
      %v4794 = vmul.f32 %v4602, %v4762
      %4811 = vrot.lane.b32.xlu0 %v4779, 32
      %v4812 = vpop.permute.xlu0 %4811
      %4813 = vrot.lane.b32.xlu0 %v4780, 32
      %v4814 = vpop.permute.xlu0 %4813
      %4815 = vrot.lane.b32.xlu0 %v4781, 32
      %v4816 = vpop.permute.xlu0 %4815
      %4817 = vrot.lane.b32.xlu0 %v4782, 32
      %v4818 = vpop.permute.xlu0 %4817
      %4819 = vrot.lane.b32.xlu0 %v4783, 32
      %v4820 = vpop.permute.xlu0 %4819
      %4821 = vrot.lane.b32.xlu0 %v4784, 32
      %v4822 = vpop.permute.xlu0 %4821
      %4823 = vrot.lane.b32.xlu0 %v4785, 32
      %v4824 = vpop.permute.xlu0 %4823
      %4825 = vrot.lane.b32.xlu0 %v4786, 32
      %v4826 = vpop.permute.xlu0 %4825
      %4827 = vrot.lane.b32.xlu0 %v4787, 32
      %v4828 = vpop.permute.xlu0 %4827
      %4829 = vrot.lane.b32.xlu0 %v4788, 32
      %v4830 = vpop.permute.xlu0 %4829
      %4831 = vrot.lane.b32.xlu0 %v4789, 32
      %v4832 = vpop.permute.xlu0 %4831
      %4833 = vrot.lane.b32.xlu0 %v4790, 32
      %v4834 = vpop.permute.xlu0 %4833
      %4835 = vrot.lane.b32.xlu0 %v4791, 32
      %v4836 = vpop.permute.xlu0 %4835
      %4837 = vrot.lane.b32.xlu0 %v4792, 32
      %v4838 = vpop.permute.xlu0 %4837
      %4839 = vrot.lane.b32.xlu0 %v4793, 32
      %v4840 = vpop.permute.xlu0 %4839
      %4841 = vrot.lane.b32.xlu0 %v4794, 32
      %v4842 = vpop.permute.xlu0 %4841
      %v4859 = vadd.f32 %v4699, %v4812
      %v4860 = vadd.f32 %v4700, %v4814
      %v4861 = vadd.f32 %v4701, %v4816
      %v4862 = vadd.f32 %v4702, %v4818
      %v4863 = vadd.f32 %v4703, %v4820
      %v4864 = vadd.f32 %v4704, %v4822
      %v4865 = vadd.f32 %v4705, %v4824
      %v4866 = vadd.f32 %v4706, %v4826
      %v4867 = vadd.f32 %v4707, %v4828
      %v4868 = vadd.f32 %v4708, %v4830
      %v4869 = vadd.f32 %v4709, %v4832
      %v4870 = vadd.f32 %v4710, %v4834
      %v4871 = vadd.f32 %v4711, %v4836
      %v4872 = vadd.f32 %v4712, %v4838
      %v4873 = vadd.f32 %v4713, %v4840
      %v4874 = vadd.f32 %v4714, %v4842
      %v4875 = vtanh.pop %v4859
      %v4876 = vtanh.pop %v4860
      %v4877 = vtanh.pop %v4861
      %v4878 = vtanh.pop %v4862
      %v4879 = vtanh.pop %v4863
      %v4880 = vtanh.pop %v4864
      %v4881 = vtanh.pop %v4865
      %v4882 = vtanh.pop %v4866
      %v4883 = vtanh.pop %v4867
      %v4884 = vtanh.pop %v4868
      %v4885 = vtanh.pop %v4869
      %v4886 = vtanh.pop %v4870
      %v4887 = vtanh.pop %v4871
      %v4888 = vtanh.pop %v4872
      %v4889 = vtanh.pop %v4873
      %v4890 = vtanh.pop %v4874
      %4907 = vrot.lane.b32.xlu0 %v4875, 64
      %v4908 = vpop.permute.xlu0 %4907
      %4909 = vrot.lane.b32.xlu0 %v4876, 64
      %v4910 = vpop.permute.xlu0 %4909
      %4911 = vrot.lane.b32.xlu0 %v4877, 64
      %v4912 = vpop.permute.xlu0 %4911
      %4913 = vrot.lane.b32.xlu0 %v4878, 64
      %v4914 = vpop.permute.xlu0 %4913
      %4915 = vrot.lane.b32.xlu0 %v4879, 64
      %v4916 = vpop.permute.xlu0 %4915
      %4917 = vrot.lane.b32.xlu0 %v4880, 64
      %v4918 = vpop.permute.xlu0 %4917
      %4919 = vrot.lane.b32.xlu0 %v4881, 64
      %v4920 = vpop.permute.xlu0 %4919
      %4921 = vrot.lane.b32.xlu0 %v4882, 64
      %v4922 = vpop.permute.xlu0 %4921
      %4923 = vrot.lane.b32.xlu0 %v4883, 64
      %v4924 = vpop.permute.xlu0 %4923
      %4925 = vrot.lane.b32.xlu0 %v4884, 64
      %v4926 = vpop.permute.xlu0 %4925
      %4927 = vrot.lane.b32.xlu0 %v4885, 64
      %v4928 = vpop.permute.xlu0 %4927
      %4929 = vrot.lane.b32.xlu0 %v4886, 64
      %v4930 = vpop.permute.xlu0 %4929
      %4931 = vrot.lane.b32.xlu0 %v4887, 64
      %v4932 = vpop.permute.xlu0 %4931
      %4933 = vrot.lane.b32.xlu0 %v4888, 64
      %v4934 = vpop.permute.xlu0 %4933
      %4935 = vrot.lane.b32.xlu0 %v4889, 64
      %v4936 = vpop.permute.xlu0 %4935
      %4937 = vrot.lane.b32.xlu0 %v4890, 64
      %v4938 = vpop.permute.xlu0 %4937
      %v4955 = vmul.f32 %v4377, %v4908
      %v4956 = vmul.f32 %v4392, %v4910
      %v4957 = vmul.f32 %v4407, %v4912
      %v4958 = vmul.f32 %v4422, %v4914
      %v4959 = vmul.f32 %v4437, %v4916
      %v4960 = vmul.f32 %v4452, %v4918
      %v4961 = vmul.f32 %v4467, %v4920
      %v4962 = vmul.f32 %v4482, %v4922
      %v4963 = vmul.f32 %v4497, %v4924
      %v4964 = vmul.f32 %v4512, %v4926
      %v4965 = vmul.f32 %v4527, %v4928
      %v4966 = vmul.f32 %v4542, %v4930
      %v4967 = vmul.f32 %v4557, %v4932
      %v4968 = vmul.f32 %v4572, %v4934
      %v4969 = vmul.f32 %v4587, %v4936
      %v4970 = vmul.f32 %v4602, %v4938
      %4987 = vrot.lane.b32.xlu0 %v4859, 96
      %v4988 = vpop.permute.xlu0 %4987
      %4989 = vrot.lane.b32.xlu0 %v4860, 96
      %v4990 = vpop.permute.xlu0 %4989
      %4991 = vrot.lane.b32.xlu0 %v4861, 96
      %v4992 = vpop.permute.xlu0 %4991
      %4993 = vrot.lane.b32.xlu0 %v4862, 96
      %v4994 = vpop.permute.xlu0 %4993
      %4995 = vrot.lane.b32.xlu0 %v4863, 96
      %v4996 = vpop.permute.xlu0 %4995
      %4997 = vrot.lane.b32.xlu0 %v4864, 96
      %v4998 = vpop.permute.xlu0 %4997
      %4999 = vrot.lane.b32.xlu0 %v4865, 96
      %v5000 = vpop.permute.xlu0 %4999
      %5001 = vrot.lane.b32.xlu0 %v4866, 96
      %v5002 = vpop.permute.xlu0 %5001
      %5003 = vrot.lane.b32.xlu0 %v4867, 96
      %v5004 = vpop.permute.xlu0 %5003
      %5005 = vrot.lane.b32.xlu0 %v4868, 96
      %v5006 = vpop.permute.xlu0 %5005
      %5007 = vrot.lane.b32.xlu0 %v4869, 96
      %v5008 = vpop.permute.xlu0 %5007
      %5009 = vrot.lane.b32.xlu0 %v4870, 96
      %v5010 = vpop.permute.xlu0 %5009
      %5011 = vrot.lane.b32.xlu0 %v4871, 96
      %v5012 = vpop.permute.xlu0 %5011
      %5013 = vrot.lane.b32.xlu0 %v4872, 96
      %v5014 = vpop.permute.xlu0 %5013
      %5015 = vrot.lane.b32.xlu0 %v4873, 96
      %v5016 = vpop.permute.xlu0 %5015
      %5017 = vrot.lane.b32.xlu0 %v4874, 96
      %v5018 = vpop.permute.xlu0 %5017
      %5035 = vst.msk [vmem:[#allocation3 + $0x80] sm:$0xff] %vm2328, %v4988
      %5036 = vst.msk [vmem:[#allocation3 + $0x88] sm:$0xff] %vm2328, %v4990
      %5037 = vst.msk [vmem:[#allocation3 + $0x90] sm:$0xff] %vm2328, %v4992
      %5038 = vst.msk [vmem:[#allocation3 + $0x98] sm:$0xff] %vm2328, %v4994
      %5039 = vst.msk [vmem:[#allocation3 + $0xa0] sm:$0xff] %vm2328, %v4996
      %5040 = vst.msk [vmem:[#allocation3 + $0xa8] sm:$0xff] %vm2328, %v4998
      %5041 = vst.msk [vmem:[#allocation3 + $0xb0] sm:$0xff] %vm2328, %v5000
      %5042 = vst.msk [vmem:[#allocation3 + $0xb8] sm:$0xff] %vm2328, %v5002
      %5043 = vst.msk [vmem:[#allocation3 + $0xc0] sm:$0xff] %vm2328, %v5004
      %5044 = vst.msk [vmem:[#allocation3 + $0xc8] sm:$0xff] %vm2328, %v5006
      %5045 = vst.msk [vmem:[#allocation3 + $0xd0] sm:$0xff] %vm2328, %v5008
      %5046 = vst.msk [vmem:[#allocation3 + $0xd8] sm:$0xff] %vm2328, %v5010
      %5047 = vst.msk [vmem:[#allocation3 + $0xe0] sm:$0xff] %vm2328, %v5012
      %5048 = vst.msk [vmem:[#allocation3 + $0xe8] sm:$0xff] %vm2328, %v5014
      %5049 = vst.msk [vmem:[#allocation3 + $0xf0] sm:$0xff] %vm2328, %v5016
      %5050 = vst.msk [vmem:[#allocation3 + $0xf8] sm:$0xff] %vm2328, %v5018
      %5067 = vrot.lane.b32.xlu0 %v4955, 32
      %v5068 = vpop.permute.xlu0 %5067
      %5069 = vrot.lane.b32.xlu0 %v4956, 32
      %v5070 = vpop.permute.xlu0 %5069
      %5071 = vrot.lane.b32.xlu0 %v4957, 32
      %v5072 = vpop.permute.xlu0 %5071
      %5073 = vrot.lane.b32.xlu0 %v4958, 32
      %v5074 = vpop.permute.xlu0 %5073
      %5075 = vrot.lane.b32.xlu0 %v4959, 32
      %v5076 = vpop.permute.xlu0 %5075
      %5077 = vrot.lane.b32.xlu0 %v4960, 32
      %v5078 = vpop.permute.xlu0 %5077
      %5079 = vrot.lane.b32.xlu0 %v4961, 32
      %v5080 = vpop.permute.xlu0 %5079
      %5081 = vrot.lane.b32.xlu0 %v4962, 32
      %v5082 = vpop.permute.xlu0 %5081
      %5083 = vrot.lane.b32.xlu0 %v4963, 32
      %v5084 = vpop.permute.xlu0 %5083
      %5085 = vrot.lane.b32.xlu0 %v4964, 32
      %v5086 = vpop.permute.xlu0 %5085
      %5087 = vrot.lane.b32.xlu0 %v4965, 32
      %v5088 = vpop.permute.xlu0 %5087
      %5089 = vrot.lane.b32.xlu0 %v4966, 32
      %v5090 = vpop.permute.xlu0 %5089
      %5091 = vrot.lane.b32.xlu0 %v4967, 32
      %v5092 = vpop.permute.xlu0 %5091
      %5093 = vrot.lane.b32.xlu0 %v4968, 32
      %v5094 = vpop.permute.xlu0 %5093
      %5095 = vrot.lane.b32.xlu0 %v4969, 32
      %v5096 = vpop.permute.xlu0 %5095
      %5097 = vrot.lane.b32.xlu0 %v4970, 32
      %v5098 = vpop.permute.xlu0 %5097
      %s5115 = scalar_lea.vmem [#allocation2], 216
      %5116 = vst.msk [vmem:[%s5115 + $0x1] sm:$0xff] %vm2328, %v5068
      %5117 = vst.msk [vmem:[%s5115 + $0x9] sm:$0xff] %vm2328, %v5070
      %5118 = vst.msk [vmem:[%s5115 + $0x19] sm:$0xff] %vm2328, %v5072
      %5119 = vst.msk [vmem:[%s5115 + $0x21] sm:$0xff] %vm2328, %v5074
      %5120 = vst.msk [vmem:[%s5115 + $0x31] sm:$0xff] %vm2328, %v5076
      %5121 = vst.msk [vmem:[%s5115 + $0x39] sm:$0xff] %vm2328, %v5078
      %5122 = vst.msk [vmem:[%s5115 + $0x49] sm:$0xff] %vm2328, %v5080
      %5123 = vst.msk [vmem:[%s5115 + $0x51] sm:$0xff] %vm2328, %v5082
      %5124 = vst.msk [vmem:[%s5115 + $0x61] sm:$0xff] %vm2328, %v5084
      %5125 = vst.msk [vmem:[%s5115 + $0x69] sm:$0xff] %vm2328, %v5086
      %5126 = vst.msk [vmem:[%s5115 + $0x79] sm:$0xff] %vm2328, %v5088
      %5127 = vst.msk [vmem:[%s5115 + $0x81] sm:$0xff] %vm2328, %v5090
      %5128 = vst.msk [vmem:[%s5115 + $0x91] sm:$0xff] %vm2328, %v5092
      %5129 = vst.msk [vmem:[%s5115 + $0x99] sm:$0xff] %vm2328, %v5094
      %5130 = vst.msk [vmem:[%s5115 + $0xa9] sm:$0xff] %vm2328, %v5096
      %5131 = vst.msk [vmem:[%s5115 + $0xb1] sm:$0xff] %vm2328, %v5098
      // Predicated region
      $region53: #{tpu_custom_call.1} parent=43 // pred_check
        %p5132 = pneg %p3485
      $region54: #{tpu_custom_call.1} parent=43 // pred_check_branch
        %5134 = sbr.rel (%p5132) target = $region56
      $region55: #{tpu_custom_call.1} parent=43 // pred_region
        %v5135 = vld [vmem:[%s4] sm:$0x1]
        %v5137 = vperm.slane %v5135, 0
        %5138 = vrot.lane.b32.xlu0 %v5137, 96
        %v5139 = vpop.permute.xlu0 %5138
        %v5141 = vmul.f32 %v4955, %v5139
        %v5142 = vmul.f32 %v4956, %v5139
        %v5143 = vmul.f32 %v4957, %v5139
        %v5144 = vmul.f32 %v4958, %v5139
        %v5145 = vmul.f32 %v4959, %v5139
        %v5146 = vmul.f32 %v4960, %v5139
        %v5147 = vmul.f32 %v4961, %v5139
        %v5148 = vmul.f32 %v4962, %v5139
        %v5149 = vmul.f32 %v4963, %v5139
        %v5150 = vmul.f32 %v4964, %v5139
        %v5151 = vmul.f32 %v4965, %v5139
        %v5152 = vmul.f32 %v4966, %v5139
        %v5153 = vmul.f32 %v4967, %v5139
        %v5154 = vmul.f32 %v4968, %v5139
        %v5155 = vmul.f32 %v4969, %v5139
        %v5156 = vmul.f32 %v4970, %v5139
        %5173 = vrot.lane.b32.xlu0 %v5141, 32
        %v5174 = vpop.permute.xlu0 %5173
        %5175 = vrot.lane.b32.xlu0 %v5142, 32
        %v5176 = vpop.permute.xlu0 %5175
        %5177 = vrot.lane.b32.xlu0 %v5143, 32
        %v5178 = vpop.permute.xlu0 %5177
        %5179 = vrot.lane.b32.xlu0 %v5144, 32
        %v5180 = vpop.permute.xlu0 %5179
        %5181 = vrot.lane.b32.xlu0 %v5145, 32
        %v5182 = vpop.permute.xlu0 %5181
        %5183 = vrot.lane.b32.xlu0 %v5146, 32
        %v5184 = vpop.permute.xlu0 %5183
        %5185 = vrot.lane.b32.xlu0 %v5147, 32
        %v5186 = vpop.permute.xlu0 %5185
        %5187 = vrot.lane.b32.xlu0 %v5148, 32
        %v5188 = vpop.permute.xlu0 %5187
        %5189 = vrot.lane.b32.xlu0 %v5149, 32
        %v5190 = vpop.permute.xlu0 %5189
        %5191 = vrot.lane.b32.xlu0 %v5150, 32
        %v5192 = vpop.permute.xlu0 %5191
        %5193 = vrot.lane.b32.xlu0 %v5151, 32
        %v5194 = vpop.permute.xlu0 %5193
        %5195 = vrot.lane.b32.xlu0 %v5152, 32
        %v5196 = vpop.permute.xlu0 %5195
        %5197 = vrot.lane.b32.xlu0 %v5153, 32
        %v5198 = vpop.permute.xlu0 %5197
        %5199 = vrot.lane.b32.xlu0 %v5154, 32
        %v5200 = vpop.permute.xlu0 %5199
        %5201 = vrot.lane.b32.xlu0 %v5155, 32
        %v5202 = vpop.permute.xlu0 %5201
        %5203 = vrot.lane.b32.xlu0 %v5156, 32
        %v5204 = vpop.permute.xlu0 %5203
        %v5221 = vsel %vm2328, %v5174, 0.0
        %5222 = vadd.xlane.f32.xlu0 %v5221
        %v5223 = vpop.xlane.xlu0 %5222
        %v5224 = vsel %vm2328, %v5176, 0.0
        %5225 = vadd.xlane.f32.xlu0 %v5224
        %v5226 = vpop.xlane.xlu0 %5225
        %v5227 = vsel %vm2328, %v5178, 0.0
        %5228 = vadd.xlane.f32.xlu0 %v5227
        %v5229 = vpop.xlane.xlu0 %5228
        %v5230 = vsel %vm2328, %v5180, 0.0
        %5231 = vadd.xlane.f32.xlu0 %v5230
        %v5232 = vpop.xlane.xlu0 %5231
        %v5233 = vsel %vm2328, %v5182, 0.0
        %5234 = vadd.xlane.f32.xlu0 %v5233
        %v5235 = vpop.xlane.xlu0 %5234
        %v5236 = vsel %vm2328, %v5184, 0.0
        %5237 = vadd.xlane.f32.xlu0 %v5236
        %v5238 = vpop.xlane.xlu0 %5237
        %v5239 = vsel %vm2328, %v5186, 0.0
        %5240 = vadd.xlane.f32.xlu0 %v5239
        %v5241 = vpop.xlane.xlu0 %5240
        %v5242 = vsel %vm2328, %v5188, 0.0
        %5243 = vadd.xlane.f32.xlu0 %v5242
        %v5244 = vpop.xlane.xlu0 %5243
        %v5245 = vsel %vm2328, %v5190, 0.0
        %5246 = vadd.xlane.f32.xlu0 %v5245
        %v5247 = vpop.xlane.xlu0 %5246
        %v5248 = vsel %vm2328, %v5192, 0.0
        %5249 = vadd.xlane.f32.xlu0 %v5248
        %v5250 = vpop.xlane.xlu0 %5249
        %v5251 = vsel %vm2328, %v5194, 0.0
        %5252 = vadd.xlane.f32.xlu0 %v5251
        %v5253 = vpop.xlane.xlu0 %5252
        %v5254 = vsel %vm2328, %v5196, 0.0
        %5255 = vadd.xlane.f32.xlu0 %v5254
        %v5256 = vpop.xlane.xlu0 %5255
        %v5257 = vsel %vm2328, %v5198, 0.0
        %5258 = vadd.xlane.f32.xlu0 %v5257
        %v5259 = vpop.xlane.xlu0 %5258
        %v5260 = vsel %vm2328, %v5200, 0.0
        %5261 = vadd.xlane.f32.xlu0 %v5260
        %v5262 = vpop.xlane.xlu0 %5261
        %v5263 = vsel %vm2328, %v5202, 0.0
        %5264 = vadd.xlane.f32.xlu0 %v5263
        %v5265 = vpop.xlane.xlu0 %5264
        %v5266 = vsel %vm2328, %v5204, 0.0
        %5267 = vadd.xlane.f32.xlu0 %v5266
        %v5268 = vpop.xlane.xlu0 %5267
        %v5269 = vld [vmem:[#allocation5] sm:$0x1]
        %v5271 = vperm.slane %v5269, 0
        %v5273 = vadd.f32 %v5223, %v5271
        %v5274 = vadd.f32 %v5226, %v5271
        %v5275 = vadd.f32 %v5229, %v5271
        %v5276 = vadd.f32 %v5232, %v5271
        %v5277 = vadd.f32 %v5235, %v5271
        %v5278 = vadd.f32 %v5238, %v5271
        %v5279 = vadd.f32 %v5241, %v5271
        %v5280 = vadd.f32 %v5244, %v5271
        %v5281 = vadd.f32 %v5247, %v5271
        %v5282 = vadd.f32 %v5250, %v5271
        %v5283 = vadd.f32 %v5253, %v5271
        %v5284 = vadd.f32 %v5256, %v5271
        %v5285 = vadd.f32 %v5259, %v5271
        %v5286 = vadd.f32 %v5262, %v5271
        %v5287 = vadd.f32 %v5265, %v5271
        %v5288 = vadd.f32 %v5268, %v5271
        %s5289 = scalar_lea.vmem %s279, 128
        %vm5290 = vcmask 7168
        %5291 = vst.msk [vmem:[%s5289] sm:$0xff] %vm5290, %v5273
        %5292 = vst.msk [vmem:[%s5289 + $0x8] sm:$0xff] %vm5290, %v5274
        %5293 = vst.msk [vmem:[%s5289 + $0x10] sm:$0xff] %vm5290, %v5275
        %5294 = vst.msk [vmem:[%s5289 + $0x18] sm:$0xff] %vm5290, %v5276
        %5295 = vst.msk [vmem:[%s5289 + $0x20] sm:$0xff] %vm5290, %v5277
        %5296 = vst.msk [vmem:[%s5289 + $0x28] sm:$0xff] %vm5290, %v5278
        %5297 = vst.msk [vmem:[%s5289 + $0x30] sm:$0xff] %vm5290, %v5279
        %5298 = vst.msk [vmem:[%s5289 + $0x38] sm:$0xff] %vm5290, %v5280
        %5299 = vst.msk [vmem:[%s5289 + $0x40] sm:$0xff] %vm5290, %v5281
        %5300 = vst.msk [vmem:[%s5289 + $0x48] sm:$0xff] %vm5290, %v5282
        %5301 = vst.msk [vmem:[%s5289 + $0x50] sm:$0xff] %vm5290, %v5283
        %5302 = vst.msk [vmem:[%s5289 + $0x58] sm:$0xff] %vm5290, %v5284
        %5303 = vst.msk [vmem:[%s5289 + $0x60] sm:$0xff] %vm5290, %v5285
        %5304 = vst.msk [vmem:[%s5289 + $0x68] sm:$0xff] %vm5290, %v5286
        %5305 = vst.msk [vmem:[%s5289 + $0x70] sm:$0xff] %vm5290, %v5287
        %5306 = vst.msk [vmem:[%s5289 + $0x78] sm:$0xff] %vm5290, %v5288
      $region56: #{tpu_custom_call.1} parent=43 // pred_fallthru
        _
      %p5307 = scmp.lt.s32.totalorder %s23, 1
      %s5308 = scalar_select %p5307, %s23, 1
      %s5309 = smul.addr %s5308, 32
      %s5310 = smul.addr %s5309, 8
      %s5311 = scalar_lea.vmem %s6, %s5310
      // Predicated region
      $region57: #{tpu_custom_call.1} parent=43 // pred_check
        %p5312 = pneg %p182
      $region58: #{tpu_custom_call.1} parent=43 // pred_check_branch
        %5314 = sbr.rel (%p5312) target = $region60
      $region59: #{tpu_custom_call.1} parent=43 // pred_region
        _
      $region60: #{tpu_custom_call.1} parent=43 // pred_fallthru
        _
    $region44: #{tpu_custom_call.1} parent=5 // pred_fallthru
      _
    %p5315 = scmp.le.s32.totalorder 2, %s14
    // Predicated region
    $region61: #{tpu_custom_call.1} parent=5 // pred_check
      %p5316 = pneg %p5315
    $region62: #{tpu_custom_call.1} parent=5 // pred_check_branch
      %5318 = sbr.rel (%p5316) target = $region64
    $region63: #{tpu_custom_call.1} parent=5 // pred_region
      %s5319 = ssub.s32 %s14, 2
      // Predicated region
      $region65: #{tpu_custom_call.1} parent=63 // pred_check
        %p5320 = pneg %p188
      $region66: #{tpu_custom_call.1} parent=63 // pred_check_branch
        %5322 = sbr.rel (%p5320) target = $region68
      $region67: #{tpu_custom_call.1} parent=63 // pred_region
        %p5323 = scmp.lt.s32.totalorder %s25, 1
        %s5324 = scalar_select %p5323, %s25, 1
        %s5325 = smul.addr %s5324, 32
        %s5326 = smul.addr %s5325, 8
        %s5327 = scalar_lea.vmem %s6, %s5326
      $region68: #{tpu_custom_call.1} parent=63 // pred_fallthru
        _
    $region64: #{tpu_custom_call.1} parent=5 // pred_fallthru
      _
  $region6: #{tpu_custom_call.1} parent=0 // loop_footer
    %s18 = sadd.s32 1, %s14
  $region7: #{tpu_custom_call.1} parent=0 // loop_footer_branch
    %13 = sbr.rel target = $region3
  $region8: #{tpu_custom_call.1} parent=0 // loop_exit
    _

</llo_original>
